<compile_context>
chip_gen: v7x
topology: tpu7x:2x2x1
jax: 0.10.0
libtpu: 0.0.40
codegen_flags: <defaults>
</compile_context>

<pallas_src>
import numpy as np
import jax
import jax.numpy as jnp
from jax import lax
from jax.experimental import pallas as pl
from jax.experimental.pallas import tpu as pltpu

NUM_BITS_FLOAT32 = 32


# ----------------------------------------------------------------------------
# Layer parameter container (nn.Conv2d equivalent, square kernel, NCHW, f32)
# ----------------------------------------------------------------------------
class Conv2dPallas:
    def __init__(self, key, in_ch, out_ch, kernel_size, stride=1, padding=0,
                 fuse_relu=False):
        self.in_ch, self.out_ch = in_ch, out_ch
        self.k, self.stride, self.padding = kernel_size, stride, padding
        self.fuse_relu = fuse_relu
        kw_key, kb_key = jax.random.split(key)
        fan_in = in_ch * kernel_size * kernel_size
        bound = 1.0 / np.sqrt(fan_in)
        self.weight = jax.random.uniform(
            kw_key, (out_ch, in_ch, kernel_size, kernel_size),
            minval=-bound, maxval=bound, dtype=jnp.float32)
        self.bias = jax.random.uniform(
            kb_key, (out_ch,), minval=-bound, maxval=bound, dtype=jnp.float32)

    def out_shape(self, in_shape):
        n, c, h, w = in_shape
        ho = (h + 2 * self.padding - self.k) // self.stride + 1
        wo = (w + 2 * self.padding - self.k) // self.stride + 1
        return (n, self.out_ch, ho, wo)


# ----------------------------------------------------------------------------
# Fused whole-stack kernel builder
# ----------------------------------------------------------------------------
def _build_fused_stack(layers, in_shape):
    """One pallas_call for a stack of 3x3 / pad=1 convs (optional fused ReLU).

    All feature maps are kept in VMEM at the full input resolution in
    channel-major flat layout (C, H*W).  A layer with cumulative input stride
    d reads its 3x3 taps at dilated offsets d*(i-1), d*(j-1): by induction the
    true strided output of layer l equals the full-res map at positions that
    are multiples of the cumulative stride, so only one final subsample (done
    outside the kernel on the tiny result) is needed.
    """
    n, cin0, H, W = in_shape
    assert n == 1, "fused stack kernel supports batch 1 (reference input)"
    assert H == W and (W & (W - 1)) == 0, "square power-of-two spatial size"
    M = H * W
    log2w = int(np.log2(W))

    cfgs = []
    cin, res = cin0, H
    for lyr in layers:
        assert isinstance(lyr, Conv2dPallas), "fused path supports Conv2dPallas layers"
        assert lyr.k == 3 and lyr.padding == 1, "fused path: 3x3, pad=1 convs"
        assert lyr.in_ch == cin and res % lyr.stride == 0
        cfgs.append((lyr.out_ch, cin, lyr.stride, lyr.fuse_relu))
        cin = lyr.out_ch
        res //= lyr.stride
    cout_last = cin
    total_factor = H // res

    # ---------------- kernel body: whole conv stack, VMEM resident ----------
    def kernel(x_ref, *refs):
        o_ref = refs[-1]
        m_idx = lax.broadcasted_iota(jnp.int32, (1, M), 1)
        h_idx = m_idx >> log2w           # row index of flat position
        w_idx = m_idx & (W - 1)          # col index of flat position

        f = x_ref[...]                   # (cin, M) float32, channel-major flat
        dil = 1                          # cumulative stride of previous layers
        for li, (cout, cin_l, stride, relu) in enumerate(cfgs):
            w_ref = refs[2 * li]         # (cout, 9*cin_l), K order (kh, kw, cin)
            b_ref = refs[2 * li + 1]     # (cout, 1)
            taps = []
            for i in range(3):           # kh
                for j in range(3):       # kw
                    dh, dw = (i - 1) * dil, (j - 1) * dil
                    delta = dh * W + dw
                    if delta == 0:
                        taps.append(f)   # center tap, always in-bounds
                        continue
                    shifted = pltpu.roll(f, shift=(-delta) % M, axis=1)
                    valid = ((h_idx >= -dh) & (h_idx < H - dh) &
                             (w_idx >= -dw) & (w_idx < W - dw))
                    mask = jnp.where(valid, 1.0, 0.0)        # (1, M) f32
                    taps.append(shifted * mask)              # zero padding
            patches = jnp.concatenate(taps, axis=0)          # (9*cin_l, M)
            acc = jnp.dot(w_ref[...], patches,
                          preferred_element_type=jnp.float32)  # MXU (cout, M)
            acc = acc + b_ref[...]                           # fused bias
            if relu:
                acc = jnp.maximum(acc, 0.0)                  # fused ReLU
            f = acc
            dil *= stride
        o_ref[...] = f                   # (cout_last, M): lane-dense store

    # ---------------- operand prep + pallas_call -----------------------------
    # K ordering (kh, kw, cin) to match the tap-major patch concatenation.
    weights2d = [l.weight.transpose(0, 2, 3, 1).reshape(l.out_ch, 9 * l.in_ch)
                 for l in layers]
    biases2d = [l.bias.reshape(l.out_ch, 1) for l in layers]
    operands = []
    for w2d, b2d in zip(weights2d, biases2d):
        operands.extend([w2d, b2d])

    in_specs = [pl.BlockSpec((cin0, M), lambda: (0, 0))]
    for w2d, b2d in zip(weights2d, biases2d):
        in_specs.append(pl.BlockSpec(w2d.shape, lambda: (0, 0)))
        in_specs.append(pl.BlockSpec(b2d.shape, lambda: (0, 0)))

    flops = 2 * sum(cout * 9 * cin_l * M for cout, cin_l, _, _ in cfgs)
    bytes_accessed = 4 * (cin0 * M + cout_last * M +
                          sum(cout * 9 * cin_l + cout for cout, cin_l, _, _ in cfgs))

    fused_call = pl.pallas_call(
        kernel,
        out_shape=jax.ShapeDtypeStruct((cout_last, M), jnp.float32),
        in_specs=in_specs,
        out_specs=pl.BlockSpec((cout_last, M), lambda: (0, 0)),
        cost_estimate=pl.CostEstimate(flops=flops, transcendentals=0,
                                      bytes_accessed=bytes_accessed),
    )

    def forward(x_nchw):
        x2d = x_nchw.reshape(cin0, M)                 # channel-major, lane-dense
        out_full = fused_call(x2d, *operands)         # (cout_last, H*W) full-res
        out = out_full.reshape(cout_last, H, W)[:, ::total_factor, ::total_factor]
        return out.reshape(1, cout_last, res, res)    # NCHW only at the very end

    return forward


# ----------------------------------------------------------------------------
# Standalone ReLU kernel (generic stacks; not used by the fused conv path)
# ----------------------------------------------------------------------------
def _relu_kernel(x_ref, o_ref):
    o_ref[...] = jnp.maximum(x_ref[...], 0.0)


def relu_pallas_2d(x2d):
    r, c = x2d.shape
    return pl.pallas_call(
        _relu_kernel,
        out_shape=jax.ShapeDtypeStruct((r, c), x2d.dtype),
        in_specs=[pl.BlockSpec((r, c), lambda: (0, 0))],
        out_specs=pl.BlockSpec((r, c), lambda: (0, 0)),
    )(x2d)


class ReLUPallas:
    """nn.ReLU equivalent. Lane-dense layout: flatten, pad to a multiple of
    8*128 and view as (rows, 128) so every vreg is fully occupied."""

    def __call__(self, x):
        shape = x.shape
        numel = int(np.prod(shape))
        pad = (-numel) % (8 * 128)
        flat = x.reshape(numel)
        if pad:
            flat = jnp.pad(flat, (0, pad))
        y = relu_pallas_2d(flat.reshape(-1, 128))
        # TODO(synk): grid over row blocks for maps too large for one VMEM block.
        return y.reshape(-1)[:numel].reshape(shape)


# ----------------------------------------------------------------------------
# CNNMemAnalyzer — same forward-pass semantics as the PyTorch module
# ----------------------------------------------------------------------------
class CNNMemAnalyzer:

    def __init__(self, layers):
        self.layers = layers
        self._compiled = {}    # input shape -> jitted fused forward

    def _get_fused(self, in_shape):
        if in_shape not in self._compiled:
            self._compiled[in_shape] = jax.jit(_build_fused_stack(self.layers, in_shape))
        return self._compiled[in_shape]

    def forward(self, x):
        in_shape = tuple(x.shape)
        run = self._get_fused(in_shape)
        last_fmap = run(x)     # only the final feature map leaves the device

        # MB / spatial-resolution bookkeeping needs only STATIC shapes.
        tot_mbytes = 0
        spat_res = []
        shape = in_shape
        for layer in self.layers:
            shape = layer.out_shape(shape)
            mem_h_bytes = np.cumprod(shape)[-1] * NUM_BITS_FLOAT32 // 8
            mem_h_mb = mem_h_bytes / 1000000.0
            print('-' * 30)
            print('New feature map of shape: ', shape)
            print('Mem usage: {} MB'.format(mem_h_mb))
            if isinstance(layer, Conv2dPallas):
                spat_res.append(shape[-1])
            tot_mbytes += mem_h_mb
        print('=' * 30)
        print('Total used memory: {:.2f} MB'.format(tot_mbytes))
        return (tot_mbytes, spat_res), last_fmap


# ----------------------------------------------------------------------------
# Pure-JAX reference (for correctness check of the fused stack)
# ----------------------------------------------------------------------------
def _conv_relu_ref(x, layer):
    out = lax.conv_general_dilated(
        x, layer.weight,
        window_strides=(layer.stride, layer.stride),
        padding=[(layer.padding, layer.padding), (layer.padding, layer.padding)],
        dimension_numbers=('NCHW', 'OIHW', 'NCHW'))
    out = out + layer.bias.reshape(1, -1, 1, 1)
    return jnp.maximum(out, 0.0) if layer.fuse_relu else out


if __name__ == "__main__":
    key = jax.random.PRNGKey(0)
    k_in, k_c1, k_c2, k_c3 = jax.random.split(key, 4)

    # Input matches the reference script: (1, 1, 32, 32), NCHW, float32.
    x = jax.random.normal(k_in, (1, 1, 32, 32), dtype=jnp.float32)

    layers = [
        Conv2dPallas(k_c1, 1, 8, kernel_size=3, stride=1, padding=1, fuse_relu=True),   # -> (1, 8, 32, 32)
        Conv2dPallas(k_c2, 8, 16, kernel_size=3, stride=2, padding=1, fuse_relu=True),  # -> (1, 16, 16, 16)
        Conv2dPallas(k_c3, 16, 16, kernel_size=3, stride=2, padding=1, fuse_relu=True), # -> (1, 16, 8, 8)
    ]

    analyzer = CNNMemAnalyzer(layers)
    (tot_mbytes, spat_res), last_fmap = analyzer.forward(x)
    jax.block_until_ready(last_fmap)

    # Correctness check against a pure-JAX conv+ReLU stack.
    ref = x
    for layer in layers:
        ref = _conv_relu_ref(ref, layer)
    np.testing.assert_allclose(np.asarray(last_fmap), np.asarray(ref),
                               rtol=1e-4, atol=1e-4)

    assert spat_res == [32, 16, 8], spat_res
    assert tot_mbytes > 0.0

    # Standalone ReLU kernel: exercise the padded lane-dense fallback path.
    r_in = jax.random.normal(jax.random.PRNGKey(1), (3, 5, 7), dtype=jnp.float32)
    r_out = ReLUPallas()(r_in)
    jax.block_until_ready(r_out)
    np.testing.assert_allclose(np.asarray(r_out), np.maximum(np.asarray(r_in), 0.0))

    print("KERNEL_OK")
</pallas_src>

<mosaic_0001>
module attributes {stable_mosaic.version = 11 : i64} {
  func.func @kernel(%arg0: memref<1x1024xf32, #tpu.memory_space<vmem>>, %arg1: memref<8x9xf32, #tpu.memory_space<vmem>>, %arg2: memref<8x1xf32, #tpu.memory_space<vmem>>, %arg3: memref<16x72xf32, #tpu.memory_space<vmem>>, %arg4: memref<16x1xf32, #tpu.memory_space<vmem>>, %arg5: memref<16x144xf32, #tpu.memory_space<vmem>>, %arg6: memref<16x1xf32, #tpu.memory_space<vmem>>, %arg7: memref<16x1024xf32, #tpu.memory_space<vmem>>) attributes {dimension_semantics = [], scalar_prefetch = 0 : i64, scratch_operands = 0 : i64, tpu.core_type = #tpu.core_type<tc>} {
    %0 = tpu.iota {dimensions = array<i32: 1>} : vector<1x1024xi32>
    %c5_i32 = arith.constant 5 : i32
    %1 = vector.broadcast %c5_i32 : i32 to vector<1x1024xi32>
    %2 = arith.shrsi %0, %1 : vector<1x1024xi32>
    %c31_i32 = arith.constant 31 : i32
    %3 = vector.broadcast %c31_i32 : i32 to vector<1x1024xi32>
    %4 = arith.andi %0, %3 : vector<1x1024xi32>
    %c0 = arith.constant 0 : index
    %c0_0 = arith.constant 0 : index
    %5 = vector.load %arg0[%c0, %c0_0] : memref<1x1024xf32, #tpu.memory_space<vmem>>, vector<1x1024xf32>
    %c33_i32 = arith.constant 33 : i32
    %6 = tpu.dynamic_rotate %5 by %c33_i32 dim 1 : vector<1x1024xf32>, i32 -> vector<1x1024xf32>
    %c1_i32 = arith.constant 1 : i32
    %7 = vector.broadcast %c1_i32 : i32 to vector<1x1024xi32>
    %8 = arith.cmpi sge, %2, %7 : vector<1x1024xi32>
    %c33_i32_1 = arith.constant 33 : i32
    %9 = vector.broadcast %c33_i32_1 : i32 to vector<1x1024xi32>
    %10 = arith.cmpi slt, %2, %9 : vector<1x1024xi32>
    %11 = arith.andi %8, %10 : vector<1x1024xi1>
    %c1_i32_2 = arith.constant 1 : i32
    %12 = vector.broadcast %c1_i32_2 : i32 to vector<1x1024xi32>
    %13 = arith.cmpi sge, %4, %12 : vector<1x1024xi32>
    %14 = arith.andi %11, %13 : vector<1x1024xi1>
    %c33_i32_3 = arith.constant 33 : i32
    %15 = vector.broadcast %c33_i32_3 : i32 to vector<1x1024xi32>
    %16 = arith.cmpi slt, %4, %15 : vector<1x1024xi32>
    %17 = arith.andi %14, %16 : vector<1x1024xi1>
    %cst = arith.constant 1.000000e+00 : f32
    %cst_4 = arith.constant 0.000000e+00 : f32
    %18 = vector.broadcast %cst : f32 to vector<1x1024xf32>
    %19 = vector.broadcast %cst_4 : f32 to vector<1x1024xf32>
    %20 = arith.select %17, %18, %19 : vector<1x1024xi1>, vector<1x1024xf32>
    %21 = arith.mulf %6, %20 : vector<1x1024xf32>
    %c32_i32 = arith.constant 32 : i32
    %22 = tpu.dynamic_rotate %5 by %c32_i32 dim 1 : vector<1x1024xf32>, i32 -> vector<1x1024xf32>
    %c1_i32_5 = arith.constant 1 : i32
    %23 = vector.broadcast %c1_i32_5 : i32 to vector<1x1024xi32>
    %24 = arith.cmpi sge, %2, %23 : vector<1x1024xi32>
    %c33_i32_6 = arith.constant 33 : i32
    %25 = vector.broadcast %c33_i32_6 : i32 to vector<1x1024xi32>
    %26 = arith.cmpi slt, %2, %25 : vector<1x1024xi32>
    %27 = arith.andi %24, %26 : vector<1x1024xi1>
    %c0_i32 = arith.constant 0 : i32
    %28 = vector.broadcast %c0_i32 : i32 to vector<1x1024xi32>
    %29 = arith.cmpi sge, %4, %28 : vector<1x1024xi32>
    %30 = arith.andi %27, %29 : vector<1x1024xi1>
    %c32_i32_7 = arith.constant 32 : i32
    %31 = vector.broadcast %c32_i32_7 : i32 to vector<1x1024xi32>
    %32 = arith.cmpi slt, %4, %31 : vector<1x1024xi32>
    %33 = arith.andi %30, %32 : vector<1x1024xi1>
    %cst_8 = arith.constant 1.000000e+00 : f32
    %cst_9 = arith.constant 0.000000e+00 : f32
    %34 = vector.broadcast %cst_8 : f32 to vector<1x1024xf32>
    %35 = vector.broadcast %cst_9 : f32 to vector<1x1024xf32>
    %36 = arith.select %33, %34, %35 : vector<1x1024xi1>, vector<1x1024xf32>
    %37 = arith.mulf %22, %36 : vector<1x1024xf32>
    %c31_i32_10 = arith.constant 31 : i32
    %38 = tpu.dynamic_rotate %5 by %c31_i32_10 dim 1 : vector<1x1024xf32>, i32 -> vector<1x1024xf32>
    %c1_i32_11 = arith.constant 1 : i32
    %39 = vector.broadcast %c1_i32_11 : i32 to vector<1x1024xi32>
    %40 = arith.cmpi sge, %2, %39 : vector<1x1024xi32>
    %c33_i32_12 = arith.constant 33 : i32
    %41 = vector.broadcast %c33_i32_12 : i32 to vector<1x1024xi32>
    %42 = arith.cmpi slt, %2, %41 : vector<1x1024xi32>
    %43 = arith.andi %40, %42 : vector<1x1024xi1>
    %c-1_i32 = arith.constant -1 : i32
    %44 = vector.broadcast %c-1_i32 : i32 to vector<1x1024xi32>
    %45 = arith.cmpi sge, %4, %44 : vector<1x1024xi32>
    %46 = arith.andi %43, %45 : vector<1x1024xi1>
    %c31_i32_13 = arith.constant 31 : i32
    %47 = vector.broadcast %c31_i32_13 : i32 to vector<1x1024xi32>
    %48 = arith.cmpi slt, %4, %47 : vector<1x1024xi32>
    %49 = arith.andi %46, %48 : vector<1x1024xi1>
    %cst_14 = arith.constant 1.000000e+00 : f32
    %cst_15 = arith.constant 0.000000e+00 : f32
    %50 = vector.broadcast %cst_14 : f32 to vector<1x1024xf32>
    %51 = vector.broadcast %cst_15 : f32 to vector<1x1024xf32>
    %52 = arith.select %49, %50, %51 : vector<1x1024xi1>, vector<1x1024xf32>
    %53 = arith.mulf %38, %52 : vector<1x1024xf32>
    %c1_i32_16 = arith.constant 1 : i32
    %54 = tpu.dynamic_rotate %5 by %c1_i32_16 dim 1 : vector<1x1024xf32>, i32 -> vector<1x1024xf32>
    %c0_i32_17 = arith.constant 0 : i32
    %55 = vector.broadcast %c0_i32_17 : i32 to vector<1x1024xi32>
    %56 = arith.cmpi sge, %2, %55 : vector<1x1024xi32>
    %c32_i32_18 = arith.constant 32 : i32
    %57 = vector.broadcast %c32_i32_18 : i32 to vector<1x1024xi32>
    %58 = arith.cmpi slt, %2, %57 : vector<1x1024xi32>
    %59 = arith.andi %56, %58 : vector<1x1024xi1>
    %c1_i32_19 = arith.constant 1 : i32
    %60 = vector.broadcast %c1_i32_19 : i32 to vector<1x1024xi32>
    %61 = arith.cmpi sge, %4, %60 : vector<1x1024xi32>
    %62 = arith.andi %59, %61 : vector<1x1024xi1>
    %c33_i32_20 = arith.constant 33 : i32
    %63 = vector.broadcast %c33_i32_20 : i32 to vector<1x1024xi32>
    %64 = arith.cmpi slt, %4, %63 : vector<1x1024xi32>
    %65 = arith.andi %62, %64 : vector<1x1024xi1>
    %cst_21 = arith.constant 1.000000e+00 : f32
    %cst_22 = arith.constant 0.000000e+00 : f32
    %66 = vector.broadcast %cst_21 : f32 to vector<1x1024xf32>
    %67 = vector.broadcast %cst_22 : f32 to vector<1x1024xf32>
    %68 = arith.select %65, %66, %67 : vector<1x1024xi1>, vector<1x1024xf32>
    %69 = arith.mulf %54, %68 : vector<1x1024xf32>
    %c1023_i32 = arith.constant 1023 : i32
    %70 = tpu.dynamic_rotate %5 by %c1023_i32 dim 1 : vector<1x1024xf32>, i32 -> vector<1x1024xf32>
    %c0_i32_23 = arith.constant 0 : i32
    %71 = vector.broadcast %c0_i32_23 : i32 to vector<1x1024xi32>
    %72 = arith.cmpi sge, %2, %71 : vector<1x1024xi32>
    %c32_i32_24 = arith.constant 32 : i32
    %73 = vector.broadcast %c32_i32_24 : i32 to vector<1x1024xi32>
    %74 = arith.cmpi slt, %2, %73 : vector<1x1024xi32>
    %75 = arith.andi %72, %74 : vector<1x1024xi1>
    %c-1_i32_25 = arith.constant -1 : i32
    %76 = vector.broadcast %c-1_i32_25 : i32 to vector<1x1024xi32>
    %77 = arith.cmpi sge, %4, %76 : vector<1x1024xi32>
    %78 = arith.andi %75, %77 : vector<1x1024xi1>
    %c31_i32_26 = arith.constant 31 : i32
    %79 = vector.broadcast %c31_i32_26 : i32 to vector<1x1024xi32>
    %80 = arith.cmpi slt, %4, %79 : vector<1x1024xi32>
    %81 = arith.andi %78, %80 : vector<1x1024xi1>
    %cst_27 = arith.constant 1.000000e+00 : f32
    %cst_28 = arith.constant 0.000000e+00 : f32
    %82 = vector.broadcast %cst_27 : f32 to vector<1x1024xf32>
    %83 = vector.broadcast %cst_28 : f32 to vector<1x1024xf32>
    %84 = arith.select %81, %82, %83 : vector<1x1024xi1>, vector<1x1024xf32>
    %85 = arith.mulf %70, %84 : vector<1x1024xf32>
    %c993_i32 = arith.constant 993 : i32
    %86 = tpu.dynamic_rotate %5 by %c993_i32 dim 1 : vector<1x1024xf32>, i32 -> vector<1x1024xf32>
    %c-1_i32_29 = arith.constant -1 : i32
    %87 = vector.broadcast %c-1_i32_29 : i32 to vector<1x1024xi32>
    %88 = arith.cmpi sge, %2, %87 : vector<1x1024xi32>
    %c31_i32_30 = arith.constant 31 : i32
    %89 = vector.broadcast %c31_i32_30 : i32 to vector<1x1024xi32>
    %90 = arith.cmpi slt, %2, %89 : vector<1x1024xi32>
    %91 = arith.andi %88, %90 : vector<1x1024xi1>
    %c1_i32_31 = arith.constant 1 : i32
    %92 = vector.broadcast %c1_i32_31 : i32 to vector<1x1024xi32>
    %93 = arith.cmpi sge, %4, %92 : vector<1x1024xi32>
    %94 = arith.andi %91, %93 : vector<1x1024xi1>
    %c33_i32_32 = arith.constant 33 : i32
    %95 = vector.broadcast %c33_i32_32 : i32 to vector<1x1024xi32>
    %96 = arith.cmpi slt, %4, %95 : vector<1x1024xi32>
    %97 = arith.andi %94, %96 : vector<1x1024xi1>
    %cst_33 = arith.constant 1.000000e+00 : f32
    %cst_34 = arith.constant 0.000000e+00 : f32
    %98 = vector.broadcast %cst_33 : f32 to vector<1x1024xf32>
    %99 = vector.broadcast %cst_34 : f32 to vector<1x1024xf32>
    %100 = arith.select %97, %98, %99 : vector<1x1024xi1>, vector<1x1024xf32>
    %101 = arith.mulf %86, %100 : vector<1x1024xf32>
    %c992_i32 = arith.constant 992 : i32
    %102 = tpu.dynamic_rotate %5 by %c992_i32 dim 1 : vector<1x1024xf32>, i32 -> vector<1x1024xf32>
    %c-1_i32_35 = arith.constant -1 : i32
    %103 = vector.broadcast %c-1_i32_35 : i32 to vector<1x1024xi32>
    %104 = arith.cmpi sge, %2, %103 : vector<1x1024xi32>
    %c31_i32_36 = arith.constant 31 : i32
    %105 = vector.broadcast %c31_i32_36 : i32 to vector<1x1024xi32>
    %106 = arith.cmpi slt, %2, %105 : vector<1x1024xi32>
    %107 = arith.andi %104, %106 : vector<1x1024xi1>
    %c0_i32_37 = arith.constant 0 : i32
    %108 = vector.broadcast %c0_i32_37 : i32 to vector<1x1024xi32>
    %109 = arith.cmpi sge, %4, %108 : vector<1x1024xi32>
    %110 = arith.andi %107, %109 : vector<1x1024xi1>
    %c32_i32_38 = arith.constant 32 : i32
    %111 = vector.broadcast %c32_i32_38 : i32 to vector<1x1024xi32>
    %112 = arith.cmpi slt, %4, %111 : vector<1x1024xi32>
    %113 = arith.andi %110, %112 : vector<1x1024xi1>
    %cst_39 = arith.constant 1.000000e+00 : f32
    %cst_40 = arith.constant 0.000000e+00 : f32
    %114 = vector.broadcast %cst_39 : f32 to vector<1x1024xf32>
    %115 = vector.broadcast %cst_40 : f32 to vector<1x1024xf32>
    %116 = arith.select %113, %114, %115 : vector<1x1024xi1>, vector<1x1024xf32>
    %117 = arith.mulf %102, %116 : vector<1x1024xf32>
    %c991_i32 = arith.constant 991 : i32
    %118 = tpu.dynamic_rotate %5 by %c991_i32 dim 1 : vector<1x1024xf32>, i32 -> vector<1x1024xf32>
    %c-1_i32_41 = arith.constant -1 : i32
    %119 = vector.broadcast %c-1_i32_41 : i32 to vector<1x1024xi32>
    %120 = arith.cmpi sge, %2, %119 : vector<1x1024xi32>
    %c31_i32_42 = arith.constant 31 : i32
    %121 = vector.broadcast %c31_i32_42 : i32 to vector<1x1024xi32>
    %122 = arith.cmpi slt, %2, %121 : vector<1x1024xi32>
    %123 = arith.andi %120, %122 : vector<1x1024xi1>
    %c-1_i32_43 = arith.constant -1 : i32
    %124 = vector.broadcast %c-1_i32_43 : i32 to vector<1x1024xi32>
    %125 = arith.cmpi sge, %4, %124 : vector<1x1024xi32>
    %126 = arith.andi %123, %125 : vector<1x1024xi1>
    %c31_i32_44 = arith.constant 31 : i32
    %127 = vector.broadcast %c31_i32_44 : i32 to vector<1x1024xi32>
    %128 = arith.cmpi slt, %4, %127 : vector<1x1024xi32>
    %129 = arith.andi %126, %128 : vector<1x1024xi1>
    %cst_45 = arith.constant 1.000000e+00 : f32
    %cst_46 = arith.constant 0.000000e+00 : f32
    %130 = vector.broadcast %cst_45 : f32 to vector<1x1024xf32>
    %131 = vector.broadcast %cst_46 : f32 to vector<1x1024xf32>
    %132 = arith.select %129, %130, %131 : vector<1x1024xi1>, vector<1x1024xf32>
    %133 = arith.mulf %118, %132 : vector<1x1024xf32>
    %134 = tpu.concatenate %21, %37, %53, %69, %5, %85, %101, %117, %133 in 0 : vector<1x1024xf32>, vector<1x1024xf32>, vector<1x1024xf32>, vector<1x1024xf32>, vector<1x1024xf32>, vector<1x1024xf32>, vector<1x1024xf32>, vector<1x1024xf32>, vector<1x1024xf32> -> vector<9x1024xf32>
    %c0_47 = arith.constant 0 : index
    %c0_48 = arith.constant 0 : index
    %135 = vector.load %arg1[%c0_47, %c0_48] : memref<8x9xf32, #tpu.memory_space<vmem>>, vector<8x9xf32>
    %cst_49 = arith.constant dense<0.000000e+00> : vector<8x1024xf32>
    %136 = tpu.matmul %135, %134, %cst_49 {dimension_numbers = #tpu.dot_dimension_numbers<[1], [0], [0], [1], [0, 0, 1, 1], [], []>} : vector<8x9xf32>, vector<9x1024xf32>, vector<8x1024xf32> -> vector<8x1024xf32>
    %c0_50 = arith.constant 0 : index
    %c0_51 = arith.constant 0 : index
    %137 = vector.load %arg2[%c0_50, %c0_51] : memref<8x1xf32, #tpu.memory_space<vmem>>, vector<8x1xf32>
    %138 = vector.broadcast %137 : vector<8x1xf32> to vector<8x1024xf32>
    %139 = arith.addf %136, %138 : vector<8x1024xf32>
    %cst_52 = arith.constant 0.000000e+00 : f32
    %140 = vector.broadcast %cst_52 : f32 to vector<8x1024xf32>
    %141 = arith.maximumf %139, %140 : vector<8x1024xf32>
    %c33_i32_53 = arith.constant 33 : i32
    %142 = tpu.dynamic_rotate %141 by %c33_i32_53 dim 1 : vector<8x1024xf32>, i32 -> vector<8x1024xf32>
    %c1_i32_54 = arith.constant 1 : i32
    %143 = vector.broadcast %c1_i32_54 : i32 to vector<1x1024xi32>
    %144 = arith.cmpi sge, %2, %143 : vector<1x1024xi32>
    %c33_i32_55 = arith.constant 33 : i32
    %145 = vector.broadcast %c33_i32_55 : i32 to vector<1x1024xi32>
    %146 = arith.cmpi slt, %2, %145 : vector<1x1024xi32>
    %147 = arith.andi %144, %146 : vector<1x1024xi1>
    %c1_i32_56 = arith.constant 1 : i32
    %148 = vector.broadcast %c1_i32_56 : i32 to vector<1x1024xi32>
    %149 = arith.cmpi sge, %4, %148 : vector<1x1024xi32>
    %150 = arith.andi %147, %149 : vector<1x1024xi1>
    %c33_i32_57 = arith.constant 33 : i32
    %151 = vector.broadcast %c33_i32_57 : i32 to vector<1x1024xi32>
    %152 = arith.cmpi slt, %4, %151 : vector<1x1024xi32>
    %153 = arith.andi %150, %152 : vector<1x1024xi1>
    %cst_58 = arith.constant 1.000000e+00 : f32
    %cst_59 = arith.constant 0.000000e+00 : f32
    %154 = vector.broadcast %cst_58 : f32 to vector<1x1024xf32>
    %155 = vector.broadcast %cst_59 : f32 to vector<1x1024xf32>
    %156 = arith.select %153, %154, %155 : vector<1x1024xi1>, vector<1x1024xf32>
    %157 = vector.broadcast %156 : vector<1x1024xf32> to vector<8x1024xf32>
    %158 = arith.mulf %142, %157 : vector<8x1024xf32>
    %c32_i32_60 = arith.constant 32 : i32
    %159 = tpu.dynamic_rotate %141 by %c32_i32_60 dim 1 : vector<8x1024xf32>, i32 -> vector<8x1024xf32>
    %c1_i32_61 = arith.constant 1 : i32
    %160 = vector.broadcast %c1_i32_61 : i32 to vector<1x1024xi32>
    %161 = arith.cmpi sge, %2, %160 : vector<1x1024xi32>
    %c33_i32_62 = arith.constant 33 : i32
    %162 = vector.broadcast %c33_i32_62 : i32 to vector<1x1024xi32>
    %163 = arith.cmpi slt, %2, %162 : vector<1x1024xi32>
    %164 = arith.andi %161, %163 : vector<1x1024xi1>
    %c0_i32_63 = arith.constant 0 : i32
    %165 = vector.broadcast %c0_i32_63 : i32 to vector<1x1024xi32>
    %166 = arith.cmpi sge, %4, %165 : vector<1x1024xi32>
    %167 = arith.andi %164, %166 : vector<1x1024xi1>
    %c32_i32_64 = arith.constant 32 : i32
    %168 = vector.broadcast %c32_i32_64 : i32 to vector<1x1024xi32>
    %169 = arith.cmpi slt, %4, %168 : vector<1x1024xi32>
    %170 = arith.andi %167, %169 : vector<1x1024xi1>
    %cst_65 = arith.constant 1.000000e+00 : f32
    %cst_66 = arith.constant 0.000000e+00 : f32
    %171 = vector.broadcast %cst_65 : f32 to vector<1x1024xf32>
    %172 = vector.broadcast %cst_66 : f32 to vector<1x1024xf32>
    %173 = arith.select %170, %171, %172 : vector<1x1024xi1>, vector<1x1024xf32>
    %174 = vector.broadcast %173 : vector<1x1024xf32> to vector<8x1024xf32>
    %175 = arith.mulf %159, %174 : vector<8x1024xf32>
    %c31_i32_67 = arith.constant 31 : i32
    %176 = tpu.dynamic_rotate %141 by %c31_i32_67 dim 1 : vector<8x1024xf32>, i32 -> vector<8x1024xf32>
    %c1_i32_68 = arith.constant 1 : i32
    %177 = vector.broadcast %c1_i32_68 : i32 to vector<1x1024xi32>
    %178 = arith.cmpi sge, %2, %177 : vector<1x1024xi32>
    %c33_i32_69 = arith.constant 33 : i32
    %179 = vector.broadcast %c33_i32_69 : i32 to vector<1x1024xi32>
    %180 = arith.cmpi slt, %2, %179 : vector<1x1024xi32>
    %181 = arith.andi %178, %180 : vector<1x1024xi1>
    %c-1_i32_70 = arith.constant -1 : i32
    %182 = vector.broadcast %c-1_i32_70 : i32 to vector<1x1024xi32>
    %183 = arith.cmpi sge, %4, %182 : vector<1x1024xi32>
    %184 = arith.andi %181, %183 : vector<1x1024xi1>
    %c31_i32_71 = arith.constant 31 : i32
    %185 = vector.broadcast %c31_i32_71 : i32 to vector<1x1024xi32>
    %186 = arith.cmpi slt, %4, %185 : vector<1x1024xi32>
    %187 = arith.andi %184, %186 : vector<1x1024xi1>
    %cst_72 = arith.constant 1.000000e+00 : f32
    %cst_73 = arith.constant 0.000000e+00 : f32
    %188 = vector.broadcast %cst_72 : f32 to vector<1x1024xf32>
    %189 = vector.broadcast %cst_73 : f32 to vector<1x1024xf32>
    %190 = arith.select %187, %188, %189 : vector<1x1024xi1>, vector<1x1024xf32>
    %191 = vector.broadcast %190 : vector<1x1024xf32> to vector<8x1024xf32>
    %192 = arith.mulf %176, %191 : vector<8x1024xf32>
    %c1_i32_74 = arith.constant 1 : i32
    %193 = tpu.dynamic_rotate %141 by %c1_i32_74 dim 1 : vector<8x1024xf32>, i32 -> vector<8x1024xf32>
    %c0_i32_75 = arith.constant 0 : i32
    %194 = vector.broadcast %c0_i32_75 : i32 to vector<1x1024xi32>
    %195 = arith.cmpi sge, %2, %194 : vector<1x1024xi32>
    %c32_i32_76 = arith.constant 32 : i32
    %196 = vector.broadcast %c32_i32_76 : i32 to vector<1x1024xi32>
    %197 = arith.cmpi slt, %2, %196 : vector<1x1024xi32>
    %198 = arith.andi %195, %197 : vector<1x1024xi1>
    %c1_i32_77 = arith.constant 1 : i32
    %199 = vector.broadcast %c1_i32_77 : i32 to vector<1x1024xi32>
    %200 = arith.cmpi sge, %4, %199 : vector<1x1024xi32>
    %201 = arith.andi %198, %200 : vector<1x1024xi1>
    %c33_i32_78 = arith.constant 33 : i32
    %202 = vector.broadcast %c33_i32_78 : i32 to vector<1x1024xi32>
    %203 = arith.cmpi slt, %4, %202 : vector<1x1024xi32>
    %204 = arith.andi %201, %203 : vector<1x1024xi1>
    %cst_79 = arith.constant 1.000000e+00 : f32
    %cst_80 = arith.constant 0.000000e+00 : f32
    %205 = vector.broadcast %cst_79 : f32 to vector<1x1024xf32>
    %206 = vector.broadcast %cst_80 : f32 to vector<1x1024xf32>
    %207 = arith.select %204, %205, %206 : vector<1x1024xi1>, vector<1x1024xf32>
    %208 = vector.broadcast %207 : vector<1x1024xf32> to vector<8x1024xf32>
    %209 = arith.mulf %193, %208 : vector<8x1024xf32>
    %c1023_i32_81 = arith.constant 1023 : i32
    %210 = tpu.dynamic_rotate %141 by %c1023_i32_81 dim 1 : vector<8x1024xf32>, i32 -> vector<8x1024xf32>
    %c0_i32_82 = arith.constant 0 : i32
    %211 = vector.broadcast %c0_i32_82 : i32 to vector<1x1024xi32>
    %212 = arith.cmpi sge, %2, %211 : vector<1x1024xi32>
    %c32_i32_83 = arith.constant 32 : i32
    %213 = vector.broadcast %c32_i32_83 : i32 to vector<1x1024xi32>
    %214 = arith.cmpi slt, %2, %213 : vector<1x1024xi32>
    %215 = arith.andi %212, %214 : vector<1x1024xi1>
    %c-1_i32_84 = arith.constant -1 : i32
    %216 = vector.broadcast %c-1_i32_84 : i32 to vector<1x1024xi32>
    %217 = arith.cmpi sge, %4, %216 : vector<1x1024xi32>
    %218 = arith.andi %215, %217 : vector<1x1024xi1>
    %c31_i32_85 = arith.constant 31 : i32
    %219 = vector.broadcast %c31_i32_85 : i32 to vector<1x1024xi32>
    %220 = arith.cmpi slt, %4, %219 : vector<1x1024xi32>
    %221 = arith.andi %218, %220 : vector<1x1024xi1>
    %cst_86 = arith.constant 1.000000e+00 : f32
    %cst_87 = arith.constant 0.000000e+00 : f32
    %222 = vector.broadcast %cst_86 : f32 to vector<1x1024xf32>
    %223 = vector.broadcast %cst_87 : f32 to vector<1x1024xf32>
    %224 = arith.select %221, %222, %223 : vector<1x1024xi1>, vector<1x1024xf32>
    %225 = vector.broadcast %224 : vector<1x1024xf32> to vector<8x1024xf32>
    %226 = arith.mulf %210, %225 : vector<8x1024xf32>
    %c993_i32_88 = arith.constant 993 : i32
    %227 = tpu.dynamic_rotate %141 by %c993_i32_88 dim 1 : vector<8x1024xf32>, i32 -> vector<8x1024xf32>
    %c-1_i32_89 = arith.constant -1 : i32
    %228 = vector.broadcast %c-1_i32_89 : i32 to vector<1x1024xi32>
    %229 = arith.cmpi sge, %2, %228 : vector<1x1024xi32>
    %c31_i32_90 = arith.constant 31 : i32
    %230 = vector.broadcast %c31_i32_90 : i32 to vector<1x1024xi32>
    %231 = arith.cmpi slt, %2, %230 : vector<1x1024xi32>
    %232 = arith.andi %229, %231 : vector<1x1024xi1>
    %c1_i32_91 = arith.constant 1 : i32
    %233 = vector.broadcast %c1_i32_91 : i32 to vector<1x1024xi32>
    %234 = arith.cmpi sge, %4, %233 : vector<1x1024xi32>
    %235 = arith.andi %232, %234 : vector<1x1024xi1>
    %c33_i32_92 = arith.constant 33 : i32
    %236 = vector.broadcast %c33_i32_92 : i32 to vector<1x1024xi32>
    %237 = arith.cmpi slt, %4, %236 : vector<1x1024xi32>
    %238 = arith.andi %235, %237 : vector<1x1024xi1>
    %cst_93 = arith.constant 1.000000e+00 : f32
    %cst_94 = arith.constant 0.000000e+00 : f32
    %239 = vector.broadcast %cst_93 : f32 to vector<1x1024xf32>
    %240 = vector.broadcast %cst_94 : f32 to vector<1x1024xf32>
    %241 = arith.select %238, %239, %240 : vector<1x1024xi1>, vector<1x1024xf32>
    %242 = vector.broadcast %241 : vector<1x1024xf32> to vector<8x1024xf32>
    %243 = arith.mulf %227, %242 : vector<8x1024xf32>
    %c992_i32_95 = arith.constant 992 : i32
    %244 = tpu.dynamic_rotate %141 by %c992_i32_95 dim 1 : vector<8x1024xf32>, i32 -> vector<8x1024xf32>
    %c-1_i32_96 = arith.constant -1 : i32
    %245 = vector.broadcast %c-1_i32_96 : i32 to vector<1x1024xi32>
    %246 = arith.cmpi sge, %2, %245 : vector<1x1024xi32>
    %c31_i32_97 = arith.constant 31 : i32
    %247 = vector.broadcast %c31_i32_97 : i32 to vector<1x1024xi32>
    %248 = arith.cmpi slt, %2, %247 : vector<1x1024xi32>
    %249 = arith.andi %246, %248 : vector<1x1024xi1>
    %c0_i32_98 = arith.constant 0 : i32
    %250 = vector.broadcast %c0_i32_98 : i32 to vector<1x1024xi32>
    %251 = arith.cmpi sge, %4, %250 : vector<1x1024xi32>
    %252 = arith.andi %249, %251 : vector<1x1024xi1>
    %c32_i32_99 = arith.constant 32 : i32
    %253 = vector.broadcast %c32_i32_99 : i32 to vector<1x1024xi32>
    %254 = arith.cmpi slt, %4, %253 : vector<1x1024xi32>
    %255 = arith.andi %252, %254 : vector<1x1024xi1>
    %cst_100 = arith.constant 1.000000e+00 : f32
    %cst_101 = arith.constant 0.000000e+00 : f32
    %256 = vector.broadcast %cst_100 : f32 to vector<1x1024xf32>
    %257 = vector.broadcast %cst_101 : f32 to vector<1x1024xf32>
    %258 = arith.select %255, %256, %257 : vector<1x1024xi1>, vector<1x1024xf32>
    %259 = vector.broadcast %258 : vector<1x1024xf32> to vector<8x1024xf32>
    %260 = arith.mulf %244, %259 : vector<8x1024xf32>
    %c991_i32_102 = arith.constant 991 : i32
    %261 = tpu.dynamic_rotate %141 by %c991_i32_102 dim 1 : vector<8x1024xf32>, i32 -> vector<8x1024xf32>
    %c-1_i32_103 = arith.constant -1 : i32
    %262 = vector.broadcast %c-1_i32_103 : i32 to vector<1x1024xi32>
    %263 = arith.cmpi sge, %2, %262 : vector<1x1024xi32>
    %c31_i32_104 = arith.constant 31 : i32
    %264 = vector.broadcast %c31_i32_104 : i32 to vector<1x1024xi32>
    %265 = arith.cmpi slt, %2, %264 : vector<1x1024xi32>
    %266 = arith.andi %263, %265 : vector<1x1024xi1>
    %c-1_i32_105 = arith.constant -1 : i32
    %267 = vector.broadcast %c-1_i32_105 : i32 to vector<1x1024xi32>
    %268 = arith.cmpi sge, %4, %267 : vector<1x1024xi32>
    %269 = arith.andi %266, %268 : vector<1x1024xi1>
    %c31_i32_106 = arith.constant 31 : i32
    %270 = vector.broadcast %c31_i32_106 : i32 to vector<1x1024xi32>
    %271 = arith.cmpi slt, %4, %270 : vector<1x1024xi32>
    %272 = arith.andi %269, %271 : vector<1x1024xi1>
    %cst_107 = arith.constant 1.000000e+00 : f32
    %cst_108 = arith.constant 0.000000e+00 : f32
    %273 = vector.broadcast %cst_107 : f32 to vector<1x1024xf32>
    %274 = vector.broadcast %cst_108 : f32 to vector<1x1024xf32>
    %275 = arith.select %272, %273, %274 : vector<1x1024xi1>, vector<1x1024xf32>
    %276 = vector.broadcast %275 : vector<1x1024xf32> to vector<8x1024xf32>
    %277 = arith.mulf %261, %276 : vector<8x1024xf32>
    %278 = tpu.concatenate %158, %175, %192, %209, %141, %226, %243, %260, %277 in 0 : vector<8x1024xf32>, vector<8x1024xf32>, vector<8x1024xf32>, vector<8x1024xf32>, vector<8x1024xf32>, vector<8x1024xf32>, vector<8x1024xf32>, vector<8x1024xf32>, vector<8x1024xf32> -> vector<72x1024xf32>
    %c0_109 = arith.constant 0 : index
    %c0_110 = arith.constant 0 : index
    %279 = vector.load %arg3[%c0_109, %c0_110] : memref<16x72xf32, #tpu.memory_space<vmem>>, vector<16x72xf32>
    %cst_111 = arith.constant dense<0.000000e+00> : vector<16x1024xf32>
    %280 = tpu.matmul %279, %278, %cst_111 {dimension_numbers = #tpu.dot_dimension_numbers<[1], [0], [0], [1], [0, 0, 1, 1], [], []>} : vector<16x72xf32>, vector<72x1024xf32>, vector<16x1024xf32> -> vector<16x1024xf32>
    %c0_112 = arith.constant 0 : index
    %c0_113 = arith.constant 0 : index
    %281 = vector.load %arg4[%c0_112, %c0_113] : memref<16x1xf32, #tpu.memory_space<vmem>>, vector<16x1xf32>
    %282 = vector.broadcast %281 : vector<16x1xf32> to vector<16x1024xf32>
    %283 = arith.addf %280, %282 : vector<16x1024xf32>
    %cst_114 = arith.constant 0.000000e+00 : f32
    %284 = vector.broadcast %cst_114 : f32 to vector<16x1024xf32>
    %285 = arith.maximumf %283, %284 : vector<16x1024xf32>
    %c66_i32 = arith.constant 66 : i32
    %286 = tpu.dynamic_rotate %285 by %c66_i32 dim 1 : vector<16x1024xf32>, i32 -> vector<16x1024xf32>
    %c2_i32 = arith.constant 2 : i32
    %287 = vector.broadcast %c2_i32 : i32 to vector<1x1024xi32>
    %288 = arith.cmpi sge, %2, %287 : vector<1x1024xi32>
    %c34_i32 = arith.constant 34 : i32
    %289 = vector.broadcast %c34_i32 : i32 to vector<1x1024xi32>
    %290 = arith.cmpi slt, %2, %289 : vector<1x1024xi32>
    %291 = arith.andi %288, %290 : vector<1x1024xi1>
    %c2_i32_115 = arith.constant 2 : i32
    %292 = vector.broadcast %c2_i32_115 : i32 to vector<1x1024xi32>
    %293 = arith.cmpi sge, %4, %292 : vector<1x1024xi32>
    %294 = arith.andi %291, %293 : vector<1x1024xi1>
    %c34_i32_116 = arith.constant 34 : i32
    %295 = vector.broadcast %c34_i32_116 : i32 to vector<1x1024xi32>
    %296 = arith.cmpi slt, %4, %295 : vector<1x1024xi32>
    %297 = arith.andi %294, %296 : vector<1x1024xi1>
    %cst_117 = arith.constant 1.000000e+00 : f32
    %cst_118 = arith.constant 0.000000e+00 : f32
    %298 = vector.broadcast %cst_117 : f32 to vector<1x1024xf32>
    %299 = vector.broadcast %cst_118 : f32 to vector<1x1024xf32>
    %300 = arith.select %297, %298, %299 : vector<1x1024xi1>, vector<1x1024xf32>
    %301 = vector.broadcast %300 : vector<1x1024xf32> to vector<16x1024xf32>
    %302 = arith.mulf %286, %301 : vector<16x1024xf32>
    %c64_i32 = arith.constant 64 : i32
    %303 = tpu.dynamic_rotate %285 by %c64_i32 dim 1 : vector<16x1024xf32>, i32 -> vector<16x1024xf32>
    %c2_i32_119 = arith.constant 2 : i32
    %304 = vector.broadcast %c2_i32_119 : i32 to vector<1x1024xi32>
    %305 = arith.cmpi sge, %2, %304 : vector<1x1024xi32>
    %c34_i32_120 = arith.constant 34 : i32
    %306 = vector.broadcast %c34_i32_120 : i32 to vector<1x1024xi32>
    %307 = arith.cmpi slt, %2, %306 : vector<1x1024xi32>
    %308 = arith.andi %305, %307 : vector<1x1024xi1>
    %c0_i32_121 = arith.constant 0 : i32
    %309 = vector.broadcast %c0_i32_121 : i32 to vector<1x1024xi32>
    %310 = arith.cmpi sge, %4, %309 : vector<1x1024xi32>
    %311 = arith.andi %308, %310 : vector<1x1024xi1>
    %c32_i32_122 = arith.constant 32 : i32
    %312 = vector.broadcast %c32_i32_122 : i32 to vector<1x1024xi32>
    %313 = arith.cmpi slt, %4, %312 : vector<1x1024xi32>
    %314 = arith.andi %311, %313 : vector<1x1024xi1>
    %cst_123 = arith.constant 1.000000e+00 : f32
    %cst_124 = arith.constant 0.000000e+00 : f32
    %315 = vector.broadcast %cst_123 : f32 to vector<1x1024xf32>
    %316 = vector.broadcast %cst_124 : f32 to vector<1x1024xf32>
    %317 = arith.select %314, %315, %316 : vector<1x1024xi1>, vector<1x1024xf32>
    %318 = vector.broadcast %317 : vector<1x1024xf32> to vector<16x1024xf32>
    %319 = arith.mulf %303, %318 : vector<16x1024xf32>
    %c62_i32 = arith.constant 62 : i32
    %320 = tpu.dynamic_rotate %285 by %c62_i32 dim 1 : vector<16x1024xf32>, i32 -> vector<16x1024xf32>
    %c2_i32_125 = arith.constant 2 : i32
    %321 = vector.broadcast %c2_i32_125 : i32 to vector<1x1024xi32>
    %322 = arith.cmpi sge, %2, %321 : vector<1x1024xi32>
    %c34_i32_126 = arith.constant 34 : i32
    %323 = vector.broadcast %c34_i32_126 : i32 to vector<1x1024xi32>
    %324 = arith.cmpi slt, %2, %323 : vector<1x1024xi32>
    %325 = arith.andi %322, %324 : vector<1x1024xi1>
    %c-2_i32 = arith.constant -2 : i32
    %326 = vector.broadcast %c-2_i32 : i32 to vector<1x1024xi32>
    %327 = arith.cmpi sge, %4, %326 : vector<1x1024xi32>
    %328 = arith.andi %325, %327 : vector<1x1024xi1>
    %c30_i32 = arith.constant 30 : i32
    %329 = vector.broadcast %c30_i32 : i32 to vector<1x1024xi32>
    %330 = arith.cmpi slt, %4, %329 : vector<1x1024xi32>
    %331 = arith.andi %328, %330 : vector<1x1024xi1>
    %cst_127 = arith.constant 1.000000e+00 : f32
    %cst_128 = arith.constant 0.000000e+00 : f32
    %332 = vector.broadcast %cst_127 : f32 to vector<1x1024xf32>
    %333 = vector.broadcast %cst_128 : f32 to vector<1x1024xf32>
    %334 = arith.select %331, %332, %333 : vector<1x1024xi1>, vector<1x1024xf32>
    %335 = vector.broadcast %334 : vector<1x1024xf32> to vector<16x1024xf32>
    %336 = arith.mulf %320, %335 : vector<16x1024xf32>
    %c2_i32_129 = arith.constant 2 : i32
    %337 = tpu.dynamic_rotate %285 by %c2_i32_129 dim 1 : vector<16x1024xf32>, i32 -> vector<16x1024xf32>
    %c0_i32_130 = arith.constant 0 : i32
    %338 = vector.broadcast %c0_i32_130 : i32 to vector<1x1024xi32>
    %339 = arith.cmpi sge, %2, %338 : vector<1x1024xi32>
    %c32_i32_131 = arith.constant 32 : i32
    %340 = vector.broadcast %c32_i32_131 : i32 to vector<1x1024xi32>
    %341 = arith.cmpi slt, %2, %340 : vector<1x1024xi32>
    %342 = arith.andi %339, %341 : vector<1x1024xi1>
    %c2_i32_132 = arith.constant 2 : i32
    %343 = vector.broadcast %c2_i32_132 : i32 to vector<1x1024xi32>
    %344 = arith.cmpi sge, %4, %343 : vector<1x1024xi32>
    %345 = arith.andi %342, %344 : vector<1x1024xi1>
    %c34_i32_133 = arith.constant 34 : i32
    %346 = vector.broadcast %c34_i32_133 : i32 to vector<1x1024xi32>
    %347 = arith.cmpi slt, %4, %346 : vector<1x1024xi32>
    %348 = arith.andi %345, %347 : vector<1x1024xi1>
    %cst_134 = arith.constant 1.000000e+00 : f32
    %cst_135 = arith.constant 0.000000e+00 : f32
    %349 = vector.broadcast %cst_134 : f32 to vector<1x1024xf32>
    %350 = vector.broadcast %cst_135 : f32 to vector<1x1024xf32>
    %351 = arith.select %348, %349, %350 : vector<1x1024xi1>, vector<1x1024xf32>
    %352 = vector.broadcast %351 : vector<1x1024xf32> to vector<16x1024xf32>
    %353 = arith.mulf %337, %352 : vector<16x1024xf32>
    %c1022_i32 = arith.constant 1022 : i32
    %354 = tpu.dynamic_rotate %285 by %c1022_i32 dim 1 : vector<16x1024xf32>, i32 -> vector<16x1024xf32>
    %c0_i32_136 = arith.constant 0 : i32
    %355 = vector.broadcast %c0_i32_136 : i32 to vector<1x1024xi32>
    %356 = arith.cmpi sge, %2, %355 : vector<1x1024xi32>
    %c32_i32_137 = arith.constant 32 : i32
    %357 = vector.broadcast %c32_i32_137 : i32 to vector<1x1024xi32>
    %358 = arith.cmpi slt, %2, %357 : vector<1x1024xi32>
    %359 = arith.andi %356, %358 : vector<1x1024xi1>
    %c-2_i32_138 = arith.constant -2 : i32
    %360 = vector.broadcast %c-2_i32_138 : i32 to vector<1x1024xi32>
    %361 = arith.cmpi sge, %4, %360 : vector<1x1024xi32>
    %362 = arith.andi %359, %361 : vector<1x1024xi1>
    %c30_i32_139 = arith.constant 30 : i32
    %363 = vector.broadcast %c30_i32_139 : i32 to vector<1x1024xi32>
    %364 = arith.cmpi slt, %4, %363 : vector<1x1024xi32>
    %365 = arith.andi %362, %364 : vector<1x1024xi1>
    %cst_140 = arith.constant 1.000000e+00 : f32
    %cst_141 = arith.constant 0.000000e+00 : f32
    %366 = vector.broadcast %cst_140 : f32 to vector<1x1024xf32>
    %367 = vector.broadcast %cst_141 : f32 to vector<1x1024xf32>
    %368 = arith.select %365, %366, %367 : vector<1x1024xi1>, vector<1x1024xf32>
    %369 = vector.broadcast %368 : vector<1x1024xf32> to vector<16x1024xf32>
    %370 = arith.mulf %354, %369 : vector<16x1024xf32>
    %c962_i32 = arith.constant 962 : i32
    %371 = tpu.dynamic_rotate %285 by %c962_i32 dim 1 : vector<16x1024xf32>, i32 -> vector<16x1024xf32>
    %c-2_i32_142 = arith.constant -2 : i32
    %372 = vector.broadcast %c-2_i32_142 : i32 to vector<1x1024xi32>
    %373 = arith.cmpi sge, %2, %372 : vector<1x1024xi32>
    %c30_i32_143 = arith.constant 30 : i32
    %374 = vector.broadcast %c30_i32_143 : i32 to vector<1x1024xi32>
    %375 = arith.cmpi slt, %2, %374 : vector<1x1024xi32>
    %376 = arith.andi %373, %375 : vector<1x1024xi1>
    %c2_i32_144 = arith.constant 2 : i32
    %377 = vector.broadcast %c2_i32_144 : i32 to vector<1x1024xi32>
    %378 = arith.cmpi sge, %4, %377 : vector<1x1024xi32>
    %379 = arith.andi %376, %378 : vector<1x1024xi1>
    %c34_i32_145 = arith.constant 34 : i32
    %380 = vector.broadcast %c34_i32_145 : i32 to vector<1x1024xi32>
    %381 = arith.cmpi slt, %4, %380 : vector<1x1024xi32>
    %382 = arith.andi %379, %381 : vector<1x1024xi1>
    %cst_146 = arith.constant 1.000000e+00 : f32
    %cst_147 = arith.constant 0.000000e+00 : f32
    %383 = vector.broadcast %cst_146 : f32 to vector<1x1024xf32>
    %384 = vector.broadcast %cst_147 : f32 to vector<1x1024xf32>
    %385 = arith.select %382, %383, %384 : vector<1x1024xi1>, vector<1x1024xf32>
    %386 = vector.broadcast %385 : vector<1x1024xf32> to vector<16x1024xf32>
    %387 = arith.mulf %371, %386 : vector<16x1024xf32>
    %c960_i32 = arith.constant 960 : i32
    %388 = tpu.dynamic_rotate %285 by %c960_i32 dim 1 : vector<16x1024xf32>, i32 -> vector<16x1024xf32>
    %c-2_i32_148 = arith.constant -2 : i32
    %389 = vector.broadcast %c-2_i32_148 : i32 to vector<1x1024xi32>
    %390 = arith.cmpi sge, %2, %389 : vector<1x1024xi32>
    %c30_i32_149 = arith.constant 30 : i32
    %391 = vector.broadcast %c30_i32_149 : i32 to vector<1x1024xi32>
    %392 = arith.cmpi slt, %2, %391 : vector<1x1024xi32>
    %393 = arith.andi %390, %392 : vector<1x1024xi1>
    %c0_i32_150 = arith.constant 0 : i32
    %394 = vector.broadcast %c0_i32_150 : i32 to vector<1x1024xi32>
    %395 = arith.cmpi sge, %4, %394 : vector<1x1024xi32>
    %396 = arith.andi %393, %395 : vector<1x1024xi1>
    %c32_i32_151 = arith.constant 32 : i32
    %397 = vector.broadcast %c32_i32_151 : i32 to vector<1x1024xi32>
    %398 = arith.cmpi slt, %4, %397 : vector<1x1024xi32>
    %399 = arith.andi %396, %398 : vector<1x1024xi1>
    %cst_152 = arith.constant 1.000000e+00 : f32
    %cst_153 = arith.constant 0.000000e+00 : f32
    %400 = vector.broadcast %cst_152 : f32 to vector<1x1024xf32>
    %401 = vector.broadcast %cst_153 : f32 to vector<1x1024xf32>
    %402 = arith.select %399, %400, %401 : vector<1x1024xi1>, vector<1x1024xf32>
    %403 = vector.broadcast %402 : vector<1x1024xf32> to vector<16x1024xf32>
    %404 = arith.mulf %388, %403 : vector<16x1024xf32>
    %c958_i32 = arith.constant 958 : i32
    %405 = tpu.dynamic_rotate %285 by %c958_i32 dim 1 : vector<16x1024xf32>, i32 -> vector<16x1024xf32>
    %c-2_i32_154 = arith.constant -2 : i32
    %406 = vector.broadcast %c-2_i32_154 : i32 to vector<1x1024xi32>
    %407 = arith.cmpi sge, %2, %406 : vector<1x1024xi32>
    %c30_i32_155 = arith.constant 30 : i32
    %408 = vector.broadcast %c30_i32_155 : i32 to vector<1x1024xi32>
    %409 = arith.cmpi slt, %2, %408 : vector<1x1024xi32>
    %410 = arith.andi %407, %409 : vector<1x1024xi1>
    %c-2_i32_156 = arith.constant -2 : i32
    %411 = vector.broadcast %c-2_i32_156 : i32 to vector<1x1024xi32>
    %412 = arith.cmpi sge, %4, %411 : vector<1x1024xi32>
    %413 = arith.andi %410, %412 : vector<1x1024xi1>
    %c30_i32_157 = arith.constant 30 : i32
    %414 = vector.broadcast %c30_i32_157 : i32 to vector<1x1024xi32>
    %415 = arith.cmpi slt, %4, %414 : vector<1x1024xi32>
    %416 = arith.andi %413, %415 : vector<1x1024xi1>
    %cst_158 = arith.constant 1.000000e+00 : f32
    %cst_159 = arith.constant 0.000000e+00 : f32
    %417 = vector.broadcast %cst_158 : f32 to vector<1x1024xf32>
    %418 = vector.broadcast %cst_159 : f32 to vector<1x1024xf32>
    %419 = arith.select %416, %417, %418 : vector<1x1024xi1>, vector<1x1024xf32>
    %420 = vector.broadcast %419 : vector<1x1024xf32> to vector<16x1024xf32>
    %421 = arith.mulf %405, %420 : vector<16x1024xf32>
    %422 = tpu.concatenate %302, %319, %336, %353, %285, %370, %387, %404, %421 in 0 : vector<16x1024xf32>, vector<16x1024xf32>, vector<16x1024xf32>, vector<16x1024xf32>, vector<16x1024xf32>, vector<16x1024xf32>, vector<16x1024xf32>, vector<16x1024xf32>, vector<16x1024xf32> -> vector<144x1024xf32>
    %c0_160 = arith.constant 0 : index
    %c0_161 = arith.constant 0 : index
    %423 = vector.load %arg5[%c0_160, %c0_161] : memref<16x144xf32, #tpu.memory_space<vmem>>, vector<16x144xf32>
    %cst_162 = arith.constant dense<0.000000e+00> : vector<16x1024xf32>
    %424 = tpu.matmul %423, %422, %cst_162 {dimension_numbers = #tpu.dot_dimension_numbers<[1], [0], [0], [1], [0, 0, 1, 1], [], []>} : vector<16x144xf32>, vector<144x1024xf32>, vector<16x1024xf32> -> vector<16x1024xf32>
    %c0_163 = arith.constant 0 : index
    %c0_164 = arith.constant 0 : index
    %425 = vector.load %arg6[%c0_163, %c0_164] : memref<16x1xf32, #tpu.memory_space<vmem>>, vector<16x1xf32>
    %426 = vector.broadcast %425 : vector<16x1xf32> to vector<16x1024xf32>
    %427 = arith.addf %424, %426 : vector<16x1024xf32>
    %cst_165 = arith.constant 0.000000e+00 : f32
    %428 = vector.broadcast %cst_165 : f32 to vector<16x1024xf32>
    %429 = arith.maximumf %427, %428 : vector<16x1024xf32>
    %c0_166 = arith.constant 0 : index
    %c0_167 = arith.constant 0 : index
    %430 = vector.load %arg7[%c0_166, %c0_167] : memref<16x1024xf32, #tpu.memory_space<vmem>>, vector<16x1024xf32>
    tpu.vector_store %arg7[%c0_166, %c0_167], %429 {strides = array<i32>} : memref<16x1024xf32, #tpu.memory_space<vmem>>, vector<16x1024xf32>,
    return
  }
}

</mosaic_0001>

<llo_original>
// kernel: forward.1
$region0: #{forward.1}
  #allocation0 [shape = 'u32[]', space=smem, size = 0x4, offset = 0x4, fixed_abs, tag = 'smem constant byte address 0x4 - core index']
  #allocation1 [shape = 'u32[144,128]{1,0:T(1,128)}', space=vmem, size = 0x12000, scoped, tag = 'internal scratch']
  %s0 = inlined_call_operand.vmem [shape: f32[1,1024], index: 0, kind: input, shape index: {}]
  %s1 = inlined_call_operand.hbm [shape: f32[8,9], index: 1, kind: input, shape index: {}]
  %s2 = inlined_call_operand.vmem [shape: f32[8,1], index: 2, kind: input, shape index: {}]
  %s3 = inlined_call_operand.hbm [shape: f32[16,72], index: 3, kind: input, shape index: {}]
  %s4 = inlined_call_operand.hbm [shape: f32[16,1], index: 4, kind: input, shape index: {}]
  %s5 = inlined_call_operand.vmem [shape: f32[16,144], index: 5, kind: input, shape index: {}]
  %s6 = inlined_call_operand.vmem [shape: f32[16,1], index: 6, kind: input, shape index: {}]
  %s7 = inlined_call_operand.vmem [shape: f32[16,1024], index: 7, kind: output, shape index: {}]
  %s8 = sld [smem:[#allocation0]]
  $region50: #{forward.1} parent=0
    _
  %s10 = ssub.s32 1, %s8
  %s11 = scalar_select 0, %s10, %s8
  $region1: #{forward.1} parent=0
    #allocation2 [shape = 'u8[4096]{0}', space=vmem, size = 0x1000, scoped, tag = 'input window, operand 1, single buffered']
    #allocation3 [shape = 's32[1]{0}', space=sflag, size = 0x4, scoped, tag = 'scoped memory for forward.1']
    #allocation4 [shape = 'u8[8192]{0}', space=vmem, size = 0x2000, scoped, tag = 'input window, operand 3, single buffered']
    #allocation5 [shape = 's32[1]{0}', space=sflag, size = 0x4, scoped, tag = 'scoped memory for forward.1']
    #allocation6 [shape = 'u8[8192]{0}', space=vmem, size = 0x2000, scoped, tag = 'input window, operand 4, single buffered']
    %12 = vsyncpa [#allocation3], 0
    %13 = vsyncpa [#allocation5], 0
    // Predicated region
    $region2: #{forward.1} parent=1 // pred_check
      _
    $region3: #{forward.1} parent=1 // pred_check_branch
      %15 = sbr.rel (0) target = $region5
    $region4: #{forward.1} parent=1 // pred_region
      _
    $region5: #{forward.1} parent=1 // pred_fallthru
      _
    // Predicated region
    $region6: #{forward.1} parent=1 // pred_check
      _
    $region7: #{forward.1} parent=1 // pred_check_branch
      %17 = sbr.rel (0) target = $region9
    $region8: #{forward.1} parent=1 // pred_region
      %s19 = ssub.s32 128, 128
      %20 = vsyncadd [#allocation3], %s19
      %s22 = sshll.u32 [#allocation2], 4
      %s23 = int_to_ptr.vmem [resolvable:$true] %s22
      %25 = dma.hbm_to_vmem [thread:$0]  %s1, 128, %s23, [#allocation3]
    $region9: #{forward.1} parent=1 // pred_fallthru
      _
    // Predicated region
    $region10: #{forward.1} parent=1 // pred_check
      _
    $region11: #{forward.1} parent=1 // pred_check_branch
      %27 = sbr.rel (0) target = $region13
    $region12: #{forward.1} parent=1 // pred_region
      _
    $region13: #{forward.1} parent=1 // pred_fallthru
      _
    // Predicated region
    $region14: #{forward.1} parent=1 // pred_check
      _
    $region15: #{forward.1} parent=1 // pred_check_branch
      %29 = sbr.rel (0) target = $region17
    $region16: #{forward.1} parent=1 // pred_region
      %s31 = ssub.s32 256, 256
      %32 = vsyncadd [#allocation5], %s31
      %s33 = sshll.u32 [#allocation4], 4
      %s34 = int_to_ptr.vmem [resolvable:$true] %s33
      %39 = dma.hbm_to_vmem [thread:$0]  %s3, 256, %s34, [#allocation5], 128, 128, 8
    $region17: #{forward.1} parent=1 // pred_fallthru
      _
    // Predicated region
    $region18: #{forward.1} parent=1 // pred_check
      _
    $region19: #{forward.1} parent=1 // pred_check_branch
      %41 = sbr.rel (0) target = $region21
    $region20: #{forward.1} parent=1 // pred_region
      %s43 = ssub.s32 256, 256
      %44 = vsyncadd [#allocation5], %s43
      %s45 = sshll.u32 [#allocation6], 4
      %s46 = int_to_ptr.vmem [resolvable:$true] %s45
      %51 = dma.hbm_to_vmem [thread:$0]  %s4, 256, %s46, [#allocation5], 128, 128, 8
    $region21: #{forward.1} parent=1 // pred_fallthru
      _
    // Predicated region
    $region22: #{forward.1} parent=1 // pred_check
      _
    $region23: #{forward.1} parent=1 // pred_check_branch
      %53 = sbr.rel (0) target = $region25
    $region24: #{forward.1} parent=1 // pred_region
      _
    $region25: #{forward.1} parent=1 // pred_fallthru
      _
    // Predicated region
    $region26: #{forward.1} parent=1 // pred_check
      _
    $region27: #{forward.1} parent=1 // pred_check_branch
      %55 = sbr.rel (0) target = $region29
    $region28: #{forward.1} parent=1 // pred_region
      _
    $region29: #{forward.1} parent=1 // pred_fallthru
      _
    // Predicated region
    $region30: #{forward.1} parent=1 // pred_check
      _
    $region31: #{forward.1} parent=1 // pred_check_branch
      %57 = sbr.rel (0) target = $region33
    $region32: #{forward.1} parent=1 // pred_region
      %58 = dma.done [#allocation3], 128
    $region33: #{forward.1} parent=1 // pred_fallthru
      _
    // Predicated region
    $region34: #{forward.1} parent=1 // pred_check
      _
    $region35: #{forward.1} parent=1 // pred_check_branch
      %60 = sbr.rel (0) target = $region37
    $region36: #{forward.1} parent=1 // pred_region
      %61 = dma.done [#allocation5], 256
    $region37: #{forward.1} parent=1 // pred_fallthru
      _
    // Predicated region
    $region38: #{forward.1} parent=1 // pred_check
      _
    $region39: #{forward.1} parent=1 // pred_check_branch
      %63 = sbr.rel (0) target = $region41
    $region40: #{forward.1} parent=1 // pred_region
      %64 = dma.done [#allocation5], 256
    $region41: #{forward.1} parent=1 // pred_fallthru
      _
    %v65 = vlaneseq
    %v66 = vand.u32 %v65, 127
    %v67 = vadd.s32 %v66, 128
    %v68 = vadd.s32 %v66, 256
    %v69 = vadd.s32 %v66, 384
    %v70 = vadd.s32 %v66, 512
    %v71 = vadd.s32 %v66, 640
    %v72 = vadd.s32 %v66, 768
    %v73 = vadd.s32 %v66, 896
    %v74 = vshra.s32 %v66, 5
    %v75 = vshra.s32 %v67, 5
    %v76 = vshra.s32 %v68, 5
    %v77 = vshra.s32 %v69, 5
    %v78 = vshra.s32 %v70, 5
    %v79 = vshra.s32 %v71, 5
    %v80 = vshra.s32 %v72, 5
    %v81 = vshra.s32 %v73, 5
    %v82 = vand.u32 %v66, 31
    %v83 = vand.u32 %v67, 31
    %v84 = vand.u32 %v68, 31
    %v85 = vand.u32 %v69, 31
    %v86 = vand.u32 %v70, 31
    %v87 = vand.u32 %v71, 31
    %v88 = vand.u32 %v72, 31
    %v89 = vand.u32 %v73, 31
    %v90 = vld [vmem:[%s0] sm:$0xff]
    %v92 = vlaneseq
    %v93 = vshrl.u32 %v92, 7
    %v94 = vsub.s32 0, %v93
    %v95 = vrot.slane %v90, %v94
    %v96 = vlaneseq
    %v97 = vshrl.u32 %v96, 7
    %v98 = vsub.s32 1, %v97
    %v99 = vrot.slane %v90, %v98
    %v100 = vlaneseq
    %v101 = vshrl.u32 %v100, 7
    %v102 = vsub.s32 2, %v101
    %v103 = vrot.slane %v90, %v102
    %v104 = vlaneseq
    %v105 = vshrl.u32 %v104, 7
    %v106 = vsub.s32 3, %v105
    %v107 = vrot.slane %v90, %v106
    %v108 = vlaneseq
    %v109 = vshrl.u32 %v108, 7
    %v110 = vsub.s32 4, %v109
    %v111 = vrot.slane %v90, %v110
    %v112 = vlaneseq
    %v113 = vshrl.u32 %v112, 7
    %v114 = vsub.s32 5, %v113
    %v115 = vrot.slane %v90, %v114
    %v116 = vlaneseq
    %v117 = vshrl.u32 %v116, 7
    %v118 = vsub.s32 6, %v117
    %v119 = vrot.slane %v90, %v118
    %v120 = vlaneseq
    %v121 = vshrl.u32 %v120, 7
    %v122 = vsub.s32 7, %v121
    %v123 = vrot.slane %v90, %v122
    %132 = vrot.lane.b32.xlu0 %v95, 33
    %v133 = vpop.permute.xlu0 %132
    %134 = vrot.lane.b32.xlu0 %v99, 33
    %v135 = vpop.permute.xlu0 %134
    %136 = vrot.lane.b32.xlu0 %v103, 33
    %v137 = vpop.permute.xlu0 %136
    %138 = vrot.lane.b32.xlu0 %v107, 33
    %v139 = vpop.permute.xlu0 %138
    %140 = vrot.lane.b32.xlu0 %v111, 33
    %v141 = vpop.permute.xlu0 %140
    %142 = vrot.lane.b32.xlu0 %v115, 33
    %v143 = vpop.permute.xlu0 %142
    %144 = vrot.lane.b32.xlu0 %v119, 33
    %v145 = vpop.permute.xlu0 %144
    %146 = vrot.lane.b32.xlu0 %v123, 33
    %v147 = vpop.permute.xlu0 %146
    %vm148 = vcmp.lt.s32.totalorder %v66, 33
    %v149 = vsel %vm148, %v145, %v147
    %v150 = vsel %vm148, %v143, %v145
    %v151 = vsel %vm148, %v141, %v143
    %v152 = vsel %vm148, %v139, %v141
    %v153 = vsel %vm148, %v137, %v139
    %v154 = vsel %vm148, %v135, %v137
    %v155 = vsel %vm148, %v133, %v135
    %v156 = vsel %vm148, %v147, %v133
    %vm157 = vcmp.ge.s32.totalorder %v74, 1
    %vm158 = vcmp.ge.s32.totalorder %v75, 1
    %vm159 = vcmp.ge.s32.totalorder %v76, 1
    %vm160 = vcmp.ge.s32.totalorder %v77, 1
    %vm161 = vcmp.ge.s32.totalorder %v78, 1
    %vm162 = vcmp.ge.s32.totalorder %v79, 1
    %vm163 = vcmp.ge.s32.totalorder %v80, 1
    %vm164 = vcmp.ge.s32.totalorder %v81, 1
    %vm165 = vcmp.lt.s32.totalorder %v74, 33
    %vm166 = vcmp.lt.s32.totalorder %v75, 33
    %vm167 = vcmp.lt.s32.totalorder %v76, 33
    %vm168 = vcmp.lt.s32.totalorder %v77, 33
    %vm169 = vcmp.lt.s32.totalorder %v78, 33
    %vm170 = vcmp.lt.s32.totalorder %v79, 33
    %vm171 = vcmp.lt.s32.totalorder %v80, 33
    %vm172 = vcmp.lt.s32.totalorder %v81, 33
    %vm173 = vmand %vm157, %vm165
    %vm174 = vmand %vm158, %vm166
    %vm175 = vmand %vm159, %vm167
    %vm176 = vmand %vm160, %vm168
    %vm177 = vmand %vm161, %vm169
    %vm178 = vmand %vm162, %vm170
    %vm179 = vmand %vm163, %vm171
    %vm180 = vmand %vm164, %vm172
    %vm181 = vcmp.ge.s32.totalorder %v82, 1
    %vm182 = vcmp.ge.s32.totalorder %v83, 1
    %vm183 = vcmp.ge.s32.totalorder %v84, 1
    %vm184 = vcmp.ge.s32.totalorder %v85, 1
    %vm185 = vcmp.ge.s32.totalorder %v86, 1
    %vm186 = vcmp.ge.s32.totalorder %v87, 1
    %vm187 = vcmp.ge.s32.totalorder %v88, 1
    %vm188 = vcmp.ge.s32.totalorder %v89, 1
    %vm189 = vmand %vm173, %vm181
    %vm190 = vmand %vm174, %vm182
    %vm191 = vmand %vm175, %vm183
    %vm192 = vmand %vm176, %vm184
    %vm193 = vmand %vm177, %vm185
    %vm194 = vmand %vm178, %vm186
    %vm195 = vmand %vm179, %vm187
    %vm196 = vmand %vm180, %vm188
    %vm197 = vcmp.lt.s32.totalorder %v82, 33
    %vm198 = vcmp.lt.s32.totalorder %v83, 33
    %vm199 = vcmp.lt.s32.totalorder %v84, 33
    %vm200 = vcmp.lt.s32.totalorder %v85, 33
    %vm201 = vcmp.lt.s32.totalorder %v86, 33
    %vm202 = vcmp.lt.s32.totalorder %v87, 33
    %vm203 = vcmp.lt.s32.totalorder %v88, 33
    %vm204 = vcmp.lt.s32.totalorder %v89, 33
    %vm205 = vmand %vm189, %vm197
    %vm206 = vmand %vm190, %vm198
    %vm207 = vmand %vm191, %vm199
    %vm208 = vmand %vm192, %vm200
    %vm209 = vmand %vm193, %vm201
    %vm210 = vmand %vm194, %vm202
    %vm211 = vmand %vm195, %vm203
    %vm212 = vmand %vm196, %vm204
    %v213 = vsel %vm205, 1.0, 0.0
    %v214 = vsel %vm206, 1.0, 0.0
    %v215 = vsel %vm207, 1.0, 0.0
    %v216 = vsel %vm208, 1.0, 0.0
    %v217 = vsel %vm209, 1.0, 0.0
    %v218 = vsel %vm210, 1.0, 0.0
    %v219 = vsel %vm211, 1.0, 0.0
    %v220 = vsel %vm212, 1.0, 0.0
    %v221 = vmul.f32 %v156, %v213
    %v222 = vmul.f32 %v155, %v214
    %v223 = vmul.f32 %v154, %v215
    %v224 = vmul.f32 %v153, %v216
    %v225 = vmul.f32 %v152, %v217
    %v226 = vmul.f32 %v151, %v218
    %v227 = vmul.f32 %v150, %v219
    %v228 = vmul.f32 %v149, %v220
    %229 = vrot.lane.b32.xlu0 %v95, 32
    %v230 = vpop.permute.xlu0 %229
    %231 = vrot.lane.b32.xlu0 %v99, 32
    %v232 = vpop.permute.xlu0 %231
    %233 = vrot.lane.b32.xlu0 %v103, 32
    %v234 = vpop.permute.xlu0 %233
    %235 = vrot.lane.b32.xlu0 %v107, 32
    %v236 = vpop.permute.xlu0 %235
    %237 = vrot.lane.b32.xlu0 %v111, 32
    %v238 = vpop.permute.xlu0 %237
    %239 = vrot.lane.b32.xlu0 %v115, 32
    %v240 = vpop.permute.xlu0 %239
    %241 = vrot.lane.b32.xlu0 %v119, 32
    %v242 = vpop.permute.xlu0 %241
    %243 = vrot.lane.b32.xlu0 %v123, 32
    %v244 = vpop.permute.xlu0 %243
    %vm245 = vcmp.lt.s32.totalorder %v66, 32
    %v246 = vsel %vm245, %v242, %v244
    %v247 = vsel %vm245, %v240, %v242
    %v248 = vsel %vm245, %v238, %v240
    %v249 = vsel %vm245, %v236, %v238
    %v250 = vsel %vm245, %v234, %v236
    %v251 = vsel %vm245, %v232, %v234
    %v252 = vsel %vm245, %v230, %v232
    %v253 = vsel %vm245, %v244, %v230
    %vm254 = vcmp.ge.s32.totalorder %v82, 0
    %vm255 = vcmp.ge.s32.totalorder %v83, 0
    %vm256 = vcmp.ge.s32.totalorder %v84, 0
    %vm257 = vcmp.ge.s32.totalorder %v85, 0
    %vm258 = vcmp.ge.s32.totalorder %v86, 0
    %vm259 = vcmp.ge.s32.totalorder %v87, 0
    %vm260 = vcmp.ge.s32.totalorder %v88, 0
    %vm261 = vcmp.ge.s32.totalorder %v89, 0
    %vm262 = vmand %vm173, %vm254
    %vm263 = vmand %vm174, %vm255
    %vm264 = vmand %vm175, %vm256
    %vm265 = vmand %vm176, %vm257
    %vm266 = vmand %vm177, %vm258
    %vm267 = vmand %vm178, %vm259
    %vm268 = vmand %vm179, %vm260
    %vm269 = vmand %vm180, %vm261
    %vm270 = vcmp.lt.s32.totalorder %v82, 32
    %vm271 = vcmp.lt.s32.totalorder %v83, 32
    %vm272 = vcmp.lt.s32.totalorder %v84, 32
    %vm273 = vcmp.lt.s32.totalorder %v85, 32
    %vm274 = vcmp.lt.s32.totalorder %v86, 32
    %vm275 = vcmp.lt.s32.totalorder %v87, 32
    %vm276 = vcmp.lt.s32.totalorder %v88, 32
    %vm277 = vcmp.lt.s32.totalorder %v89, 32
    %vm278 = vmand %vm262, %vm270
    %vm279 = vmand %vm263, %vm271
    %vm280 = vmand %vm264, %vm272
    %vm281 = vmand %vm265, %vm273
    %vm282 = vmand %vm266, %vm274
    %vm283 = vmand %vm267, %vm275
    %vm284 = vmand %vm268, %vm276
    %vm285 = vmand %vm269, %vm277
    %v286 = vsel %vm278, 1.0, 0.0
    %v287 = vsel %vm279, 1.0, 0.0
    %v288 = vsel %vm280, 1.0, 0.0
    %v289 = vsel %vm281, 1.0, 0.0
    %v290 = vsel %vm282, 1.0, 0.0
    %v291 = vsel %vm283, 1.0, 0.0
    %v292 = vsel %vm284, 1.0, 0.0
    %v293 = vsel %vm285, 1.0, 0.0
    %v294 = vmul.f32 %v253, %v286
    %v295 = vmul.f32 %v252, %v287
    %v296 = vmul.f32 %v251, %v288
    %v297 = vmul.f32 %v250, %v289
    %v298 = vmul.f32 %v249, %v290
    %v299 = vmul.f32 %v248, %v291
    %v300 = vmul.f32 %v247, %v292
    %v301 = vmul.f32 %v246, %v293
    %302 = vrot.lane.b32.xlu0 %v95, 31
    %v303 = vpop.permute.xlu0 %302
    %304 = vrot.lane.b32.xlu0 %v99, 31
    %v305 = vpop.permute.xlu0 %304
    %306 = vrot.lane.b32.xlu0 %v103, 31
    %v307 = vpop.permute.xlu0 %306
    %308 = vrot.lane.b32.xlu0 %v107, 31
    %v309 = vpop.permute.xlu0 %308
    %310 = vrot.lane.b32.xlu0 %v111, 31
    %v311 = vpop.permute.xlu0 %310
    %312 = vrot.lane.b32.xlu0 %v115, 31
    %v313 = vpop.permute.xlu0 %312
    %314 = vrot.lane.b32.xlu0 %v119, 31
    %v315 = vpop.permute.xlu0 %314
    %316 = vrot.lane.b32.xlu0 %v123, 31
    %v317 = vpop.permute.xlu0 %316
    %vm318 = vcmp.lt.s32.totalorder %v66, 31
    %v319 = vsel %vm318, %v315, %v317
    %v320 = vsel %vm318, %v313, %v315
    %v321 = vsel %vm318, %v311, %v313
    %v322 = vsel %vm318, %v309, %v311
    %v323 = vsel %vm318, %v307, %v309
    %v324 = vsel %vm318, %v305, %v307
    %v325 = vsel %vm318, %v303, %v305
    %v326 = vsel %vm318, %v317, %v303
    %vm327 = vcmp.ge.s32.totalorder %v82, 4294967295
    %vm328 = vcmp.ge.s32.totalorder %v83, 4294967295
    %vm329 = vcmp.ge.s32.totalorder %v84, 4294967295
    %vm330 = vcmp.ge.s32.totalorder %v85, 4294967295
    %vm331 = vcmp.ge.s32.totalorder %v86, 4294967295
    %vm332 = vcmp.ge.s32.totalorder %v87, 4294967295
    %vm333 = vcmp.ge.s32.totalorder %v88, 4294967295
    %vm334 = vcmp.ge.s32.totalorder %v89, 4294967295
    %vm335 = vmand %vm173, %vm327
    %vm336 = vmand %vm174, %vm328
    %vm337 = vmand %vm175, %vm329
    %vm338 = vmand %vm176, %vm330
    %vm339 = vmand %vm177, %vm331
    %vm340 = vmand %vm178, %vm332
    %vm341 = vmand %vm179, %vm333
    %vm342 = vmand %vm180, %vm334
    %vm343 = vcmp.lt.s32.totalorder %v82, 31
    %vm344 = vcmp.lt.s32.totalorder %v83, 31
    %vm345 = vcmp.lt.s32.totalorder %v84, 31
    %vm346 = vcmp.lt.s32.totalorder %v85, 31
    %vm347 = vcmp.lt.s32.totalorder %v86, 31
    %vm348 = vcmp.lt.s32.totalorder %v87, 31
    %vm349 = vcmp.lt.s32.totalorder %v88, 31
    %vm350 = vcmp.lt.s32.totalorder %v89, 31
    %vm351 = vmand %vm335, %vm343
    %vm352 = vmand %vm336, %vm344
    %vm353 = vmand %vm337, %vm345
    %vm354 = vmand %vm338, %vm346
    %vm355 = vmand %vm339, %vm347
    %vm356 = vmand %vm340, %vm348
    %vm357 = vmand %vm341, %vm349
    %vm358 = vmand %vm342, %vm350
    %v359 = vsel %vm351, 1.0, 0.0
    %v360 = vsel %vm352, 1.0, 0.0
    %v361 = vsel %vm353, 1.0, 0.0
    %v362 = vsel %vm354, 1.0, 0.0
    %v363 = vsel %vm355, 1.0, 0.0
    %v364 = vsel %vm356, 1.0, 0.0
    %v365 = vsel %vm357, 1.0, 0.0
    %v366 = vsel %vm358, 1.0, 0.0
    %v367 = vmul.f32 %v326, %v359
    %v368 = vmul.f32 %v325, %v360
    %v369 = vmul.f32 %v324, %v361
    %v370 = vmul.f32 %v323, %v362
    %v371 = vmul.f32 %v322, %v363
    %v372 = vmul.f32 %v321, %v364
    %v373 = vmul.f32 %v320, %v365
    %v374 = vmul.f32 %v319, %v366
    %375 = vrot.lane.b32.xlu0 %v95, 1
    %v376 = vpop.permute.xlu0 %375
    %377 = vrot.lane.b32.xlu0 %v99, 1
    %v378 = vpop.permute.xlu0 %377
    %379 = vrot.lane.b32.xlu0 %v103, 1
    %v380 = vpop.permute.xlu0 %379
    %381 = vrot.lane.b32.xlu0 %v107, 1
    %v382 = vpop.permute.xlu0 %381
    %383 = vrot.lane.b32.xlu0 %v111, 1
    %v384 = vpop.permute.xlu0 %383
    %385 = vrot.lane.b32.xlu0 %v115, 1
    %v386 = vpop.permute.xlu0 %385
    %387 = vrot.lane.b32.xlu0 %v119, 1
    %v388 = vpop.permute.xlu0 %387
    %389 = vrot.lane.b32.xlu0 %v123, 1
    %v390 = vpop.permute.xlu0 %389
    %vm391 = vcmp.lt.s32.totalorder %v66, 1
    %v392 = vsel %vm391, %v388, %v390
    %v393 = vsel %vm391, %v386, %v388
    %v394 = vsel %vm391, %v384, %v386
    %v395 = vsel %vm391, %v382, %v384
    %v396 = vsel %vm391, %v380, %v382
    %v397 = vsel %vm391, %v378, %v380
    %v398 = vsel %vm391, %v376, %v378
    %v399 = vsel %vm391, %v390, %v376
    %vm400 = vcmp.ge.s32.totalorder %v74, 0
    %vm401 = vcmp.ge.s32.totalorder %v75, 0
    %vm402 = vcmp.ge.s32.totalorder %v76, 0
    %vm403 = vcmp.ge.s32.totalorder %v77, 0
    %vm404 = vcmp.ge.s32.totalorder %v78, 0
    %vm405 = vcmp.ge.s32.totalorder %v79, 0
    %vm406 = vcmp.ge.s32.totalorder %v80, 0
    %vm407 = vcmp.ge.s32.totalorder %v81, 0
    %vm408 = vcmp.lt.s32.totalorder %v74, 32
    %vm409 = vcmp.lt.s32.totalorder %v75, 32
    %vm410 = vcmp.lt.s32.totalorder %v76, 32
    %vm411 = vcmp.lt.s32.totalorder %v77, 32
    %vm412 = vcmp.lt.s32.totalorder %v78, 32
    %vm413 = vcmp.lt.s32.totalorder %v79, 32
    %vm414 = vcmp.lt.s32.totalorder %v80, 32
    %vm415 = vcmp.lt.s32.totalorder %v81, 32
    %vm416 = vmand %vm400, %vm408
    %vm417 = vmand %vm401, %vm409
    %vm418 = vmand %vm402, %vm410
    %vm419 = vmand %vm403, %vm411
    %vm420 = vmand %vm404, %vm412
    %vm421 = vmand %vm405, %vm413
    %vm422 = vmand %vm406, %vm414
    %vm423 = vmand %vm407, %vm415
    %vm424 = vmand %vm416, %vm181
    %vm425 = vmand %vm417, %vm182
    %vm426 = vmand %vm418, %vm183
    %vm427 = vmand %vm419, %vm184
    %vm428 = vmand %vm420, %vm185
    %vm429 = vmand %vm421, %vm186
    %vm430 = vmand %vm422, %vm187
    %vm431 = vmand %vm423, %vm188
    %vm432 = vmand %vm424, %vm197
    %vm433 = vmand %vm425, %vm198
    %vm434 = vmand %vm426, %vm199
    %vm435 = vmand %vm427, %vm200
    %vm436 = vmand %vm428, %vm201
    %vm437 = vmand %vm429, %vm202
    %vm438 = vmand %vm430, %vm203
    %vm439 = vmand %vm431, %vm204
    %v440 = vsel %vm432, 1.0, 0.0
    %v441 = vsel %vm433, 1.0, 0.0
    %v442 = vsel %vm434, 1.0, 0.0
    %v443 = vsel %vm435, 1.0, 0.0
    %v444 = vsel %vm436, 1.0, 0.0
    %v445 = vsel %vm437, 1.0, 0.0
    %v446 = vsel %vm438, 1.0, 0.0
    %v447 = vsel %vm439, 1.0, 0.0
    %v448 = vmul.f32 %v399, %v440
    %v449 = vmul.f32 %v398, %v441
    %v450 = vmul.f32 %v397, %v442
    %v451 = vmul.f32 %v396, %v443
    %v452 = vmul.f32 %v395, %v444
    %v453 = vmul.f32 %v394, %v445
    %v454 = vmul.f32 %v393, %v446
    %v455 = vmul.f32 %v392, %v447
    %456 = vrot.lane.b32.xlu0 %v95, 127
    %v457 = vpop.permute.xlu0 %456
    %458 = vrot.lane.b32.xlu0 %v99, 127
    %v459 = vpop.permute.xlu0 %458
    %460 = vrot.lane.b32.xlu0 %v103, 127
    %v461 = vpop.permute.xlu0 %460
    %462 = vrot.lane.b32.xlu0 %v107, 127
    %v463 = vpop.permute.xlu0 %462
    %464 = vrot.lane.b32.xlu0 %v111, 127
    %v465 = vpop.permute.xlu0 %464
    %466 = vrot.lane.b32.xlu0 %v115, 127
    %v467 = vpop.permute.xlu0 %466
    %468 = vrot.lane.b32.xlu0 %v119, 127
    %v469 = vpop.permute.xlu0 %468
    %470 = vrot.lane.b32.xlu0 %v123, 127
    %v471 = vpop.permute.xlu0 %470
    %vm472 = vcmp.lt.s32.totalorder %v66, 127
    %v473 = vsel %vm472, %v469, %v471
    %v474 = vsel %vm472, %v467, %v469
    %v475 = vsel %vm472, %v465, %v467
    %v476 = vsel %vm472, %v463, %v465
    %v477 = vsel %vm472, %v461, %v463
    %v478 = vsel %vm472, %v459, %v461
    %v479 = vsel %vm472, %v457, %v459
    %v480 = vsel %vm472, %v471, %v457
    %vm481 = vmand %vm416, %vm327
    %vm482 = vmand %vm417, %vm328
    %vm483 = vmand %vm418, %vm329
    %vm484 = vmand %vm419, %vm330
    %vm485 = vmand %vm420, %vm331
    %vm486 = vmand %vm421, %vm332
    %vm487 = vmand %vm422, %vm333
    %vm488 = vmand %vm423, %vm334
    %vm489 = vmand %vm481, %vm343
    %vm490 = vmand %vm482, %vm344
    %vm491 = vmand %vm483, %vm345
    %vm492 = vmand %vm484, %vm346
    %vm493 = vmand %vm485, %vm347
    %vm494 = vmand %vm486, %vm348
    %vm495 = vmand %vm487, %vm349
    %vm496 = vmand %vm488, %vm350
    %v497 = vsel %vm489, 1.0, 0.0
    %v498 = vsel %vm490, 1.0, 0.0
    %v499 = vsel %vm491, 1.0, 0.0
    %v500 = vsel %vm492, 1.0, 0.0
    %v501 = vsel %vm493, 1.0, 0.0
    %v502 = vsel %vm494, 1.0, 0.0
    %v503 = vsel %vm495, 1.0, 0.0
    %v504 = vsel %vm496, 1.0, 0.0
    %v505 = vmul.f32 %v479, %v497
    %v506 = vmul.f32 %v478, %v498
    %v507 = vmul.f32 %v477, %v499
    %v508 = vmul.f32 %v476, %v500
    %v509 = vmul.f32 %v475, %v501
    %v510 = vmul.f32 %v474, %v502
    %v511 = vmul.f32 %v473, %v503
    %v512 = vmul.f32 %v480, %v504
    %513 = vrot.lane.b32.xlu0 %v95, 97
    %v514 = vpop.permute.xlu0 %513
    %515 = vrot.lane.b32.xlu0 %v99, 97
    %v516 = vpop.permute.xlu0 %515
    %517 = vrot.lane.b32.xlu0 %v103, 97
    %v518 = vpop.permute.xlu0 %517
    %519 = vrot.lane.b32.xlu0 %v107, 97
    %v520 = vpop.permute.xlu0 %519
    %521 = vrot.lane.b32.xlu0 %v111, 97
    %v522 = vpop.permute.xlu0 %521
    %523 = vrot.lane.b32.xlu0 %v115, 97
    %v524 = vpop.permute.xlu0 %523
    %525 = vrot.lane.b32.xlu0 %v119, 97
    %v526 = vpop.permute.xlu0 %525
    %527 = vrot.lane.b32.xlu0 %v123, 97
    %v528 = vpop.permute.xlu0 %527
    %vm529 = vcmp.lt.s32.totalorder %v66, 97
    %v530 = vsel %vm529, %v526, %v528
    %v531 = vsel %vm529, %v524, %v526
    %v532 = vsel %vm529, %v522, %v524
    %v533 = vsel %vm529, %v520, %v522
    %v534 = vsel %vm529, %v518, %v520
    %v535 = vsel %vm529, %v516, %v518
    %v536 = vsel %vm529, %v514, %v516
    %v537 = vsel %vm529, %v528, %v514
    %vm538 = vcmp.ge.s32.totalorder %v74, 4294967295
    %vm539 = vcmp.ge.s32.totalorder %v75, 4294967295
    %vm540 = vcmp.ge.s32.totalorder %v76, 4294967295
    %vm541 = vcmp.ge.s32.totalorder %v77, 4294967295
    %vm542 = vcmp.ge.s32.totalorder %v78, 4294967295
    %vm543 = vcmp.ge.s32.totalorder %v79, 4294967295
    %vm544 = vcmp.ge.s32.totalorder %v80, 4294967295
    %vm545 = vcmp.ge.s32.totalorder %v81, 4294967295
    %vm546 = vcmp.lt.s32.totalorder %v74, 31
    %vm547 = vcmp.lt.s32.totalorder %v75, 31
    %vm548 = vcmp.lt.s32.totalorder %v76, 31
    %vm549 = vcmp.lt.s32.totalorder %v77, 31
    %vm550 = vcmp.lt.s32.totalorder %v78, 31
    %vm551 = vcmp.lt.s32.totalorder %v79, 31
    %vm552 = vcmp.lt.s32.totalorder %v80, 31
    %vm553 = vcmp.lt.s32.totalorder %v81, 31
    %vm554 = vmand %vm538, %vm546
    %vm555 = vmand %vm539, %vm547
    %vm556 = vmand %vm540, %vm548
    %vm557 = vmand %vm541, %vm549
    %vm558 = vmand %vm542, %vm550
    %vm559 = vmand %vm543, %vm551
    %vm560 = vmand %vm544, %vm552
    %vm561 = vmand %vm545, %vm553
    %vm562 = vmand %vm554, %vm181
    %vm563 = vmand %vm555, %vm182
    %vm564 = vmand %vm556, %vm183
    %vm565 = vmand %vm557, %vm184
    %vm566 = vmand %vm558, %vm185
    %vm567 = vmand %vm559, %vm186
    %vm568 = vmand %vm560, %vm187
    %vm569 = vmand %vm561, %vm188
    %vm570 = vmand %vm562, %vm197
    %vm571 = vmand %vm563, %vm198
    %vm572 = vmand %vm564, %vm199
    %vm573 = vmand %vm565, %vm200
    %vm574 = vmand %vm566, %vm201
    %vm575 = vmand %vm567, %vm202
    %vm576 = vmand %vm568, %vm203
    %vm577 = vmand %vm569, %vm204
    %v578 = vsel %vm570, 1.0, 0.0
    %v579 = vsel %vm571, 1.0, 0.0
    %v580 = vsel %vm572, 1.0, 0.0
    %v581 = vsel %vm573, 1.0, 0.0
    %v582 = vsel %vm574, 1.0, 0.0
    %v583 = vsel %vm575, 1.0, 0.0
    %v584 = vsel %vm576, 1.0, 0.0
    %v585 = vsel %vm577, 1.0, 0.0
    %v586 = vmul.f32 %v536, %v578
    %v587 = vmul.f32 %v535, %v579
    %v588 = vmul.f32 %v534, %v580
    %v589 = vmul.f32 %v533, %v581
    %v590 = vmul.f32 %v532, %v582
    %v591 = vmul.f32 %v531, %v583
    %v592 = vmul.f32 %v530, %v584
    %v593 = vmul.f32 %v537, %v585
    %594 = vrot.lane.b32.xlu0 %v95, 96
    %v595 = vpop.permute.xlu0 %594
    %596 = vrot.lane.b32.xlu0 %v99, 96
    %v597 = vpop.permute.xlu0 %596
    %598 = vrot.lane.b32.xlu0 %v103, 96
    %v599 = vpop.permute.xlu0 %598
    %600 = vrot.lane.b32.xlu0 %v107, 96
    %v601 = vpop.permute.xlu0 %600
    %602 = vrot.lane.b32.xlu0 %v111, 96
    %v603 = vpop.permute.xlu0 %602
    %604 = vrot.lane.b32.xlu0 %v115, 96
    %v605 = vpop.permute.xlu0 %604
    %606 = vrot.lane.b32.xlu0 %v119, 96
    %v607 = vpop.permute.xlu0 %606
    %608 = vrot.lane.b32.xlu0 %v123, 96
    %v609 = vpop.permute.xlu0 %608
    %vm610 = vcmp.lt.s32.totalorder %v66, 96
    %v611 = vsel %vm610, %v607, %v609
    %v612 = vsel %vm610, %v605, %v607
    %v613 = vsel %vm610, %v603, %v605
    %v614 = vsel %vm610, %v601, %v603
    %v615 = vsel %vm610, %v599, %v601
    %v616 = vsel %vm610, %v597, %v599
    %v617 = vsel %vm610, %v595, %v597
    %v618 = vsel %vm610, %v609, %v595
    %vm619 = vmand %vm554, %vm254
    %vm620 = vmand %vm555, %vm255
    %vm621 = vmand %vm556, %vm256
    %vm622 = vmand %vm557, %vm257
    %vm623 = vmand %vm558, %vm258
    %vm624 = vmand %vm559, %vm259
    %vm625 = vmand %vm560, %vm260
    %vm626 = vmand %vm561, %vm261
    %vm627 = vmand %vm619, %vm270
    %vm628 = vmand %vm620, %vm271
    %vm629 = vmand %vm621, %vm272
    %vm630 = vmand %vm622, %vm273
    %vm631 = vmand %vm623, %vm274
    %vm632 = vmand %vm624, %vm275
    %vm633 = vmand %vm625, %vm276
    %vm634 = vmand %vm626, %vm277
    %v635 = vsel %vm627, 1.0, 0.0
    %v636 = vsel %vm628, 1.0, 0.0
    %v637 = vsel %vm629, 1.0, 0.0
    %v638 = vsel %vm630, 1.0, 0.0
    %v639 = vsel %vm631, 1.0, 0.0
    %v640 = vsel %vm632, 1.0, 0.0
    %v641 = vsel %vm633, 1.0, 0.0
    %v642 = vsel %vm634, 1.0, 0.0
    %v643 = vmul.f32 %v617, %v635
    %v644 = vmul.f32 %v616, %v636
    %v645 = vmul.f32 %v615, %v637
    %v646 = vmul.f32 %v614, %v638
    %v647 = vmul.f32 %v613, %v639
    %v648 = vmul.f32 %v612, %v640
    %v649 = vmul.f32 %v611, %v641
    %v650 = vmul.f32 %v618, %v642
    %651 = vrot.lane.b32.xlu0 %v95, 95
    %v652 = vpop.permute.xlu0 %651
    %653 = vrot.lane.b32.xlu0 %v99, 95
    %v654 = vpop.permute.xlu0 %653
    %655 = vrot.lane.b32.xlu0 %v103, 95
    %v656 = vpop.permute.xlu0 %655
    %657 = vrot.lane.b32.xlu0 %v107, 95
    %v658 = vpop.permute.xlu0 %657
    %659 = vrot.lane.b32.xlu0 %v111, 95
    %v660 = vpop.permute.xlu0 %659
    %661 = vrot.lane.b32.xlu0 %v115, 95
    %v662 = vpop.permute.xlu0 %661
    %663 = vrot.lane.b32.xlu0 %v119, 95
    %v664 = vpop.permute.xlu0 %663
    %665 = vrot.lane.b32.xlu0 %v123, 95
    %v666 = vpop.permute.xlu0 %665
    %vm667 = vcmp.lt.s32.totalorder %v66, 95
    %v668 = vsel %vm667, %v664, %v666
    %v669 = vsel %vm667, %v662, %v664
    %v670 = vsel %vm667, %v660, %v662
    %v671 = vsel %vm667, %v658, %v660
    %v672 = vsel %vm667, %v656, %v658
    %v673 = vsel %vm667, %v654, %v656
    %v674 = vsel %vm667, %v652, %v654
    %v675 = vsel %vm667, %v666, %v652
    %vm676 = vmand %vm554, %vm327
    %vm677 = vmand %vm555, %vm328
    %vm678 = vmand %vm556, %vm329
    %vm679 = vmand %vm557, %vm330
    %vm680 = vmand %vm558, %vm331
    %vm681 = vmand %vm559, %vm332
    %vm682 = vmand %vm560, %vm333
    %vm683 = vmand %vm561, %vm334
    %vm684 = vmand %vm676, %vm343
    %vm685 = vmand %vm677, %vm344
    %vm686 = vmand %vm678, %vm345
    %vm687 = vmand %vm679, %vm346
    %vm688 = vmand %vm680, %vm347
    %vm689 = vmand %vm681, %vm348
    %vm690 = vmand %vm682, %vm349
    %vm691 = vmand %vm683, %vm350
    %v692 = vsel %vm684, 1.0, 0.0
    %v693 = vsel %vm685, 1.0, 0.0
    %v694 = vsel %vm686, 1.0, 0.0
    %v695 = vsel %vm687, 1.0, 0.0
    %v696 = vsel %vm688, 1.0, 0.0
    %v697 = vsel %vm689, 1.0, 0.0
    %v698 = vsel %vm690, 1.0, 0.0
    %v699 = vsel %vm691, 1.0, 0.0
    %v700 = vmul.f32 %v674, %v692
    %v701 = vmul.f32 %v673, %v693
    %v702 = vmul.f32 %v672, %v694
    %v703 = vmul.f32 %v671, %v695
    %v704 = vmul.f32 %v670, %v696
    %v705 = vmul.f32 %v669, %v697
    %v706 = vmul.f32 %v668, %v698
    %v707 = vmul.f32 %v675, %v699
    %v716 = vrot.slane %v294, 7
    %v717 = vrot.slane %v295, 7
    %v718 = vrot.slane %v296, 7
    %v719 = vrot.slane %v297, 7
    %v720 = vrot.slane %v298, 7
    %v721 = vrot.slane %v299, 7
    %v722 = vrot.slane %v300, 7
    %v723 = vrot.slane %v301, 7
    %v740 = vrot.slane %v367, 6
    %v741 = vrot.slane %v368, 6
    %v742 = vrot.slane %v369, 6
    %v743 = vrot.slane %v370, 6
    %v744 = vrot.slane %v371, 6
    %v745 = vrot.slane %v372, 6
    %v746 = vrot.slane %v373, 6
    %v747 = vrot.slane %v374, 6
    %v764 = vrot.slane %v448, 5
    %v765 = vrot.slane %v449, 5
    %v766 = vrot.slane %v450, 5
    %v767 = vrot.slane %v451, 5
    %v768 = vrot.slane %v452, 5
    %v769 = vrot.slane %v453, 5
    %v770 = vrot.slane %v454, 5
    %v771 = vrot.slane %v455, 5
    %v788 = vrot.slane %v505, 3
    %v789 = vrot.slane %v506, 3
    %v790 = vrot.slane %v507, 3
    %v791 = vrot.slane %v508, 3
    %v792 = vrot.slane %v509, 3
    %v793 = vrot.slane %v510, 3
    %v794 = vrot.slane %v511, 3
    %v795 = vrot.slane %v512, 3
    %v812 = vrot.slane %v586, 2
    %v813 = vrot.slane %v587, 2
    %v814 = vrot.slane %v588, 2
    %v815 = vrot.slane %v589, 2
    %v816 = vrot.slane %v590, 2
    %v817 = vrot.slane %v591, 2
    %v818 = vrot.slane %v592, 2
    %v819 = vrot.slane %v593, 2
    %v836 = vrot.slane %v643, 1
    %v837 = vrot.slane %v644, 1
    %v838 = vrot.slane %v645, 1
    %v839 = vrot.slane %v646, 1
    %v840 = vrot.slane %v647, 1
    %v841 = vrot.slane %v648, 1
    %v842 = vrot.slane %v649, 1
    %v843 = vrot.slane %v650, 1
    %vm852 = vcmask 1040384
    %v853 = vsel %vm852, %v221, %v716
    %v854 = vsel %vm852, %v222, %v717
    %v855 = vsel %vm852, %v223, %v718
    %v856 = vsel %vm852, %v224, %v719
    %v857 = vsel %vm852, %v225, %v720
    %v858 = vsel %vm852, %v226, %v721
    %v859 = vsel %vm852, %v227, %v722
    %v860 = vsel %vm852, %v228, %v723
    %vm861 = vcmask 1041408
    %v862 = vsel %vm861, %v853, %v740
    %v863 = vsel %vm861, %v854, %v741
    %v864 = vsel %vm861, %v855, %v742
    %v865 = vsel %vm861, %v856, %v743
    %v866 = vsel %vm861, %v857, %v744
    %v867 = vsel %vm861, %v858, %v745
    %v868 = vsel %vm861, %v859, %v746
    %v869 = vsel %vm861, %v860, %v747
    %vm870 = vcmask 1042432
    %v871 = vsel %vm870, %v862, %v764
    %v872 = vsel %vm870, %v863, %v765
    %v873 = vsel %vm870, %v864, %v766
    %v874 = vsel %vm870, %v865, %v767
    %v875 = vsel %vm870, %v866, %v768
    %v876 = vsel %vm870, %v867, %v769
    %v877 = vsel %vm870, %v868, %v770
    %v878 = vsel %vm870, %v869, %v771
    %vm879 = vcmask 1043456
    %v880 = vsel %vm879, %v871, %v95
    %v881 = vsel %vm879, %v872, %v99
    %v882 = vsel %vm879, %v873, %v103
    %v883 = vsel %vm879, %v874, %v107
    %v884 = vsel %vm879, %v875, %v111
    %v885 = vsel %vm879, %v876, %v115
    %v886 = vsel %vm879, %v877, %v119
    %v887 = vsel %vm879, %v878, %v123
    %vm888 = vcmask 1044480
    %v889 = vsel %vm888, %v880, %v788
    %v890 = vsel %vm888, %v881, %v789
    %v891 = vsel %vm888, %v882, %v790
    %v892 = vsel %vm888, %v883, %v791
    %v893 = vsel %vm888, %v884, %v792
    %v894 = vsel %vm888, %v885, %v793
    %v895 = vsel %vm888, %v886, %v794
    %v896 = vsel %vm888, %v887, %v795
    %vm897 = vcmask 1045504
    %v898 = vsel %vm897, %v889, %v812
    %v899 = vsel %vm897, %v890, %v813
    %v900 = vsel %vm897, %v891, %v814
    %v901 = vsel %vm897, %v892, %v815
    %v902 = vsel %vm897, %v893, %v816
    %v903 = vsel %vm897, %v894, %v817
    %v904 = vsel %vm897, %v895, %v818
    %v905 = vsel %vm897, %v896, %v819
    %vm906 = vcmask 1046528
    %v907 = vsel %vm906, %v898, %v836
    %v908 = vsel %vm906, %v899, %v837
    %v909 = vsel %vm906, %v900, %v838
    %v910 = vsel %vm906, %v901, %v839
    %v911 = vsel %vm906, %v902, %v840
    %v912 = vsel %vm906, %v903, %v841
    %v913 = vsel %vm906, %v904, %v842
    %v914 = vsel %vm906, %v905, %v843
    %v915 = vld [vmem:[#allocation2] sm:$0xff]
    %v916 = vld [vmem:[%s2] sm:$0xff]
    %918 = vset.pattern.permute.xlu0 0
    %919 = vperm.xlu0 %918, %v916
    %v920 = vpop.permute.xlu0 %919
    %vm922 = vcmask 72704
    %v924 = vsel %vm922, %v915, 0
    %v927 = vsel %vm852, %v700, 0
    %v930 = vsel %vm852, %v701, 0
    %v933 = vsel %vm852, %v702, 0
    %v936 = vsel %vm852, %v703, 0
    %v939 = vsel %vm852, %v704, 0
    %v942 = vsel %vm852, %v705, 0
    %v945 = vsel %vm852, %v706, 0
    %v948 = vsel %vm852, %v707, 0
    %950 = vmatprep.subr.mxu0 %v908
    %951 = vmatpush1.msra.mxu0 %v907
    %952 = vmatprep.subr.mxu0 %v930
    %953 = vmatpush1.msra.mxu0 %v927
    %954 = vmatprep.subr.mxu0 0.0
    %955 = vmatpush1.msra.mxu0 0.0
    %956 = vmatprep.subr.mxu0 0.0
    %957 = vmatpush1.msra.mxu0 0.0
    %958 = vmatprep.subr.mxu0 0.0
    %959 = vmatpush1.msra.mxu0 0.0
    %960 = vmatprep.subr.mxu0 0.0
    %961 = vmatpush1.msra.mxu0 0.0
    %962 = vmatprep.subr.mxu0 0.0
    %963 = vmatpush1.msra.mxu0 0.0
    %964 = vmatprep.subr.mxu0 0.0
    %965 = vmatpush1.msra.mxu0 0.0
    %966 = vmatprep.subr.mxu0 0.0
    %967 = vmatpush1.msra.mxu0 0.0
    %968 = vmatprep.subr.mxu0 0.0
    %969 = vmatpush1.msra.mxu0 0.0
    %970 = vmatprep.subr.mxu0 0.0
    %971 = vmatpush1.msra.mxu0 0.0
    %972 = vmatprep.subr.mxu0 0.0
    %973 = vmatpush1.msra.mxu0 0.0
    %974 = vmatprep.subr.mxu0 0.0
    %975 = vmatpush1.msra.mxu0 0.0
    %976 = vmatprep.subr.mxu0 0.0
    %977 = vmatpush1.msra.mxu0 0.0
    %978 = vmatprep.subr.mxu0 0.0
    %979 = vmatpush1.msra.mxu0 0.0
    %980 = vmatprep.subr.mxu0 0.0
    %981 = vmatpush1.msra.mxu0 0.0
    %982 = vmatprep.subr.mxu0 0.0
    %983 = vmatpush1.msra.mxu0 0.0
    %984 = vmatprep.subr.mxu0 0.0
    %985 = vmatpush1.msra.mxu0 0.0
    %986 = vmatprep.subr.mxu0 0.0
    %987 = vmatpush1.msra.mxu0 0.0
    %988 = vmatprep.subr.mxu0 0.0
    %989 = vmatpush1.msra.mxu0 0.0
    %990 = vmatprep.subr.mxu0 0.0
    %991 = vmatpush1.msra.mxu0 0.0
    %992 = vmatprep.subr.mxu0 0.0
    %993 = vmatpush1.msra.mxu0 0.0
    %994 = vmatprep.subr.mxu0 0.0
    %995 = vmatpush1.msra.mxu0 0.0
    %996 = vmatprep.subr.mxu0 0.0
    %997 = vmatpush1.msra.mxu0 0.0
    %998 = vmatprep.subr.mxu0 0.0
    %999 = vmatpush1.msra.mxu0 0.0
    %1000 = vmatprep.subr.mxu0 0.0
    %1001 = vmatpush1.msra.mxu0 0.0
    %1002 = vmatprep.subr.mxu0 0.0
    %1003 = vmatpush1.msra.mxu0 0.0
    %1004 = vmatprep.subr.mxu0 0.0
    %1005 = vmatpush1.msra.mxu0 0.0
    %1006 = vmatprep.subr.mxu0 0.0
    %1007 = vmatpush1.msra.mxu0 0.0
    %1008 = vmatprep.subr.mxu0 0.0
    %1009 = vmatpush1.msra.mxu0 0.0
    %1010 = vmatprep.subr.mxu0 0.0
    %1011 = vmatpush1.msra.mxu0 0.0
    %1012 = vmatprep.subr.mxu0 0.0
    %1013 = vmatpush1.msra.mxu0 0.0
    %1014 = vmatprep.mubr.f32.mxu0 0.0
    %1015 = vmatmul.mubr.f32.gmra.mrb[0].mxu0 %v924
    %v1016 = vpop.f32.mrb[0].mxu0
    %v1017 = vadd.f32 %v920, %v1016
    %v1018 = vpop.f32.mrb[0].mxu0
    %v1019 = vadd.f32 %v920, %v1018
    %1020 = vdwg.mxu0
    %1021 = vmatprep.subr.mxu0 %v910
    %1022 = vmatpush1.msra.mxu0 %v909
    %1023 = vmatprep.subr.mxu0 %v936
    %1024 = vmatpush1.msra.mxu0 %v933
    %1025 = vmatprep.subr.mxu0 0.0
    %1026 = vmatpush1.msra.mxu0 0.0
    %1027 = vmatprep.subr.mxu0 0.0
    %1028 = vmatpush1.msra.mxu0 0.0
    %1029 = vmatprep.subr.mxu0 0.0
    %1030 = vmatpush1.msra.mxu0 0.0
    %1031 = vmatprep.subr.mxu0 0.0
    %1032 = vmatpush1.msra.mxu0 0.0
    %1033 = vmatprep.subr.mxu0 0.0
    %1034 = vmatpush1.msra.mxu0 0.0
    %1035 = vmatprep.subr.mxu0 0.0
    %1036 = vmatpush1.msra.mxu0 0.0
    %1037 = vmatprep.subr.mxu0 0.0
    %1038 = vmatpush1.msra.mxu0 0.0
    %1039 = vmatprep.subr.mxu0 0.0
    %1040 = vmatpush1.msra.mxu0 0.0
    %1041 = vmatprep.subr.mxu0 0.0
    %1042 = vmatpush1.msra.mxu0 0.0
    %1043 = vmatprep.subr.mxu0 0.0
    %1044 = vmatpush1.msra.mxu0 0.0
    %1045 = vmatprep.subr.mxu0 0.0
    %1046 = vmatpush1.msra.mxu0 0.0
    %1047 = vmatprep.subr.mxu0 0.0
    %1048 = vmatpush1.msra.mxu0 0.0
    %1049 = vmatprep.subr.mxu0 0.0
    %1050 = vmatpush1.msra.mxu0 0.0
    %1051 = vmatprep.subr.mxu0 0.0
    %1052 = vmatpush1.msra.mxu0 0.0
    %1053 = vmatprep.subr.mxu0 0.0
    %1054 = vmatpush1.msra.mxu0 0.0
    %1055 = vmatprep.subr.mxu0 0.0
    %1056 = vmatpush1.msra.mxu0 0.0
    %1057 = vmatprep.subr.mxu0 0.0
    %1058 = vmatpush1.msra.mxu0 0.0
    %1059 = vmatprep.subr.mxu0 0.0
    %1060 = vmatpush1.msra.mxu0 0.0
    %1061 = vmatprep.subr.mxu0 0.0
    %1062 = vmatpush1.msra.mxu0 0.0
    %1063 = vmatprep.subr.mxu0 0.0
    %1064 = vmatpush1.msra.mxu0 0.0
    %1065 = vmatprep.subr.mxu0 0.0
    %1066 = vmatpush1.msra.mxu0 0.0
    %1067 = vmatprep.subr.mxu0 0.0
    %1068 = vmatpush1.msra.mxu0 0.0
    %1069 = vmatprep.subr.mxu0 0.0
    %1070 = vmatpush1.msra.mxu0 0.0
    %1071 = vmatprep.subr.mxu0 0.0
    %1072 = vmatpush1.msra.mxu0 0.0
    %1073 = vmatprep.subr.mxu0 0.0
    %1074 = vmatpush1.msra.mxu0 0.0
    %1075 = vmatprep.subr.mxu0 0.0
    %1076 = vmatpush1.msra.mxu0 0.0
    %1077 = vmatprep.subr.mxu0 0.0
    %1078 = vmatpush1.msra.mxu0 0.0
    %1079 = vmatprep.subr.mxu0 0.0
    %1080 = vmatpush1.msra.mxu0 0.0
    %1081 = vmatprep.subr.mxu0 0.0
    %1082 = vmatpush1.msra.mxu0 0.0
    %1083 = vmatprep.subr.mxu0 0.0
    %1084 = vmatpush1.msra.mxu0 0.0
    %1085 = vmatprep.mubr.f32.mxu0 0.0
    %1086 = vmatmul.mubr.f32.gmra.mrb[0].mxu0 %v924
    %v1087 = vpop.f32.mrb[0].mxu0
    %v1088 = vadd.f32 %v920, %v1087
    %v1089 = vpop.f32.mrb[0].mxu0
    %v1090 = vadd.f32 %v920, %v1089
    %1091 = vdwg.mxu0
    %1092 = vmatprep.subr.mxu0 %v912
    %1093 = vmatpush1.msra.mxu0 %v911
    %1094 = vmatprep.subr.mxu0 %v942
    %1095 = vmatpush1.msra.mxu0 %v939
    %1096 = vmatprep.subr.mxu0 0.0
    %1097 = vmatpush1.msra.mxu0 0.0
    %1098 = vmatprep.subr.mxu0 0.0
    %1099 = vmatpush1.msra.mxu0 0.0
    %1100 = vmatprep.subr.mxu0 0.0
    %1101 = vmatpush1.msra.mxu0 0.0
    %1102 = vmatprep.subr.mxu0 0.0
    %1103 = vmatpush1.msra.mxu0 0.0
    %1104 = vmatprep.subr.mxu0 0.0
    %1105 = vmatpush1.msra.mxu0 0.0
    %1106 = vmatprep.subr.mxu0 0.0
    %1107 = vmatpush1.msra.mxu0 0.0
    %1108 = vmatprep.subr.mxu0 0.0
    %1109 = vmatpush1.msra.mxu0 0.0
    %1110 = vmatprep.subr.mxu0 0.0
    %1111 = vmatpush1.msra.mxu0 0.0
    %1112 = vmatprep.subr.mxu0 0.0
    %1113 = vmatpush1.msra.mxu0 0.0
    %1114 = vmatprep.subr.mxu0 0.0
    %1115 = vmatpush1.msra.mxu0 0.0
    %1116 = vmatprep.subr.mxu0 0.0
    %1117 = vmatpush1.msra.mxu0 0.0
    %1118 = vmatprep.subr.mxu0 0.0
    %1119 = vmatpush1.msra.mxu0 0.0
    %1120 = vmatprep.subr.mxu0 0.0
    %1121 = vmatpush1.msra.mxu0 0.0
    %1122 = vmatprep.subr.mxu0 0.0
    %1123 = vmatpush1.msra.mxu0 0.0
    %1124 = vmatprep.subr.mxu0 0.0
    %1125 = vmatpush1.msra.mxu0 0.0
    %1126 = vmatprep.subr.mxu0 0.0
    %1127 = vmatpush1.msra.mxu0 0.0
    %1128 = vmatprep.subr.mxu0 0.0
    %1129 = vmatpush1.msra.mxu0 0.0
    %1130 = vmatprep.subr.mxu0 0.0
    %1131 = vmatpush1.msra.mxu0 0.0
    %1132 = vmatprep.subr.mxu0 0.0
    %1133 = vmatpush1.msra.mxu0 0.0
    %1134 = vmatprep.subr.mxu0 0.0
    %1135 = vmatpush1.msra.mxu0 0.0
    %1136 = vmatprep.subr.mxu0 0.0
    %1137 = vmatpush1.msra.mxu0 0.0
    %1138 = vmatprep.subr.mxu0 0.0
    %1139 = vmatpush1.msra.mxu0 0.0
    %1140 = vmatprep.subr.mxu0 0.0
    %1141 = vmatpush1.msra.mxu0 0.0
    %1142 = vmatprep.subr.mxu0 0.0
    %1143 = vmatpush1.msra.mxu0 0.0
    %1144 = vmatprep.subr.mxu0 0.0
    %1145 = vmatpush1.msra.mxu0 0.0
    %1146 = vmatprep.subr.mxu0 0.0
    %1147 = vmatpush1.msra.mxu0 0.0
    %1148 = vmatprep.subr.mxu0 0.0
    %1149 = vmatpush1.msra.mxu0 0.0
    %1150 = vmatprep.subr.mxu0 0.0
    %1151 = vmatpush1.msra.mxu0 0.0
    %1152 = vmatprep.subr.mxu0 0.0
    %1153 = vmatpush1.msra.mxu0 0.0
    %1154 = vmatprep.subr.mxu0 0.0
    %1155 = vmatpush1.msra.mxu0 0.0
    %1156 = vmatprep.mubr.f32.mxu0 0.0
    %1157 = vmatmul.mubr.f32.gmra.mrb[0].mxu0 %v924
    %v1158 = vpop.f32.mrb[0].mxu0
    %v1159 = vadd.f32 %v920, %v1158
    %v1160 = vpop.f32.mrb[0].mxu0
    %v1161 = vadd.f32 %v920, %v1160
    %1162 = vdwg.mxu0
    %1163 = vmatprep.subr.mxu0 %v914
    %1164 = vmatpush1.msra.mxu0 %v913
    %1165 = vmatprep.subr.mxu0 %v948
    %1166 = vmatpush1.msra.mxu0 %v945
    %1167 = vmatprep.subr.mxu0 0.0
    %1168 = vmatpush1.msra.mxu0 0.0
    %1169 = vmatprep.subr.mxu0 0.0
    %1170 = vmatpush1.msra.mxu0 0.0
    %1171 = vmatprep.subr.mxu0 0.0
    %1172 = vmatpush1.msra.mxu0 0.0
    %1173 = vmatprep.subr.mxu0 0.0
    %1174 = vmatpush1.msra.mxu0 0.0
    %1175 = vmatprep.subr.mxu0 0.0
    %1176 = vmatpush1.msra.mxu0 0.0
    %1177 = vmatprep.subr.mxu0 0.0
    %1178 = vmatpush1.msra.mxu0 0.0
    %1179 = vmatprep.subr.mxu0 0.0
    %1180 = vmatpush1.msra.mxu0 0.0
    %1181 = vmatprep.subr.mxu0 0.0
    %1182 = vmatpush1.msra.mxu0 0.0
    %1183 = vmatprep.subr.mxu0 0.0
    %1184 = vmatpush1.msra.mxu0 0.0
    %1185 = vmatprep.subr.mxu0 0.0
    %1186 = vmatpush1.msra.mxu0 0.0
    %1187 = vmatprep.subr.mxu0 0.0
    %1188 = vmatpush1.msra.mxu0 0.0
    %1189 = vmatprep.subr.mxu0 0.0
    %1190 = vmatpush1.msra.mxu0 0.0
    %1191 = vmatprep.subr.mxu0 0.0
    %1192 = vmatpush1.msra.mxu0 0.0
    %1193 = vmatprep.subr.mxu0 0.0
    %1194 = vmatpush1.msra.mxu0 0.0
    %1195 = vmatprep.subr.mxu0 0.0
    %1196 = vmatpush1.msra.mxu0 0.0
    %1197 = vmatprep.subr.mxu0 0.0
    %1198 = vmatpush1.msra.mxu0 0.0
    %1199 = vmatprep.subr.mxu0 0.0
    %1200 = vmatpush1.msra.mxu0 0.0
    %1201 = vmatprep.subr.mxu0 0.0
    %1202 = vmatpush1.msra.mxu0 0.0
    %1203 = vmatprep.subr.mxu0 0.0
    %1204 = vmatpush1.msra.mxu0 0.0
    %1205 = vmatprep.subr.mxu0 0.0
    %1206 = vmatpush1.msra.mxu0 0.0
    %1207 = vmatprep.subr.mxu0 0.0
    %1208 = vmatpush1.msra.mxu0 0.0
    %1209 = vmatprep.subr.mxu0 0.0
    %1210 = vmatpush1.msra.mxu0 0.0
    %1211 = vmatprep.subr.mxu0 0.0
    %1212 = vmatpush1.msra.mxu0 0.0
    %1213 = vmatprep.subr.mxu0 0.0
    %1214 = vmatpush1.msra.mxu0 0.0
    %1215 = vmatprep.subr.mxu0 0.0
    %1216 = vmatpush1.msra.mxu0 0.0
    %1217 = vmatprep.subr.mxu0 0.0
    %1218 = vmatpush1.msra.mxu0 0.0
    %1219 = vmatprep.subr.mxu0 0.0
    %1220 = vmatpush1.msra.mxu0 0.0
    %1221 = vmatprep.subr.mxu0 0.0
    %1222 = vmatpush1.msra.mxu0 0.0
    %1223 = vmatprep.subr.mxu0 0.0
    %1224 = vmatpush1.msra.mxu0 0.0
    %1225 = vmatprep.subr.mxu0 0.0
    %1226 = vmatpush1.msra.mxu0 0.0
    %1227 = vmatprep.mubr.f32.mxu0 0.0
    %1228 = vmatmul.mubr.f32.gmra.mrb[0].mxu0 %v924
    %v1229 = vpop.f32.mrb[0].mxu0
    %v1230 = vadd.f32 %v920, %v1229
    %v1231 = vpop.f32.mrb[0].mxu0
    %v1232 = vadd.f32 %v920, %v1231
    %1233 = vdwg.mxu0
    %v1234 = vmax.f32 %v1017, 0.0
    %v1235 = vmax.f32 %v1019, 0.0
    %v1236 = vmax.f32 %v1088, 0.0
    %v1237 = vmax.f32 %v1090, 0.0
    %v1238 = vmax.f32 %v1159, 0.0
    %v1239 = vmax.f32 %v1161, 0.0
    %v1240 = vmax.f32 %v1230, 0.0
    %v1241 = vmax.f32 %v1232, 0.0
    %1242 = vrot.lane.b32.xlu0 %v1234, 33
    %v1243 = vpop.permute.xlu0 %1242
    %1244 = vrot.lane.b32.xlu0 %v1235, 33
    %v1245 = vpop.permute.xlu0 %1244
    %1246 = vrot.lane.b32.xlu0 %v1236, 33
    %v1247 = vpop.permute.xlu0 %1246
    %1248 = vrot.lane.b32.xlu0 %v1237, 33
    %v1249 = vpop.permute.xlu0 %1248
    %1250 = vrot.lane.b32.xlu0 %v1238, 33
    %v1251 = vpop.permute.xlu0 %1250
    %1252 = vrot.lane.b32.xlu0 %v1239, 33
    %v1253 = vpop.permute.xlu0 %1252
    %1254 = vrot.lane.b32.xlu0 %v1240, 33
    %v1255 = vpop.permute.xlu0 %1254
    %1256 = vrot.lane.b32.xlu0 %v1241, 33
    %v1257 = vpop.permute.xlu0 %1256
    %v1258 = vsel %vm148, %v1255, %v1257
    %v1259 = vsel %vm148, %v1253, %v1255
    %v1260 = vsel %vm148, %v1251, %v1253
    %v1261 = vsel %vm148, %v1249, %v1251
    %v1262 = vsel %vm148, %v1247, %v1249
    %v1263 = vsel %vm148, %v1245, %v1247
    %v1264 = vsel %vm148, %v1243, %v1245
    %v1265 = vsel %vm148, %v1257, %v1243
    %v1266 = vmul.f32 %v1265, %v213
    %v1267 = vmul.f32 %v1264, %v214
    %v1268 = vmul.f32 %v1263, %v215
    %v1269 = vmul.f32 %v1262, %v216
    %v1270 = vmul.f32 %v1261, %v217
    %v1271 = vmul.f32 %v1260, %v218
    %v1272 = vmul.f32 %v1259, %v219
    %v1273 = vmul.f32 %v1258, %v220
    %1274 = vrot.lane.b32.xlu0 %v1234, 32
    %v1275 = vpop.permute.xlu0 %1274
    %1276 = vrot.lane.b32.xlu0 %v1235, 32
    %v1277 = vpop.permute.xlu0 %1276
    %1278 = vrot.lane.b32.xlu0 %v1236, 32
    %v1279 = vpop.permute.xlu0 %1278
    %1280 = vrot.lane.b32.xlu0 %v1237, 32
    %v1281 = vpop.permute.xlu0 %1280
    %1282 = vrot.lane.b32.xlu0 %v1238, 32
    %v1283 = vpop.permute.xlu0 %1282
    %1284 = vrot.lane.b32.xlu0 %v1239, 32
    %v1285 = vpop.permute.xlu0 %1284
    %1286 = vrot.lane.b32.xlu0 %v1240, 32
    %v1287 = vpop.permute.xlu0 %1286
    %1288 = vrot.lane.b32.xlu0 %v1241, 32
    %v1289 = vpop.permute.xlu0 %1288
    %v1290 = vsel %vm245, %v1287, %v1289
    %v1291 = vsel %vm245, %v1285, %v1287
    %v1292 = vsel %vm245, %v1283, %v1285
    %v1293 = vsel %vm245, %v1281, %v1283
    %v1294 = vsel %vm245, %v1279, %v1281
    %v1295 = vsel %vm245, %v1277, %v1279
    %v1296 = vsel %vm245, %v1275, %v1277
    %v1297 = vsel %vm245, %v1289, %v1275
    %v1298 = vmul.f32 %v1297, %v286
    %v1299 = vmul.f32 %v1296, %v287
    %v1300 = vmul.f32 %v1295, %v288
    %v1301 = vmul.f32 %v1294, %v289
    %v1302 = vmul.f32 %v1293, %v290
    %v1303 = vmul.f32 %v1292, %v291
    %v1304 = vmul.f32 %v1291, %v292
    %v1305 = vmul.f32 %v1290, %v293
    %1306 = vrot.lane.b32.xlu0 %v1234, 31
    %v1307 = vpop.permute.xlu0 %1306
    %1308 = vrot.lane.b32.xlu0 %v1235, 31
    %v1309 = vpop.permute.xlu0 %1308
    %1310 = vrot.lane.b32.xlu0 %v1236, 31
    %v1311 = vpop.permute.xlu0 %1310
    %1312 = vrot.lane.b32.xlu0 %v1237, 31
    %v1313 = vpop.permute.xlu0 %1312
    %1314 = vrot.lane.b32.xlu0 %v1238, 31
    %v1315 = vpop.permute.xlu0 %1314
    %1316 = vrot.lane.b32.xlu0 %v1239, 31
    %v1317 = vpop.permute.xlu0 %1316
    %1318 = vrot.lane.b32.xlu0 %v1240, 31
    %v1319 = vpop.permute.xlu0 %1318
    %1320 = vrot.lane.b32.xlu0 %v1241, 31
    %v1321 = vpop.permute.xlu0 %1320
    %v1322 = vsel %vm318, %v1319, %v1321
    %v1323 = vsel %vm318, %v1317, %v1319
    %v1324 = vsel %vm318, %v1315, %v1317
    %v1325 = vsel %vm318, %v1313, %v1315
    %v1326 = vsel %vm318, %v1311, %v1313
    %v1327 = vsel %vm318, %v1309, %v1311
    %v1328 = vsel %vm318, %v1307, %v1309
    %v1329 = vsel %vm318, %v1321, %v1307
    %v1330 = vmul.f32 %v1329, %v359
    %v1331 = vmul.f32 %v1328, %v360
    %v1332 = vmul.f32 %v1327, %v361
    %v1333 = vmul.f32 %v1326, %v362
    %v1334 = vmul.f32 %v1325, %v363
    %v1335 = vmul.f32 %v1324, %v364
    %v1336 = vmul.f32 %v1323, %v365
    %v1337 = vmul.f32 %v1322, %v366
    %1338 = vrot.lane.b32.xlu0 %v1234, 1
    %v1339 = vpop.permute.xlu0 %1338
    %1340 = vrot.lane.b32.xlu0 %v1235, 1
    %v1341 = vpop.permute.xlu0 %1340
    %1342 = vrot.lane.b32.xlu0 %v1236, 1
    %v1343 = vpop.permute.xlu0 %1342
    %1344 = vrot.lane.b32.xlu0 %v1237, 1
    %v1345 = vpop.permute.xlu0 %1344
    %1346 = vrot.lane.b32.xlu0 %v1238, 1
    %v1347 = vpop.permute.xlu0 %1346
    %1348 = vrot.lane.b32.xlu0 %v1239, 1
    %v1349 = vpop.permute.xlu0 %1348
    %1350 = vrot.lane.b32.xlu0 %v1240, 1
    %v1351 = vpop.permute.xlu0 %1350
    %1352 = vrot.lane.b32.xlu0 %v1241, 1
    %v1353 = vpop.permute.xlu0 %1352
    %v1354 = vsel %vm391, %v1351, %v1353
    %v1355 = vsel %vm391, %v1349, %v1351
    %v1356 = vsel %vm391, %v1347, %v1349
    %v1357 = vsel %vm391, %v1345, %v1347
    %v1358 = vsel %vm391, %v1343, %v1345
    %v1359 = vsel %vm391, %v1341, %v1343
    %v1360 = vsel %vm391, %v1339, %v1341
    %v1361 = vsel %vm391, %v1353, %v1339
    %v1362 = vmul.f32 %v1361, %v440
    %v1363 = vmul.f32 %v1360, %v441
    %v1364 = vmul.f32 %v1359, %v442
    %v1365 = vmul.f32 %v1358, %v443
    %v1366 = vmul.f32 %v1357, %v444
    %v1367 = vmul.f32 %v1356, %v445
    %v1368 = vmul.f32 %v1355, %v446
    %v1369 = vmul.f32 %v1354, %v447
    %1370 = vrot.lane.b32.xlu0 %v1234, 127
    %v1371 = vpop.permute.xlu0 %1370
    %1372 = vrot.lane.b32.xlu0 %v1235, 127
    %v1373 = vpop.permute.xlu0 %1372
    %1374 = vrot.lane.b32.xlu0 %v1236, 127
    %v1375 = vpop.permute.xlu0 %1374
    %1376 = vrot.lane.b32.xlu0 %v1237, 127
    %v1377 = vpop.permute.xlu0 %1376
    %1378 = vrot.lane.b32.xlu0 %v1238, 127
    %v1379 = vpop.permute.xlu0 %1378
    %1380 = vrot.lane.b32.xlu0 %v1239, 127
    %v1381 = vpop.permute.xlu0 %1380
    %1382 = vrot.lane.b32.xlu0 %v1240, 127
    %v1383 = vpop.permute.xlu0 %1382
    %1384 = vrot.lane.b32.xlu0 %v1241, 127
    %v1385 = vpop.permute.xlu0 %1384
    %v1386 = vsel %vm472, %v1383, %v1385
    %v1387 = vsel %vm472, %v1381, %v1383
    %v1388 = vsel %vm472, %v1379, %v1381
    %v1389 = vsel %vm472, %v1377, %v1379
    %v1390 = vsel %vm472, %v1375, %v1377
    %v1391 = vsel %vm472, %v1373, %v1375
    %v1392 = vsel %vm472, %v1371, %v1373
    %v1393 = vsel %vm472, %v1385, %v1371
    %v1394 = vmul.f32 %v1392, %v497
    %v1395 = vmul.f32 %v1391, %v498
    %v1396 = vmul.f32 %v1390, %v499
    %v1397 = vmul.f32 %v1389, %v500
    %v1398 = vmul.f32 %v1388, %v501
    %v1399 = vmul.f32 %v1387, %v502
    %v1400 = vmul.f32 %v1386, %v503
    %v1401 = vmul.f32 %v1393, %v504
    %1402 = vrot.lane.b32.xlu0 %v1234, 97
    %v1403 = vpop.permute.xlu0 %1402
    %1404 = vrot.lane.b32.xlu0 %v1235, 97
    %v1405 = vpop.permute.xlu0 %1404
    %1406 = vrot.lane.b32.xlu0 %v1236, 97
    %v1407 = vpop.permute.xlu0 %1406
    %1408 = vrot.lane.b32.xlu0 %v1237, 97
    %v1409 = vpop.permute.xlu0 %1408
    %1410 = vrot.lane.b32.xlu0 %v1238, 97
    %v1411 = vpop.permute.xlu0 %1410
    %1412 = vrot.lane.b32.xlu0 %v1239, 97
    %v1413 = vpop.permute.xlu0 %1412
    %1414 = vrot.lane.b32.xlu0 %v1240, 97
    %v1415 = vpop.permute.xlu0 %1414
    %1416 = vrot.lane.b32.xlu0 %v1241, 97
    %v1417 = vpop.permute.xlu0 %1416
    %v1418 = vsel %vm529, %v1415, %v1417
    %v1419 = vsel %vm529, %v1413, %v1415
    %v1420 = vsel %vm529, %v1411, %v1413
    %v1421 = vsel %vm529, %v1409, %v1411
    %v1422 = vsel %vm529, %v1407, %v1409
    %v1423 = vsel %vm529, %v1405, %v1407
    %v1424 = vsel %vm529, %v1403, %v1405
    %v1425 = vsel %vm529, %v1417, %v1403
    %v1426 = vmul.f32 %v1424, %v578
    %v1427 = vmul.f32 %v1423, %v579
    %v1428 = vmul.f32 %v1422, %v580
    %v1429 = vmul.f32 %v1421, %v581
    %v1430 = vmul.f32 %v1420, %v582
    %v1431 = vmul.f32 %v1419, %v583
    %v1432 = vmul.f32 %v1418, %v584
    %v1433 = vmul.f32 %v1425, %v585
    %1434 = vrot.lane.b32.xlu0 %v1234, 96
    %v1435 = vpop.permute.xlu0 %1434
    %1436 = vrot.lane.b32.xlu0 %v1235, 96
    %v1437 = vpop.permute.xlu0 %1436
    %1438 = vrot.lane.b32.xlu0 %v1236, 96
    %v1439 = vpop.permute.xlu0 %1438
    %1440 = vrot.lane.b32.xlu0 %v1237, 96
    %v1441 = vpop.permute.xlu0 %1440
    %1442 = vrot.lane.b32.xlu0 %v1238, 96
    %v1443 = vpop.permute.xlu0 %1442
    %1444 = vrot.lane.b32.xlu0 %v1239, 96
    %v1445 = vpop.permute.xlu0 %1444
    %1446 = vrot.lane.b32.xlu0 %v1240, 96
    %v1447 = vpop.permute.xlu0 %1446
    %1448 = vrot.lane.b32.xlu0 %v1241, 96
    %v1449 = vpop.permute.xlu0 %1448
    %v1450 = vsel %vm610, %v1447, %v1449
    %v1451 = vsel %vm610, %v1445, %v1447
    %v1452 = vsel %vm610, %v1443, %v1445
    %v1453 = vsel %vm610, %v1441, %v1443
    %v1454 = vsel %vm610, %v1439, %v1441
    %v1455 = vsel %vm610, %v1437, %v1439
    %v1456 = vsel %vm610, %v1435, %v1437
    %v1457 = vsel %vm610, %v1449, %v1435
    %v1458 = vmul.f32 %v1456, %v635
    %v1459 = vmul.f32 %v1455, %v636
    %v1460 = vmul.f32 %v1454, %v637
    %v1461 = vmul.f32 %v1453, %v638
    %v1462 = vmul.f32 %v1452, %v639
    %v1463 = vmul.f32 %v1451, %v640
    %v1464 = vmul.f32 %v1450, %v641
    %v1465 = vmul.f32 %v1457, %v642
    %1466 = vrot.lane.b32.xlu0 %v1234, 95
    %v1467 = vpop.permute.xlu0 %1466
    %1468 = vrot.lane.b32.xlu0 %v1235, 95
    %v1469 = vpop.permute.xlu0 %1468
    %1470 = vrot.lane.b32.xlu0 %v1236, 95
    %v1471 = vpop.permute.xlu0 %1470
    %1472 = vrot.lane.b32.xlu0 %v1237, 95
    %v1473 = vpop.permute.xlu0 %1472
    %1474 = vrot.lane.b32.xlu0 %v1238, 95
    %v1475 = vpop.permute.xlu0 %1474
    %1476 = vrot.lane.b32.xlu0 %v1239, 95
    %v1477 = vpop.permute.xlu0 %1476
    %1478 = vrot.lane.b32.xlu0 %v1240, 95
    %v1479 = vpop.permute.xlu0 %1478
    %1480 = vrot.lane.b32.xlu0 %v1241, 95
    %v1481 = vpop.permute.xlu0 %1480
    %v1482 = vsel %vm667, %v1479, %v1481
    %v1483 = vsel %vm667, %v1477, %v1479
    %v1484 = vsel %vm667, %v1475, %v1477
    %v1485 = vsel %vm667, %v1473, %v1475
    %v1486 = vsel %vm667, %v1471, %v1473
    %v1487 = vsel %vm667, %v1469, %v1471
    %v1488 = vsel %vm667, %v1467, %v1469
    %v1489 = vsel %vm667, %v1481, %v1467
    %v1490 = vmul.f32 %v1488, %v692
    %v1491 = vmul.f32 %v1487, %v693
    %v1492 = vmul.f32 %v1486, %v694
    %v1493 = vmul.f32 %v1485, %v695
    %v1494 = vmul.f32 %v1484, %v696
    %v1495 = vmul.f32 %v1483, %v697
    %v1496 = vmul.f32 %v1482, %v698
    %v1497 = vmul.f32 %v1489, %v699
    %v1498 = vld [vmem:[#allocation4] sm:$0xff]
    %v1499 = vld [vmem:[#allocation4 + $0x8] sm:$0xff]
    %v1500 = vld [vmem:[#allocation6] sm:$0xff]
    %v1501 = vld [vmem:[#allocation6 + $0x8] sm:$0xff]
    %1503 = vset.pattern.permute.xlu0 0
    %1504 = vperm.xlu0 %1503, %v1500
    %v1505 = vpop.permute.xlu0 %1504
    %1508 = vset.pattern.permute.xlu0 0
    %1509 = vperm.xlu0 %1508, %v1501
    %v1510 = vpop.permute.xlu0 %1509
    %vm1512 = vcmask 588800
    %v1514 = vsel %vm1512, %v1498, 0
    %v1517 = vsel %vm1512, %v1499, 0
    %1519 = vmatprep.subr.mxu0 %v1267
    %1520 = vmatpush1.msra.mxu0 %v1266
    %1521 = vmatprep.subr.mxu0 %v1299
    %1522 = vmatpush1.msra.mxu0 %v1298
    %1523 = vmatprep.subr.mxu0 %v1331
    %1524 = vmatpush1.msra.mxu0 %v1330
    %1525 = vmatprep.subr.mxu0 %v1363
    %1526 = vmatpush1.msra.mxu0 %v1362
    %1527 = vmatprep.subr.mxu0 %v1235
    %1528 = vmatpush1.msra.mxu0 %v1234
    %1529 = vmatprep.subr.mxu0 %v1395
    %1530 = vmatpush1.msra.mxu0 %v1394
    %1531 = vmatprep.subr.mxu0 %v1427
    %1532 = vmatpush1.msra.mxu0 %v1426
    %1533 = vmatprep.subr.mxu0 %v1459
    %1534 = vmatpush1.msra.mxu0 %v1458
    %1535 = vmatprep.subr.mxu0 %v1491
    %1536 = vmatpush1.msra.mxu0 %v1490
    %1537 = vmatprep.subr.mxu0 0.0
    %1538 = vmatpush1.msra.mxu0 0.0
    %1539 = vmatprep.subr.mxu0 0.0
    %1540 = vmatpush1.msra.mxu0 0.0
    %1541 = vmatprep.subr.mxu0 0.0
    %1542 = vmatpush1.msra.mxu0 0.0
    %1543 = vmatprep.subr.mxu0 0.0
    %1544 = vmatpush1.msra.mxu0 0.0
    %1545 = vmatprep.subr.mxu0 0.0
    %1546 = vmatpush1.msra.mxu0 0.0
    %1547 = vmatprep.subr.mxu0 0.0
    %1548 = vmatpush1.msra.mxu0 0.0
    %1549 = vmatprep.subr.mxu0 0.0
    %1550 = vmatpush1.msra.mxu0 0.0
    %1551 = vmatprep.subr.mxu0 0.0
    %1552 = vmatpush1.msra.mxu0 0.0
    %1553 = vmatprep.subr.mxu0 0.0
    %1554 = vmatpush1.msra.mxu0 0.0
    %1555 = vmatprep.subr.mxu0 0.0
    %1556 = vmatpush1.msra.mxu0 0.0
    %1557 = vmatprep.subr.mxu0 0.0
    %1558 = vmatpush1.msra.mxu0 0.0
    %1559 = vmatprep.subr.mxu0 0.0
    %1560 = vmatpush1.msra.mxu0 0.0
    %1561 = vmatprep.subr.mxu0 0.0
    %1562 = vmatpush1.msra.mxu0 0.0
    %1563 = vmatprep.subr.mxu0 0.0
    %1564 = vmatpush1.msra.mxu0 0.0
    %1565 = vmatprep.subr.mxu0 0.0
    %1566 = vmatpush1.msra.mxu0 0.0
    %1567 = vmatprep.subr.mxu0 0.0
    %1568 = vmatpush1.msra.mxu0 0.0
    %1569 = vmatprep.subr.mxu0 0.0
    %1570 = vmatpush1.msra.mxu0 0.0
    %1571 = vmatprep.subr.mxu0 0.0
    %1572 = vmatpush1.msra.mxu0 0.0
    %1573 = vmatprep.subr.mxu0 0.0
    %1574 = vmatpush1.msra.mxu0 0.0
    %1575 = vmatprep.subr.mxu0 0.0
    %1576 = vmatpush1.msra.mxu0 0.0
    %1577 = vmatprep.subr.mxu0 0.0
    %1578 = vmatpush1.msra.mxu0 0.0
    %1579 = vmatprep.subr.mxu0 0.0
    %1580 = vmatpush1.msra.mxu0 0.0
    %1581 = vmatprep.subr.mxu0 0.0
    %1582 = vmatpush1.msra.mxu0 0.0
    %1583 = vmatprep.mubr.f32.mxu0 0.0
    %1584 = vmatmul.mubr.f32.gmra.mrb[0].mxu0 %v1514
    %v1585 = vpop.f32.mrb[0].mxu0
    %v1586 = vadd.f32 %v1505, %v1585
    %v1587 = vpop.f32.mrb[0].mxu0
    %v1588 = vadd.f32 %v1505, %v1587
    %1589 = vmatprep.mubr.f32.mxu0 0.0
    %1590 = vmatmul.mubr.f32.gmra.mrb[0].mxu0 %v1517
    %v1591 = vpop.f32.mrb[0].mxu0
    %v1592 = vadd.f32 %v1510, %v1591
    %v1593 = vpop.f32.mrb[0].mxu0
    %v1594 = vadd.f32 %v1510, %v1593
    %1595 = vdwg.mxu0
    %1596 = vmatprep.subr.mxu0 %v1269
    %1597 = vmatpush1.msra.mxu0 %v1268
    %1598 = vmatprep.subr.mxu0 %v1301
    %1599 = vmatpush1.msra.mxu0 %v1300
    %1600 = vmatprep.subr.mxu0 %v1333
    %1601 = vmatpush1.msra.mxu0 %v1332
    %1602 = vmatprep.subr.mxu0 %v1365
    %1603 = vmatpush1.msra.mxu0 %v1364
    %1604 = vmatprep.subr.mxu0 %v1237
    %1605 = vmatpush1.msra.mxu0 %v1236
    %1606 = vmatprep.subr.mxu0 %v1397
    %1607 = vmatpush1.msra.mxu0 %v1396
    %1608 = vmatprep.subr.mxu0 %v1429
    %1609 = vmatpush1.msra.mxu0 %v1428
    %1610 = vmatprep.subr.mxu0 %v1461
    %1611 = vmatpush1.msra.mxu0 %v1460
    %1612 = vmatprep.subr.mxu0 %v1493
    %1613 = vmatpush1.msra.mxu0 %v1492
    %1614 = vmatprep.subr.mxu0 0.0
    %1615 = vmatpush1.msra.mxu0 0.0
    %1616 = vmatprep.subr.mxu0 0.0
    %1617 = vmatpush1.msra.mxu0 0.0
    %1618 = vmatprep.subr.mxu0 0.0
    %1619 = vmatpush1.msra.mxu0 0.0
    %1620 = vmatprep.subr.mxu0 0.0
    %1621 = vmatpush1.msra.mxu0 0.0
    %1622 = vmatprep.subr.mxu0 0.0
    %1623 = vmatpush1.msra.mxu0 0.0
    %1624 = vmatprep.subr.mxu0 0.0
    %1625 = vmatpush1.msra.mxu0 0.0
    %1626 = vmatprep.subr.mxu0 0.0
    %1627 = vmatpush1.msra.mxu0 0.0
    %1628 = vmatprep.subr.mxu0 0.0
    %1629 = vmatpush1.msra.mxu0 0.0
    %1630 = vmatprep.subr.mxu0 0.0
    %1631 = vmatpush1.msra.mxu0 0.0
    %1632 = vmatprep.subr.mxu0 0.0
    %1633 = vmatpush1.msra.mxu0 0.0
    %1634 = vmatprep.subr.mxu0 0.0
    %1635 = vmatpush1.msra.mxu0 0.0
    %1636 = vmatprep.subr.mxu0 0.0
    %1637 = vmatpush1.msra.mxu0 0.0
    %1638 = vmatprep.subr.mxu0 0.0
    %1639 = vmatpush1.msra.mxu0 0.0
    %1640 = vmatprep.subr.mxu0 0.0
    %1641 = vmatpush1.msra.mxu0 0.0
    %1642 = vmatprep.subr.mxu0 0.0
    %1643 = vmatpush1.msra.mxu0 0.0
    %1644 = vmatprep.subr.mxu0 0.0
    %1645 = vmatpush1.msra.mxu0 0.0
    %1646 = vmatprep.subr.mxu0 0.0
    %1647 = vmatpush1.msra.mxu0 0.0
    %1648 = vmatprep.subr.mxu0 0.0
    %1649 = vmatpush1.msra.mxu0 0.0
    %1650 = vmatprep.subr.mxu0 0.0
    %1651 = vmatpush1.msra.mxu0 0.0
    %1652 = vmatprep.subr.mxu0 0.0
    %1653 = vmatpush1.msra.mxu0 0.0
    %1654 = vmatprep.subr.mxu0 0.0
    %1655 = vmatpush1.msra.mxu0 0.0
    %1656 = vmatprep.subr.mxu0 0.0
    %1657 = vmatpush1.msra.mxu0 0.0
    %1658 = vmatprep.subr.mxu0 0.0
    %1659 = vmatpush1.msra.mxu0 0.0
    %1660 = vmatprep.mubr.f32.mxu0 0.0
    %1661 = vmatmul.mubr.f32.gmra.mrb[0].mxu0 %v1514
    %v1662 = vpop.f32.mrb[0].mxu0
    %v1663 = vadd.f32 %v1505, %v1662
    %v1664 = vpop.f32.mrb[0].mxu0
    %v1665 = vadd.f32 %v1505, %v1664
    %1666 = vmatprep.mubr.f32.mxu0 0.0
    %1667 = vmatmul.mubr.f32.gmra.mrb[0].mxu0 %v1517
    %v1668 = vpop.f32.mrb[0].mxu0
    %v1669 = vadd.f32 %v1510, %v1668
    %v1670 = vpop.f32.mrb[0].mxu0
    %v1671 = vadd.f32 %v1510, %v1670
    %1672 = vdwg.mxu0
    %1673 = vmatprep.subr.mxu0 %v1271
    %1674 = vmatpush1.msra.mxu0 %v1270
    %1675 = vmatprep.subr.mxu0 %v1303
    %1676 = vmatpush1.msra.mxu0 %v1302
    %1677 = vmatprep.subr.mxu0 %v1335
    %1678 = vmatpush1.msra.mxu0 %v1334
    %1679 = vmatprep.subr.mxu0 %v1367
    %1680 = vmatpush1.msra.mxu0 %v1366
    %1681 = vmatprep.subr.mxu0 %v1239
    %1682 = vmatpush1.msra.mxu0 %v1238
    %1683 = vmatprep.subr.mxu0 %v1399
    %1684 = vmatpush1.msra.mxu0 %v1398
    %1685 = vmatprep.subr.mxu0 %v1431
    %1686 = vmatpush1.msra.mxu0 %v1430
    %1687 = vmatprep.subr.mxu0 %v1463
    %1688 = vmatpush1.msra.mxu0 %v1462
    %1689 = vmatprep.subr.mxu0 %v1495
    %1690 = vmatpush1.msra.mxu0 %v1494
    %1691 = vmatprep.subr.mxu0 0.0
    %1692 = vmatpush1.msra.mxu0 0.0
    %1693 = vmatprep.subr.mxu0 0.0
    %1694 = vmatpush1.msra.mxu0 0.0
    %1695 = vmatprep.subr.mxu0 0.0
    %1696 = vmatpush1.msra.mxu0 0.0
    %1697 = vmatprep.subr.mxu0 0.0
    %1698 = vmatpush1.msra.mxu0 0.0
    %1699 = vmatprep.subr.mxu0 0.0
    %1700 = vmatpush1.msra.mxu0 0.0
    %1701 = vmatprep.subr.mxu0 0.0
    %1702 = vmatpush1.msra.mxu0 0.0
    %1703 = vmatprep.subr.mxu0 0.0
    %1704 = vmatpush1.msra.mxu0 0.0
    %1705 = vmatprep.subr.mxu0 0.0
    %1706 = vmatpush1.msra.mxu0 0.0
    %1707 = vmatprep.subr.mxu0 0.0
    %1708 = vmatpush1.msra.mxu0 0.0
    %1709 = vmatprep.subr.mxu0 0.0
    %1710 = vmatpush1.msra.mxu0 0.0
    %1711 = vmatprep.subr.mxu0 0.0
    %1712 = vmatpush1.msra.mxu0 0.0
    %1713 = vmatprep.subr.mxu0 0.0
    %1714 = vmatpush1.msra.mxu0 0.0
    %1715 = vmatprep.subr.mxu0 0.0
    %1716 = vmatpush1.msra.mxu0 0.0
    %1717 = vmatprep.subr.mxu0 0.0
    %1718 = vmatpush1.msra.mxu0 0.0
    %1719 = vmatprep.subr.mxu0 0.0
    %1720 = vmatpush1.msra.mxu0 0.0
    %1721 = vmatprep.subr.mxu0 0.0
    %1722 = vmatpush1.msra.mxu0 0.0
    %1723 = vmatprep.subr.mxu0 0.0
    %1724 = vmatpush1.msra.mxu0 0.0
    %1725 = vmatprep.subr.mxu0 0.0
    %1726 = vmatpush1.msra.mxu0 0.0
    %1727 = vmatprep.subr.mxu0 0.0
    %1728 = vmatpush1.msra.mxu0 0.0
    %1729 = vmatprep.subr.mxu0 0.0
    %1730 = vmatpush1.msra.mxu0 0.0
    %1731 = vmatprep.subr.mxu0 0.0
    %1732 = vmatpush1.msra.mxu0 0.0
    %1733 = vmatprep.subr.mxu0 0.0
    %1734 = vmatpush1.msra.mxu0 0.0
    %1735 = vmatprep.subr.mxu0 0.0
    %1736 = vmatpush1.msra.mxu0 0.0
    %1737 = vmatprep.mubr.f32.mxu0 0.0
    %1738 = vmatmul.mubr.f32.gmra.mrb[0].mxu0 %v1514
    %v1739 = vpop.f32.mrb[0].mxu0
    %v1740 = vadd.f32 %v1505, %v1739
    %v1741 = vpop.f32.mrb[0].mxu0
    %v1742 = vadd.f32 %v1505, %v1741
    %1743 = vmatprep.mubr.f32.mxu0 0.0
    %1744 = vmatmul.mubr.f32.gmra.mrb[0].mxu0 %v1517
    %v1745 = vpop.f32.mrb[0].mxu0
    %v1746 = vadd.f32 %v1510, %v1745
    %v1747 = vpop.f32.mrb[0].mxu0
    %v1748 = vadd.f32 %v1510, %v1747
    %1749 = vdwg.mxu0
    %1750 = vmatprep.subr.mxu0 %v1273
    %1751 = vmatpush1.msra.mxu0 %v1272
    %1752 = vmatprep.subr.mxu0 %v1305
    %1753 = vmatpush1.msra.mxu0 %v1304
    %1754 = vmatprep.subr.mxu0 %v1337
    %1755 = vmatpush1.msra.mxu0 %v1336
    %1756 = vmatprep.subr.mxu0 %v1369
    %1757 = vmatpush1.msra.mxu0 %v1368
    %1758 = vmatprep.subr.mxu0 %v1241
    %1759 = vmatpush1.msra.mxu0 %v1240
    %1760 = vmatprep.subr.mxu0 %v1401
    %1761 = vmatpush1.msra.mxu0 %v1400
    %1762 = vmatprep.subr.mxu0 %v1433
    %1763 = vmatpush1.msra.mxu0 %v1432
    %1764 = vmatprep.subr.mxu0 %v1465
    %1765 = vmatpush1.msra.mxu0 %v1464
    %1766 = vmatprep.subr.mxu0 %v1497
    %1767 = vmatpush1.msra.mxu0 %v1496
    %1768 = vmatprep.subr.mxu0 0.0
    %1769 = vmatpush1.msra.mxu0 0.0
    %1770 = vmatprep.subr.mxu0 0.0
    %1771 = vmatpush1.msra.mxu0 0.0
    %1772 = vmatprep.subr.mxu0 0.0
    %1773 = vmatpush1.msra.mxu0 0.0
    %1774 = vmatprep.subr.mxu0 0.0
    %1775 = vmatpush1.msra.mxu0 0.0
    %1776 = vmatprep.subr.mxu0 0.0
    %1777 = vmatpush1.msra.mxu0 0.0
    %1778 = vmatprep.subr.mxu0 0.0
    %1779 = vmatpush1.msra.mxu0 0.0
    %1780 = vmatprep.subr.mxu0 0.0
    %1781 = vmatpush1.msra.mxu0 0.0
    %1782 = vmatprep.subr.mxu0 0.0
    %1783 = vmatpush1.msra.mxu0 0.0
    %1784 = vmatprep.subr.mxu0 0.0
    %1785 = vmatpush1.msra.mxu0 0.0
    %1786 = vmatprep.subr.mxu0 0.0
    %1787 = vmatpush1.msra.mxu0 0.0
    %1788 = vmatprep.subr.mxu0 0.0
    %1789 = vmatpush1.msra.mxu0 0.0
    %1790 = vmatprep.subr.mxu0 0.0
    %1791 = vmatpush1.msra.mxu0 0.0
    %1792 = vmatprep.subr.mxu0 0.0
    %1793 = vmatpush1.msra.mxu0 0.0
    %1794 = vmatprep.subr.mxu0 0.0
    %1795 = vmatpush1.msra.mxu0 0.0
    %1796 = vmatprep.subr.mxu0 0.0
    %1797 = vmatpush1.msra.mxu0 0.0
    %1798 = vmatprep.subr.mxu0 0.0
    %1799 = vmatpush1.msra.mxu0 0.0
    %1800 = vmatprep.subr.mxu0 0.0
    %1801 = vmatpush1.msra.mxu0 0.0
    %1802 = vmatprep.subr.mxu0 0.0
    %1803 = vmatpush1.msra.mxu0 0.0
    %1804 = vmatprep.subr.mxu0 0.0
    %1805 = vmatpush1.msra.mxu0 0.0
    %1806 = vmatprep.subr.mxu0 0.0
    %1807 = vmatpush1.msra.mxu0 0.0
    %1808 = vmatprep.subr.mxu0 0.0
    %1809 = vmatpush1.msra.mxu0 0.0
    %1810 = vmatprep.subr.mxu0 0.0
    %1811 = vmatpush1.msra.mxu0 0.0
    %1812 = vmatprep.subr.mxu0 0.0
    %1813 = vmatpush1.msra.mxu0 0.0
    %1814 = vmatprep.mubr.f32.mxu0 0.0
    %1815 = vmatmul.mubr.f32.gmra.mrb[0].mxu0 %v1514
    %v1816 = vpop.f32.mrb[0].mxu0
    %v1817 = vadd.f32 %v1505, %v1816
    %v1818 = vpop.f32.mrb[0].mxu0
    %v1819 = vadd.f32 %v1505, %v1818
    %1820 = vmatprep.mubr.f32.mxu0 0.0
    %1821 = vmatmul.mubr.f32.gmra.mrb[0].mxu0 %v1517
    %v1822 = vpop.f32.mrb[0].mxu0
    %v1823 = vadd.f32 %v1510, %v1822
    %v1824 = vpop.f32.mrb[0].mxu0
    %v1825 = vadd.f32 %v1510, %v1824
    %1826 = vdwg.mxu0
    %v1827 = vmax.f32 %v1586, 0.0
    %v1828 = vmax.f32 %v1588, 0.0
    %v1829 = vmax.f32 %v1663, 0.0
    %v1830 = vmax.f32 %v1665, 0.0
    %v1831 = vmax.f32 %v1740, 0.0
    %v1832 = vmax.f32 %v1742, 0.0
    %v1833 = vmax.f32 %v1817, 0.0
    %v1834 = vmax.f32 %v1819, 0.0
    %v1835 = vmax.f32 %v1592, 0.0
    %v1836 = vmax.f32 %v1594, 0.0
    %v1837 = vmax.f32 %v1669, 0.0
    %v1838 = vmax.f32 %v1671, 0.0
    %v1839 = vmax.f32 %v1746, 0.0
    %v1840 = vmax.f32 %v1748, 0.0
    %v1841 = vmax.f32 %v1823, 0.0
    %v1842 = vmax.f32 %v1825, 0.0
    %1843 = vrot.lane.b32.xlu0 %v1827, 66
    %v1844 = vpop.permute.xlu0 %1843
    %1845 = vrot.lane.b32.xlu0 %v1835, 66
    %v1846 = vpop.permute.xlu0 %1845
    %1847 = vrot.lane.b32.xlu0 %v1828, 66
    %v1848 = vpop.permute.xlu0 %1847
    %1849 = vrot.lane.b32.xlu0 %v1836, 66
    %v1850 = vpop.permute.xlu0 %1849
    %1851 = vrot.lane.b32.xlu0 %v1829, 66
    %v1852 = vpop.permute.xlu0 %1851
    %1853 = vrot.lane.b32.xlu0 %v1837, 66
    %v1854 = vpop.permute.xlu0 %1853
    %1855 = vrot.lane.b32.xlu0 %v1830, 66
    %v1856 = vpop.permute.xlu0 %1855
    %1857 = vrot.lane.b32.xlu0 %v1838, 66
    %v1858 = vpop.permute.xlu0 %1857
    %1859 = vrot.lane.b32.xlu0 %v1831, 66
    %v1860 = vpop.permute.xlu0 %1859
    %1861 = vrot.lane.b32.xlu0 %v1839, 66
    %v1862 = vpop.permute.xlu0 %1861
    %1863 = vrot.lane.b32.xlu0 %v1832, 66
    %v1864 = vpop.permute.xlu0 %1863
    %1865 = vrot.lane.b32.xlu0 %v1840, 66
    %v1866 = vpop.permute.xlu0 %1865
    %1867 = vrot.lane.b32.xlu0 %v1833, 66
    %v1868 = vpop.permute.xlu0 %1867
    %1869 = vrot.lane.b32.xlu0 %v1841, 66
    %v1870 = vpop.permute.xlu0 %1869
    %1871 = vrot.lane.b32.xlu0 %v1834, 66
    %v1872 = vpop.permute.xlu0 %1871
    %1873 = vrot.lane.b32.xlu0 %v1842, 66
    %v1874 = vpop.permute.xlu0 %1873
    %vm1875 = vcmp.lt.s32.totalorder %v66, 66
    %v1876 = vsel %vm1875, %v1868, %v1872
    %v1877 = vsel %vm1875, %v1870, %v1874
    %v1878 = vsel %vm1875, %v1864, %v1868
    %v1879 = vsel %vm1875, %v1866, %v1870
    %v1880 = vsel %vm1875, %v1860, %v1864
    %v1881 = vsel %vm1875, %v1862, %v1866
    %v1882 = vsel %vm1875, %v1856, %v1860
    %v1883 = vsel %vm1875, %v1858, %v1862
    %v1884 = vsel %vm1875, %v1852, %v1856
    %v1885 = vsel %vm1875, %v1854, %v1858
    %v1886 = vsel %vm1875, %v1848, %v1852
    %v1887 = vsel %vm1875, %v1850, %v1854
    %v1888 = vsel %vm1875, %v1844, %v1848
    %v1889 = vsel %vm1875, %v1846, %v1850
    %v1890 = vsel %vm1875, %v1872, %v1844
    %v1891 = vsel %vm1875, %v1874, %v1846
    %vm1892 = vcmp.ge.s32.totalorder %v74, 2
    %vm1893 = vcmp.ge.s32.totalorder %v75, 2
    %vm1894 = vcmp.ge.s32.totalorder %v76, 2
    %vm1895 = vcmp.ge.s32.totalorder %v77, 2
    %vm1896 = vcmp.ge.s32.totalorder %v78, 2
    %vm1897 = vcmp.ge.s32.totalorder %v79, 2
    %vm1898 = vcmp.ge.s32.totalorder %v80, 2
    %vm1899 = vcmp.ge.s32.totalorder %v81, 2
    %vm1900 = vcmp.lt.s32.totalorder %v74, 34
    %vm1901 = vcmp.lt.s32.totalorder %v75, 34
    %vm1902 = vcmp.lt.s32.totalorder %v76, 34
    %vm1903 = vcmp.lt.s32.totalorder %v77, 34
    %vm1904 = vcmp.lt.s32.totalorder %v78, 34
    %vm1905 = vcmp.lt.s32.totalorder %v79, 34
    %vm1906 = vcmp.lt.s32.totalorder %v80, 34
    %vm1907 = vcmp.lt.s32.totalorder %v81, 34
    %vm1908 = vmand %vm1892, %vm1900
    %vm1909 = vmand %vm1893, %vm1901
    %vm1910 = vmand %vm1894, %vm1902
    %vm1911 = vmand %vm1895, %vm1903
    %vm1912 = vmand %vm1896, %vm1904
    %vm1913 = vmand %vm1897, %vm1905
    %vm1914 = vmand %vm1898, %vm1906
    %vm1915 = vmand %vm1899, %vm1907
    %vm1916 = vcmp.ge.s32.totalorder %v82, 2
    %vm1917 = vcmp.ge.s32.totalorder %v83, 2
    %vm1918 = vcmp.ge.s32.totalorder %v84, 2
    %vm1919 = vcmp.ge.s32.totalorder %v85, 2
    %vm1920 = vcmp.ge.s32.totalorder %v86, 2
    %vm1921 = vcmp.ge.s32.totalorder %v87, 2
    %vm1922 = vcmp.ge.s32.totalorder %v88, 2
    %vm1923 = vcmp.ge.s32.totalorder %v89, 2
    %vm1924 = vmand %vm1908, %vm1916
    %vm1925 = vmand %vm1909, %vm1917
    %vm1926 = vmand %vm1910, %vm1918
    %vm1927 = vmand %vm1911, %vm1919
    %vm1928 = vmand %vm1912, %vm1920
    %vm1929 = vmand %vm1913, %vm1921
    %vm1930 = vmand %vm1914, %vm1922
    %vm1931 = vmand %vm1915, %vm1923
    %vm1932 = vcmp.lt.s32.totalorder %v82, 34
    %vm1933 = vcmp.lt.s32.totalorder %v83, 34
    %vm1934 = vcmp.lt.s32.totalorder %v84, 34
    %vm1935 = vcmp.lt.s32.totalorder %v85, 34
    %vm1936 = vcmp.lt.s32.totalorder %v86, 34
    %vm1937 = vcmp.lt.s32.totalorder %v87, 34
    %vm1938 = vcmp.lt.s32.totalorder %v88, 34
    %vm1939 = vcmp.lt.s32.totalorder %v89, 34
    %vm1940 = vmand %vm1924, %vm1932
    %vm1941 = vmand %vm1925, %vm1933
    %vm1942 = vmand %vm1926, %vm1934
    %vm1943 = vmand %vm1927, %vm1935
    %vm1944 = vmand %vm1928, %vm1936
    %vm1945 = vmand %vm1929, %vm1937
    %vm1946 = vmand %vm1930, %vm1938
    %vm1947 = vmand %vm1931, %vm1939
    %v1948 = vsel %vm1940, 1.0, 0.0
    %v1949 = vsel %vm1941, 1.0, 0.0
    %v1950 = vsel %vm1942, 1.0, 0.0
    %v1951 = vsel %vm1943, 1.0, 0.0
    %v1952 = vsel %vm1944, 1.0, 0.0
    %v1953 = vsel %vm1945, 1.0, 0.0
    %v1954 = vsel %vm1946, 1.0, 0.0
    %v1955 = vsel %vm1947, 1.0, 0.0
    %v1956 = vmul.f32 %v1890, %v1948
    %v1957 = vmul.f32 %v1888, %v1949
    %v1958 = vmul.f32 %v1886, %v1950
    %v1959 = vmul.f32 %v1884, %v1951
    %v1960 = vmul.f32 %v1882, %v1952
    %v1961 = vmul.f32 %v1880, %v1953
    %v1962 = vmul.f32 %v1878, %v1954
    %v1963 = vmul.f32 %v1876, %v1955
    %v1964 = vmul.f32 %v1891, %v1948
    %v1965 = vmul.f32 %v1889, %v1949
    %v1966 = vmul.f32 %v1887, %v1950
    %v1967 = vmul.f32 %v1885, %v1951
    %v1968 = vmul.f32 %v1883, %v1952
    %v1969 = vmul.f32 %v1881, %v1953
    %v1970 = vmul.f32 %v1879, %v1954
    %v1971 = vmul.f32 %v1877, %v1955
    %1972 = vrot.lane.b32.xlu0 %v1827, 64
    %v1973 = vpop.permute.xlu0 %1972
    %1974 = vrot.lane.b32.xlu0 %v1835, 64
    %v1975 = vpop.permute.xlu0 %1974
    %1976 = vrot.lane.b32.xlu0 %v1828, 64
    %v1977 = vpop.permute.xlu0 %1976
    %1978 = vrot.lane.b32.xlu0 %v1836, 64
    %v1979 = vpop.permute.xlu0 %1978
    %1980 = vrot.lane.b32.xlu0 %v1829, 64
    %v1981 = vpop.permute.xlu0 %1980
    %1982 = vrot.lane.b32.xlu0 %v1837, 64
    %v1983 = vpop.permute.xlu0 %1982
    %1984 = vrot.lane.b32.xlu0 %v1830, 64
    %v1985 = vpop.permute.xlu0 %1984
    %1986 = vrot.lane.b32.xlu0 %v1838, 64
    %v1987 = vpop.permute.xlu0 %1986
    %1988 = vrot.lane.b32.xlu0 %v1831, 64
    %v1989 = vpop.permute.xlu0 %1988
    %1990 = vrot.lane.b32.xlu0 %v1839, 64
    %v1991 = vpop.permute.xlu0 %1990
    %1992 = vrot.lane.b32.xlu0 %v1832, 64
    %v1993 = vpop.permute.xlu0 %1992
    %1994 = vrot.lane.b32.xlu0 %v1840, 64
    %v1995 = vpop.permute.xlu0 %1994
    %1996 = vrot.lane.b32.xlu0 %v1833, 64
    %v1997 = vpop.permute.xlu0 %1996
    %1998 = vrot.lane.b32.xlu0 %v1841, 64
    %v1999 = vpop.permute.xlu0 %1998
    %2000 = vrot.lane.b32.xlu0 %v1834, 64
    %v2001 = vpop.permute.xlu0 %2000
    %2002 = vrot.lane.b32.xlu0 %v1842, 64
    %v2003 = vpop.permute.xlu0 %2002
    %vm2004 = vcmp.lt.s32.totalorder %v66, 64
    %v2005 = vsel %vm2004, %v1997, %v2001
    %v2006 = vsel %vm2004, %v1999, %v2003
    %v2007 = vsel %vm2004, %v1993, %v1997
    %v2008 = vsel %vm2004, %v1995, %v1999
    %v2009 = vsel %vm2004, %v1989, %v1993
    %v2010 = vsel %vm2004, %v1991, %v1995
    %v2011 = vsel %vm2004, %v1985, %v1989
    %v2012 = vsel %vm2004, %v1987, %v1991
    %v2013 = vsel %vm2004, %v1981, %v1985
    %v2014 = vsel %vm2004, %v1983, %v1987
    %v2015 = vsel %vm2004, %v1977, %v1981
    %v2016 = vsel %vm2004, %v1979, %v1983
    %v2017 = vsel %vm2004, %v1973, %v1977
    %v2018 = vsel %vm2004, %v1975, %v1979
    %v2019 = vsel %vm2004, %v2001, %v1973
    %v2020 = vsel %vm2004, %v2003, %v1975
    %vm2021 = vmand %vm1908, %vm254
    %vm2022 = vmand %vm1909, %vm255
    %vm2023 = vmand %vm1910, %vm256
    %vm2024 = vmand %vm1911, %vm257
    %vm2025 = vmand %vm1912, %vm258
    %vm2026 = vmand %vm1913, %vm259
    %vm2027 = vmand %vm1914, %vm260
    %vm2028 = vmand %vm1915, %vm261
    %vm2029 = vmand %vm2021, %vm270
    %vm2030 = vmand %vm2022, %vm271
    %vm2031 = vmand %vm2023, %vm272
    %vm2032 = vmand %vm2024, %vm273
    %vm2033 = vmand %vm2025, %vm274
    %vm2034 = vmand %vm2026, %vm275
    %vm2035 = vmand %vm2027, %vm276
    %vm2036 = vmand %vm2028, %vm277
    %v2037 = vsel %vm2029, 1.0, 0.0
    %v2038 = vsel %vm2030, 1.0, 0.0
    %v2039 = vsel %vm2031, 1.0, 0.0
    %v2040 = vsel %vm2032, 1.0, 0.0
    %v2041 = vsel %vm2033, 1.0, 0.0
    %v2042 = vsel %vm2034, 1.0, 0.0
    %v2043 = vsel %vm2035, 1.0, 0.0
    %v2044 = vsel %vm2036, 1.0, 0.0
    %v2045 = vmul.f32 %v2019, %v2037
    %v2046 = vmul.f32 %v2017, %v2038
    %v2047 = vmul.f32 %v2015, %v2039
    %v2048 = vmul.f32 %v2013, %v2040
    %v2049 = vmul.f32 %v2011, %v2041
    %v2050 = vmul.f32 %v2009, %v2042
    %v2051 = vmul.f32 %v2007, %v2043
    %v2052 = vmul.f32 %v2005, %v2044
    %v2053 = vmul.f32 %v2020, %v2037
    %v2054 = vmul.f32 %v2018, %v2038
    %v2055 = vmul.f32 %v2016, %v2039
    %v2056 = vmul.f32 %v2014, %v2040
    %v2057 = vmul.f32 %v2012, %v2041
    %v2058 = vmul.f32 %v2010, %v2042
    %v2059 = vmul.f32 %v2008, %v2043
    %v2060 = vmul.f32 %v2006, %v2044
    %2061 = vrot.lane.b32.xlu0 %v1827, 62
    %v2062 = vpop.permute.xlu0 %2061
    %2063 = vrot.lane.b32.xlu0 %v1835, 62
    %v2064 = vpop.permute.xlu0 %2063
    %2065 = vrot.lane.b32.xlu0 %v1828, 62
    %v2066 = vpop.permute.xlu0 %2065
    %2067 = vrot.lane.b32.xlu0 %v1836, 62
    %v2068 = vpop.permute.xlu0 %2067
    %2069 = vrot.lane.b32.xlu0 %v1829, 62
    %v2070 = vpop.permute.xlu0 %2069
    %2071 = vrot.lane.b32.xlu0 %v1837, 62
    %v2072 = vpop.permute.xlu0 %2071
    %2073 = vrot.lane.b32.xlu0 %v1830, 62
    %v2074 = vpop.permute.xlu0 %2073
    %2075 = vrot.lane.b32.xlu0 %v1838, 62
    %v2076 = vpop.permute.xlu0 %2075
    %2077 = vrot.lane.b32.xlu0 %v1831, 62
    %v2078 = vpop.permute.xlu0 %2077
    %2079 = vrot.lane.b32.xlu0 %v1839, 62
    %v2080 = vpop.permute.xlu0 %2079
    %2081 = vrot.lane.b32.xlu0 %v1832, 62
    %v2082 = vpop.permute.xlu0 %2081
    %2083 = vrot.lane.b32.xlu0 %v1840, 62
    %v2084 = vpop.permute.xlu0 %2083
    %2085 = vrot.lane.b32.xlu0 %v1833, 62
    %v2086 = vpop.permute.xlu0 %2085
    %2087 = vrot.lane.b32.xlu0 %v1841, 62
    %v2088 = vpop.permute.xlu0 %2087
    %2089 = vrot.lane.b32.xlu0 %v1834, 62
    %v2090 = vpop.permute.xlu0 %2089
    %2091 = vrot.lane.b32.xlu0 %v1842, 62
    %v2092 = vpop.permute.xlu0 %2091
    %vm2093 = vcmp.lt.s32.totalorder %v66, 62
    %v2094 = vsel %vm2093, %v2086, %v2090
    %v2095 = vsel %vm2093, %v2088, %v2092
    %v2096 = vsel %vm2093, %v2082, %v2086
    %v2097 = vsel %vm2093, %v2084, %v2088
    %v2098 = vsel %vm2093, %v2078, %v2082
    %v2099 = vsel %vm2093, %v2080, %v2084
    %v2100 = vsel %vm2093, %v2074, %v2078
    %v2101 = vsel %vm2093, %v2076, %v2080
    %v2102 = vsel %vm2093, %v2070, %v2074
    %v2103 = vsel %vm2093, %v2072, %v2076
    %v2104 = vsel %vm2093, %v2066, %v2070
    %v2105 = vsel %vm2093, %v2068, %v2072
    %v2106 = vsel %vm2093, %v2062, %v2066
    %v2107 = vsel %vm2093, %v2064, %v2068
    %v2108 = vsel %vm2093, %v2090, %v2062
    %v2109 = vsel %vm2093, %v2092, %v2064
    %vm2110 = vcmp.ge.s32.totalorder %v82, 4294967294
    %vm2111 = vcmp.ge.s32.totalorder %v83, 4294967294
    %vm2112 = vcmp.ge.s32.totalorder %v84, 4294967294
    %vm2113 = vcmp.ge.s32.totalorder %v85, 4294967294
    %vm2114 = vcmp.ge.s32.totalorder %v86, 4294967294
    %vm2115 = vcmp.ge.s32.totalorder %v87, 4294967294
    %vm2116 = vcmp.ge.s32.totalorder %v88, 4294967294
    %vm2117 = vcmp.ge.s32.totalorder %v89, 4294967294
    %vm2118 = vmand %vm1908, %vm2110
    %vm2119 = vmand %vm1909, %vm2111
    %vm2120 = vmand %vm1910, %vm2112
    %vm2121 = vmand %vm1911, %vm2113
    %vm2122 = vmand %vm1912, %vm2114
    %vm2123 = vmand %vm1913, %vm2115
    %vm2124 = vmand %vm1914, %vm2116
    %vm2125 = vmand %vm1915, %vm2117
    %vm2126 = vcmp.lt.s32.totalorder %v82, 30
    %vm2127 = vcmp.lt.s32.totalorder %v83, 30
    %vm2128 = vcmp.lt.s32.totalorder %v84, 30
    %vm2129 = vcmp.lt.s32.totalorder %v85, 30
    %vm2130 = vcmp.lt.s32.totalorder %v86, 30
    %vm2131 = vcmp.lt.s32.totalorder %v87, 30
    %vm2132 = vcmp.lt.s32.totalorder %v88, 30
    %vm2133 = vcmp.lt.s32.totalorder %v89, 30
    %vm2134 = vmand %vm2118, %vm2126
    %vm2135 = vmand %vm2119, %vm2127
    %vm2136 = vmand %vm2120, %vm2128
    %vm2137 = vmand %vm2121, %vm2129
    %vm2138 = vmand %vm2122, %vm2130
    %vm2139 = vmand %vm2123, %vm2131
    %vm2140 = vmand %vm2124, %vm2132
    %vm2141 = vmand %vm2125, %vm2133
    %v2142 = vsel %vm2134, 1.0, 0.0
    %v2143 = vsel %vm2135, 1.0, 0.0
    %v2144 = vsel %vm2136, 1.0, 0.0
    %v2145 = vsel %vm2137, 1.0, 0.0
    %v2146 = vsel %vm2138, 1.0, 0.0
    %v2147 = vsel %vm2139, 1.0, 0.0
    %v2148 = vsel %vm2140, 1.0, 0.0
    %v2149 = vsel %vm2141, 1.0, 0.0
    %v2150 = vmul.f32 %v2108, %v2142
    %v2151 = vmul.f32 %v2106, %v2143
    %v2152 = vmul.f32 %v2104, %v2144
    %v2153 = vmul.f32 %v2102, %v2145
    %v2154 = vmul.f32 %v2100, %v2146
    %v2155 = vmul.f32 %v2098, %v2147
    %v2156 = vmul.f32 %v2096, %v2148
    %v2157 = vmul.f32 %v2094, %v2149
    %v2158 = vmul.f32 %v2109, %v2142
    %v2159 = vmul.f32 %v2107, %v2143
    %v2160 = vmul.f32 %v2105, %v2144
    %v2161 = vmul.f32 %v2103, %v2145
    %v2162 = vmul.f32 %v2101, %v2146
    %v2163 = vmul.f32 %v2099, %v2147
    %v2164 = vmul.f32 %v2097, %v2148
    %v2165 = vmul.f32 %v2095, %v2149
    %2166 = vrot.lane.b32.xlu0 %v1827, 2
    %v2167 = vpop.permute.xlu0 %2166
    %2168 = vrot.lane.b32.xlu0 %v1835, 2
    %v2169 = vpop.permute.xlu0 %2168
    %2170 = vrot.lane.b32.xlu0 %v1828, 2
    %v2171 = vpop.permute.xlu0 %2170
    %2172 = vrot.lane.b32.xlu0 %v1836, 2
    %v2173 = vpop.permute.xlu0 %2172
    %2174 = vrot.lane.b32.xlu0 %v1829, 2
    %v2175 = vpop.permute.xlu0 %2174
    %2176 = vrot.lane.b32.xlu0 %v1837, 2
    %v2177 = vpop.permute.xlu0 %2176
    %2178 = vrot.lane.b32.xlu0 %v1830, 2
    %v2179 = vpop.permute.xlu0 %2178
    %2180 = vrot.lane.b32.xlu0 %v1838, 2
    %v2181 = vpop.permute.xlu0 %2180
    %2182 = vrot.lane.b32.xlu0 %v1831, 2
    %v2183 = vpop.permute.xlu0 %2182
    %2184 = vrot.lane.b32.xlu0 %v1839, 2
    %v2185 = vpop.permute.xlu0 %2184
    %2186 = vrot.lane.b32.xlu0 %v1832, 2
    %v2187 = vpop.permute.xlu0 %2186
    %2188 = vrot.lane.b32.xlu0 %v1840, 2
    %v2189 = vpop.permute.xlu0 %2188
    %2190 = vrot.lane.b32.xlu0 %v1833, 2
    %v2191 = vpop.permute.xlu0 %2190
    %2192 = vrot.lane.b32.xlu0 %v1841, 2
    %v2193 = vpop.permute.xlu0 %2192
    %2194 = vrot.lane.b32.xlu0 %v1834, 2
    %v2195 = vpop.permute.xlu0 %2194
    %2196 = vrot.lane.b32.xlu0 %v1842, 2
    %v2197 = vpop.permute.xlu0 %2196
    %vm2198 = vcmp.lt.s32.totalorder %v66, 2
    %v2199 = vsel %vm2198, %v2191, %v2195
    %v2200 = vsel %vm2198, %v2193, %v2197
    %v2201 = vsel %vm2198, %v2187, %v2191
    %v2202 = vsel %vm2198, %v2189, %v2193
    %v2203 = vsel %vm2198, %v2183, %v2187
    %v2204 = vsel %vm2198, %v2185, %v2189
    %v2205 = vsel %vm2198, %v2179, %v2183
    %v2206 = vsel %vm2198, %v2181, %v2185
    %v2207 = vsel %vm2198, %v2175, %v2179
    %v2208 = vsel %vm2198, %v2177, %v2181
    %v2209 = vsel %vm2198, %v2171, %v2175
    %v2210 = vsel %vm2198, %v2173, %v2177
    %v2211 = vsel %vm2198, %v2167, %v2171
    %v2212 = vsel %vm2198, %v2169, %v2173
    %v2213 = vsel %vm2198, %v2195, %v2167
    %v2214 = vsel %vm2198, %v2197, %v2169
    %vm2215 = vmand %vm416, %vm1916
    %vm2216 = vmand %vm417, %vm1917
    %vm2217 = vmand %vm418, %vm1918
    %vm2218 = vmand %vm419, %vm1919
    %vm2219 = vmand %vm420, %vm1920
    %vm2220 = vmand %vm421, %vm1921
    %vm2221 = vmand %vm422, %vm1922
    %vm2222 = vmand %vm423, %vm1923
    %vm2223 = vmand %vm2215, %vm1932
    %vm2224 = vmand %vm2216, %vm1933
    %vm2225 = vmand %vm2217, %vm1934
    %vm2226 = vmand %vm2218, %vm1935
    %vm2227 = vmand %vm2219, %vm1936
    %vm2228 = vmand %vm2220, %vm1937
    %vm2229 = vmand %vm2221, %vm1938
    %vm2230 = vmand %vm2222, %vm1939
    %v2231 = vsel %vm2223, 1.0, 0.0
    %v2232 = vsel %vm2224, 1.0, 0.0
    %v2233 = vsel %vm2225, 1.0, 0.0
    %v2234 = vsel %vm2226, 1.0, 0.0
    %v2235 = vsel %vm2227, 1.0, 0.0
    %v2236 = vsel %vm2228, 1.0, 0.0
    %v2237 = vsel %vm2229, 1.0, 0.0
    %v2238 = vsel %vm2230, 1.0, 0.0
    %v2239 = vmul.f32 %v2213, %v2231
    %v2240 = vmul.f32 %v2211, %v2232
    %v2241 = vmul.f32 %v2209, %v2233
    %v2242 = vmul.f32 %v2207, %v2234
    %v2243 = vmul.f32 %v2205, %v2235
    %v2244 = vmul.f32 %v2203, %v2236
    %v2245 = vmul.f32 %v2201, %v2237
    %v2246 = vmul.f32 %v2199, %v2238
    %v2247 = vmul.f32 %v2214, %v2231
    %v2248 = vmul.f32 %v2212, %v2232
    %v2249 = vmul.f32 %v2210, %v2233
    %v2250 = vmul.f32 %v2208, %v2234
    %v2251 = vmul.f32 %v2206, %v2235
    %v2252 = vmul.f32 %v2204, %v2236
    %v2253 = vmul.f32 %v2202, %v2237
    %v2254 = vmul.f32 %v2200, %v2238
    %2255 = vrot.lane.b32.xlu0 %v1827, 126
    %v2256 = vpop.permute.xlu0 %2255
    %2257 = vrot.lane.b32.xlu0 %v1835, 126
    %v2258 = vpop.permute.xlu0 %2257
    %2259 = vrot.lane.b32.xlu0 %v1828, 126
    %v2260 = vpop.permute.xlu0 %2259
    %2261 = vrot.lane.b32.xlu0 %v1836, 126
    %v2262 = vpop.permute.xlu0 %2261
    %2263 = vrot.lane.b32.xlu0 %v1829, 126
    %v2264 = vpop.permute.xlu0 %2263
    %2265 = vrot.lane.b32.xlu0 %v1837, 126
    %v2266 = vpop.permute.xlu0 %2265
    %2267 = vrot.lane.b32.xlu0 %v1830, 126
    %v2268 = vpop.permute.xlu0 %2267
    %2269 = vrot.lane.b32.xlu0 %v1838, 126
    %v2270 = vpop.permute.xlu0 %2269
    %2271 = vrot.lane.b32.xlu0 %v1831, 126
    %v2272 = vpop.permute.xlu0 %2271
    %2273 = vrot.lane.b32.xlu0 %v1839, 126
    %v2274 = vpop.permute.xlu0 %2273
    %2275 = vrot.lane.b32.xlu0 %v1832, 126
    %v2276 = vpop.permute.xlu0 %2275
    %2277 = vrot.lane.b32.xlu0 %v1840, 126
    %v2278 = vpop.permute.xlu0 %2277
    %2279 = vrot.lane.b32.xlu0 %v1833, 126
    %v2280 = vpop.permute.xlu0 %2279
    %2281 = vrot.lane.b32.xlu0 %v1841, 126
    %v2282 = vpop.permute.xlu0 %2281
    %2283 = vrot.lane.b32.xlu0 %v1834, 126
    %v2284 = vpop.permute.xlu0 %2283
    %2285 = vrot.lane.b32.xlu0 %v1842, 126
    %v2286 = vpop.permute.xlu0 %2285
    %vm2287 = vcmp.lt.s32.totalorder %v66, 126
    %v2288 = vsel %vm2287, %v2280, %v2284
    %v2289 = vsel %vm2287, %v2282, %v2286
    %v2290 = vsel %vm2287, %v2276, %v2280
    %v2291 = vsel %vm2287, %v2278, %v2282
    %v2292 = vsel %vm2287, %v2272, %v2276
    %v2293 = vsel %vm2287, %v2274, %v2278
    %v2294 = vsel %vm2287, %v2268, %v2272
    %v2295 = vsel %vm2287, %v2270, %v2274
    %v2296 = vsel %vm2287, %v2264, %v2268
    %v2297 = vsel %vm2287, %v2266, %v2270
    %v2298 = vsel %vm2287, %v2260, %v2264
    %v2299 = vsel %vm2287, %v2262, %v2266
    %v2300 = vsel %vm2287, %v2256, %v2260
    %v2301 = vsel %vm2287, %v2258, %v2262
    %v2302 = vsel %vm2287, %v2284, %v2256
    %v2303 = vsel %vm2287, %v2286, %v2258
    %vm2304 = vmand %vm416, %vm2110
    %vm2305 = vmand %vm417, %vm2111
    %vm2306 = vmand %vm418, %vm2112
    %vm2307 = vmand %vm419, %vm2113
    %vm2308 = vmand %vm420, %vm2114
    %vm2309 = vmand %vm421, %vm2115
    %vm2310 = vmand %vm422, %vm2116
    %vm2311 = vmand %vm423, %vm2117
    %vm2312 = vmand %vm2304, %vm2126
    %vm2313 = vmand %vm2305, %vm2127
    %vm2314 = vmand %vm2306, %vm2128
    %vm2315 = vmand %vm2307, %vm2129
    %vm2316 = vmand %vm2308, %vm2130
    %vm2317 = vmand %vm2309, %vm2131
    %vm2318 = vmand %vm2310, %vm2132
    %vm2319 = vmand %vm2311, %vm2133
    %v2320 = vsel %vm2312, 1.0, 0.0
    %v2321 = vsel %vm2313, 1.0, 0.0
    %v2322 = vsel %vm2314, 1.0, 0.0
    %v2323 = vsel %vm2315, 1.0, 0.0
    %v2324 = vsel %vm2316, 1.0, 0.0
    %v2325 = vsel %vm2317, 1.0, 0.0
    %v2326 = vsel %vm2318, 1.0, 0.0
    %v2327 = vsel %vm2319, 1.0, 0.0
    %v2328 = vmul.f32 %v2300, %v2320
    %v2329 = vmul.f32 %v2298, %v2321
    %v2330 = vmul.f32 %v2296, %v2322
    %v2331 = vmul.f32 %v2294, %v2323
    %v2332 = vmul.f32 %v2292, %v2324
    %v2333 = vmul.f32 %v2290, %v2325
    %v2334 = vmul.f32 %v2288, %v2326
    %v2335 = vmul.f32 %v2302, %v2327
    %v2336 = vmul.f32 %v2301, %v2320
    %v2337 = vmul.f32 %v2299, %v2321
    %v2338 = vmul.f32 %v2297, %v2322
    %v2339 = vmul.f32 %v2295, %v2323
    %v2340 = vmul.f32 %v2293, %v2324
    %v2341 = vmul.f32 %v2291, %v2325
    %v2342 = vmul.f32 %v2289, %v2326
    %v2343 = vmul.f32 %v2303, %v2327
    %vm2344 = vcmp.ge.s32.totalorder %v74, 4294967294
    %vm2345 = vcmp.ge.s32.totalorder %v75, 4294967294
    %vm2346 = vcmp.ge.s32.totalorder %v76, 4294967294
    %vm2347 = vcmp.ge.s32.totalorder %v77, 4294967294
    %vm2348 = vcmp.ge.s32.totalorder %v78, 4294967294
    %vm2349 = vcmp.ge.s32.totalorder %v79, 4294967294
    %vm2350 = vcmp.ge.s32.totalorder %v80, 4294967294
    %vm2351 = vcmp.ge.s32.totalorder %v81, 4294967294
    %vm2352 = vcmp.lt.s32.totalorder %v74, 30
    %vm2353 = vcmp.lt.s32.totalorder %v75, 30
    %vm2354 = vcmp.lt.s32.totalorder %v76, 30
    %vm2355 = vcmp.lt.s32.totalorder %v77, 30
    %vm2356 = vcmp.lt.s32.totalorder %v78, 30
    %vm2357 = vcmp.lt.s32.totalorder %v79, 30
    %vm2358 = vcmp.lt.s32.totalorder %v80, 30
    %vm2359 = vcmp.lt.s32.totalorder %v81, 30
    %vm2360 = vmand %vm2344, %vm2352
    %vm2361 = vmand %vm2345, %vm2353
    %vm2362 = vmand %vm2346, %vm2354
    %vm2363 = vmand %vm2347, %vm2355
    %vm2364 = vmand %vm2348, %vm2356
    %vm2365 = vmand %vm2349, %vm2357
    %vm2366 = vmand %vm2350, %vm2358
    %vm2367 = vmand %vm2351, %vm2359
    %vm2368 = vmand %vm2360, %vm1916
    %vm2369 = vmand %vm2361, %vm1917
    %vm2370 = vmand %vm2362, %vm1918
    %vm2371 = vmand %vm2363, %vm1919
    %vm2372 = vmand %vm2364, %vm1920
    %vm2373 = vmand %vm2365, %vm1921
    %vm2374 = vmand %vm2366, %vm1922
    %vm2375 = vmand %vm2367, %vm1923
    %vm2376 = vmand %vm2368, %vm1932
    %vm2377 = vmand %vm2369, %vm1933
    %vm2378 = vmand %vm2370, %vm1934
    %vm2379 = vmand %vm2371, %vm1935
    %vm2380 = vmand %vm2372, %vm1936
    %vm2381 = vmand %vm2373, %vm1937
    %vm2382 = vmand %vm2374, %vm1938
    %vm2383 = vmand %vm2375, %vm1939
    %v2384 = vsel %vm2376, 1.0, 0.0
    %v2385 = vsel %vm2377, 1.0, 0.0
    %v2386 = vsel %vm2378, 1.0, 0.0
    %v2387 = vsel %vm2379, 1.0, 0.0
    %v2388 = vsel %vm2380, 1.0, 0.0
    %v2389 = vsel %vm2381, 1.0, 0.0
    %v2390 = vsel %vm2382, 1.0, 0.0
    %v2391 = vsel %vm2383, 1.0, 0.0
    %v2392 = vmul.f32 %v1888, %v2384
    %v2393 = vmul.f32 %v1886, %v2385
    %v2394 = vmul.f32 %v1884, %v2386
    %v2395 = vmul.f32 %v1882, %v2387
    %v2396 = vmul.f32 %v1880, %v2388
    %v2397 = vmul.f32 %v1878, %v2389
    %v2398 = vmul.f32 %v1876, %v2390
    %v2399 = vmul.f32 %v1890, %v2391
    %v2400 = vmul.f32 %v1889, %v2384
    %v2401 = vmul.f32 %v1887, %v2385
    %v2402 = vmul.f32 %v1885, %v2386
    %v2403 = vmul.f32 %v1883, %v2387
    %v2404 = vmul.f32 %v1881, %v2388
    %v2405 = vmul.f32 %v1879, %v2389
    %v2406 = vmul.f32 %v1877, %v2390
    %v2407 = vmul.f32 %v1891, %v2391
    %vm2408 = vmand %vm2360, %vm254
    %vm2409 = vmand %vm2361, %vm255
    %vm2410 = vmand %vm2362, %vm256
    %vm2411 = vmand %vm2363, %vm257
    %vm2412 = vmand %vm2364, %vm258
    %vm2413 = vmand %vm2365, %vm259
    %vm2414 = vmand %vm2366, %vm260
    %vm2415 = vmand %vm2367, %vm261
    %vm2416 = vmand %vm2408, %vm270
    %vm2417 = vmand %vm2409, %vm271
    %vm2418 = vmand %vm2410, %vm272
    %vm2419 = vmand %vm2411, %vm273
    %vm2420 = vmand %vm2412, %vm274
    %vm2421 = vmand %vm2413, %vm275
    %vm2422 = vmand %vm2414, %vm276
    %vm2423 = vmand %vm2415, %vm277
    %v2424 = vsel %vm2416, 1.0, 0.0
    %v2425 = vsel %vm2417, 1.0, 0.0
    %v2426 = vsel %vm2418, 1.0, 0.0
    %v2427 = vsel %vm2419, 1.0, 0.0
    %v2428 = vsel %vm2420, 1.0, 0.0
    %v2429 = vsel %vm2421, 1.0, 0.0
    %v2430 = vsel %vm2422, 1.0, 0.0
    %v2431 = vsel %vm2423, 1.0, 0.0
    %v2432 = vmul.f32 %v2017, %v2424
    %v2433 = vmul.f32 %v2015, %v2425
    %v2434 = vmul.f32 %v2013, %v2426
    %v2435 = vmul.f32 %v2011, %v2427
    %v2436 = vmul.f32 %v2009, %v2428
    %v2437 = vmul.f32 %v2007, %v2429
    %v2438 = vmul.f32 %v2005, %v2430
    %v2439 = vmul.f32 %v2019, %v2431
    %v2440 = vmul.f32 %v2018, %v2424
    %v2441 = vmul.f32 %v2016, %v2425
    %v2442 = vmul.f32 %v2014, %v2426
    %v2443 = vmul.f32 %v2012, %v2427
    %v2444 = vmul.f32 %v2010, %v2428
    %v2445 = vmul.f32 %v2008, %v2429
    %v2446 = vmul.f32 %v2006, %v2430
    %v2447 = vmul.f32 %v2020, %v2431
    %vm2448 = vmand %vm2360, %vm2110
    %vm2449 = vmand %vm2361, %vm2111
    %vm2450 = vmand %vm2362, %vm2112
    %vm2451 = vmand %vm2363, %vm2113
    %vm2452 = vmand %vm2364, %vm2114
    %vm2453 = vmand %vm2365, %vm2115
    %vm2454 = vmand %vm2366, %vm2116
    %vm2455 = vmand %vm2367, %vm2117
    %vm2456 = vmand %vm2448, %vm2126
    %vm2457 = vmand %vm2449, %vm2127
    %vm2458 = vmand %vm2450, %vm2128
    %vm2459 = vmand %vm2451, %vm2129
    %vm2460 = vmand %vm2452, %vm2130
    %vm2461 = vmand %vm2453, %vm2131
    %vm2462 = vmand %vm2454, %vm2132
    %vm2463 = vmand %vm2455, %vm2133
    %v2464 = vsel %vm2456, 1.0, 0.0
    %v2465 = vsel %vm2457, 1.0, 0.0
    %v2466 = vsel %vm2458, 1.0, 0.0
    %v2467 = vsel %vm2459, 1.0, 0.0
    %v2468 = vsel %vm2460, 1.0, 0.0
    %v2469 = vsel %vm2461, 1.0, 0.0
    %v2470 = vsel %vm2462, 1.0, 0.0
    %v2471 = vsel %vm2463, 1.0, 0.0
    %v2472 = vmul.f32 %v2106, %v2464
    %v2473 = vmul.f32 %v2104, %v2465
    %v2474 = vmul.f32 %v2102, %v2466
    %v2475 = vmul.f32 %v2100, %v2467
    %v2476 = vmul.f32 %v2098, %v2468
    %v2477 = vmul.f32 %v2096, %v2469
    %v2478 = vmul.f32 %v2094, %v2470
    %v2479 = vmul.f32 %v2108, %v2471
    %v2480 = vmul.f32 %v2107, %v2464
    %v2481 = vmul.f32 %v2105, %v2465
    %v2482 = vmul.f32 %v2103, %v2466
    %v2483 = vmul.f32 %v2101, %v2467
    %v2484 = vmul.f32 %v2099, %v2468
    %v2485 = vmul.f32 %v2097, %v2469
    %v2486 = vmul.f32 %v2095, %v2470
    %v2487 = vmul.f32 %v2109, %v2471
    %v2488 = vld [vmem:[%s5] sm:$0xff]
    %v2489 = vld [vmem:[%s5 + $0x8] sm:$0xff]
    %v2490 = vld [vmem:[%s5 + $0x10] sm:$0xff]
    %v2491 = vld [vmem:[%s5 + $0x18] sm:$0xff]
    %v2492 = vld [vmem:[%s6] sm:$0xff]
    %v2493 = vld [vmem:[%s6 + $0x8] sm:$0xff]
    %2495 = vset.pattern.permute.xlu0 0
    %2496 = vperm.xlu0 %2495, %v2492
    %v2497 = vpop.permute.xlu0 %2496
    %2500 = vset.pattern.permute.xlu0 0
    %2501 = vperm.xlu0 %2500, %v2493
    %v2502 = vpop.permute.xlu0 %2501
    %vm2504 = vcmask 130048
    %v2506 = vsel %vm2504, %v2489, 0
    %v2509 = vsel %vm2504, %v2491, 0
    %2511 = vmatprep.subr.mxu0 %v1957
    %2512 = vmatpush1.msra.mxu0 %v1956
    %2513 = vmatprep.subr.mxu0 %v1965
    %2514 = vmatpush1.msra.mxu0 %v1964
    %2515 = vmatprep.subr.mxu0 %v2046
    %2516 = vmatpush1.msra.mxu0 %v2045
    %2517 = vmatprep.subr.mxu0 %v2054
    %2518 = vmatpush1.msra.mxu0 %v2053
    %2519 = vmatprep.subr.mxu0 %v2151
    %2520 = vmatpush1.msra.mxu0 %v2150
    %2521 = vmatprep.subr.mxu0 %v2159
    %2522 = vmatpush1.msra.mxu0 %v2158
    %2523 = vmatprep.subr.mxu0 %v2240
    %2524 = vmatpush1.msra.mxu0 %v2239
    %2525 = vmatprep.subr.mxu0 %v2248
    %2526 = vmatpush1.msra.mxu0 %v2247
    %2527 = vmatprep.subr.mxu0 %v1828
    %2528 = vmatpush1.msra.mxu0 %v1827
    %2529 = vmatprep.subr.mxu0 %v1836
    %2530 = vmatpush1.msra.mxu0 %v1835
    %2531 = vmatprep.subr.mxu0 %v2329
    %2532 = vmatpush1.msra.mxu0 %v2328
    %2533 = vmatprep.subr.mxu0 %v2337
    %2534 = vmatpush1.msra.mxu0 %v2336
    %2535 = vmatprep.subr.mxu0 %v2393
    %2536 = vmatpush1.msra.mxu0 %v2392
    %2537 = vmatprep.subr.mxu0 %v2401
    %2538 = vmatpush1.msra.mxu0 %v2400
    %2539 = vmatprep.subr.mxu0 %v2433
    %2540 = vmatpush1.msra.mxu0 %v2432
    %2541 = vmatprep.subr.mxu0 %v2441
    %2542 = vmatpush1.msra.mxu0 %v2440
    %2543 = vmatprep.subr.mxu0 %v2473
    %2544 = vmatpush1.msra.mxu0 %v2472
    %2545 = vmatprep.subr.mxu0 %v2481
    %2546 = vmatpush1.msra.mxu0 %v2480
    %2547 = vmatprep.subr.mxu0 0.0
    %2548 = vmatpush1.msra.mxu0 0.0
    %2549 = vmatprep.subr.mxu0 0.0
    %2550 = vmatpush1.msra.mxu0 0.0
    %2551 = vmatprep.subr.mxu0 0.0
    %2552 = vmatpush1.msra.mxu0 0.0
    %2553 = vmatprep.subr.mxu0 0.0
    %2554 = vmatpush1.msra.mxu0 0.0
    %2555 = vmatprep.subr.mxu0 0.0
    %2556 = vmatpush1.msra.mxu0 0.0
    %2557 = vmatprep.subr.mxu0 0.0
    %2558 = vmatpush1.msra.mxu0 0.0
    %2559 = vmatprep.subr.mxu0 0.0
    %2560 = vmatpush1.msra.mxu0 0.0
    %2561 = vmatprep.subr.mxu0 0.0
    %2562 = vmatpush1.msra.mxu0 0.0
    %2563 = vmatprep.subr.mxu0 0.0
    %2564 = vmatpush1.msra.mxu0 0.0
    %2565 = vmatprep.subr.mxu0 0.0
    %2566 = vmatpush1.msra.mxu0 0.0
    %2567 = vmatprep.subr.mxu0 0.0
    %2568 = vmatpush1.msra.mxu0 0.0
    %2569 = vmatprep.subr.mxu0 0.0
    %2570 = vmatpush1.msra.mxu0 0.0
    %2571 = vmatprep.subr.mxu0 0.0
    %2572 = vmatpush1.msra.mxu0 0.0
    %2573 = vmatprep.subr.mxu0 0.0
    %2574 = vmatpush1.msra.mxu0 0.0
    %2575 = vmatprep.mubr.f32.mxu0 %v2506
    %2576 = vmatmul.mubr.f32.gmra.mrb[0].mxu0 %v2488
    %v2577 = vpop.f32.mrb[0].mxu0
    %v2578 = vadd.f32 %v2497, %v2577
    %v2579 = vpop.f32.mrb[0].mxu0
    %v2580 = vadd.f32 %v2497, %v2579
    %2581 = vmatprep.mubr.f32.mxu0 %v2509
    %2582 = vmatmul.mubr.f32.gmra.mrb[0].mxu0 %v2490
    %v2583 = vpop.f32.mrb[0].mxu0
    %v2584 = vadd.f32 %v2502, %v2583
    %v2585 = vpop.f32.mrb[0].mxu0
    %v2586 = vadd.f32 %v2502, %v2585
    %2587 = vdwg.mxu0
    %2588 = vmatprep.subr.mxu0 %v1959
    %2589 = vmatpush1.msra.mxu0 %v1958
    %2590 = vmatprep.subr.mxu0 %v1967
    %2591 = vmatpush1.msra.mxu0 %v1966
    %2592 = vmatprep.subr.mxu0 %v2048
    %2593 = vmatpush1.msra.mxu0 %v2047
    %2594 = vmatprep.subr.mxu0 %v2056
    %2595 = vmatpush1.msra.mxu0 %v2055
    %2596 = vmatprep.subr.mxu0 %v2153
    %2597 = vmatpush1.msra.mxu0 %v2152
    %2598 = vmatprep.subr.mxu0 %v2161
    %2599 = vmatpush1.msra.mxu0 %v2160
    %2600 = vmatprep.subr.mxu0 %v2242
    %2601 = vmatpush1.msra.mxu0 %v2241
    %2602 = vmatprep.subr.mxu0 %v2250
    %2603 = vmatpush1.msra.mxu0 %v2249
    %2604 = vmatprep.subr.mxu0 %v1830
    %2605 = vmatpush1.msra.mxu0 %v1829
    %2606 = vmatprep.subr.mxu0 %v1838
    %2607 = vmatpush1.msra.mxu0 %v1837
    %2608 = vmatprep.subr.mxu0 %v2331
    %2609 = vmatpush1.msra.mxu0 %v2330
    %2610 = vmatprep.subr.mxu0 %v2339
    %2611 = vmatpush1.msra.mxu0 %v2338
    %2612 = vmatprep.subr.mxu0 %v2395
    %2613 = vmatpush1.msra.mxu0 %v2394
    %2614 = vmatprep.subr.mxu0 %v2403
    %2615 = vmatpush1.msra.mxu0 %v2402
    %2616 = vmatprep.subr.mxu0 %v2435
    %2617 = vmatpush1.msra.mxu0 %v2434
    %2618 = vmatprep.subr.mxu0 %v2443
    %2619 = vmatpush1.msra.mxu0 %v2442
    %2620 = vmatprep.subr.mxu0 %v2475
    %2621 = vmatpush1.msra.mxu0 %v2474
    %2622 = vmatprep.subr.mxu0 %v2483
    %2623 = vmatpush1.msra.mxu0 %v2482
    %2624 = vmatprep.subr.mxu0 0.0
    %2625 = vmatpush1.msra.mxu0 0.0
    %2626 = vmatprep.subr.mxu0 0.0
    %2627 = vmatpush1.msra.mxu0 0.0
    %2628 = vmatprep.subr.mxu0 0.0
    %2629 = vmatpush1.msra.mxu0 0.0
    %2630 = vmatprep.subr.mxu0 0.0
    %2631 = vmatpush1.msra.mxu0 0.0
    %2632 = vmatprep.subr.mxu0 0.0
    %2633 = vmatpush1.msra.mxu0 0.0
    %2634 = vmatprep.subr.mxu0 0.0
    %2635 = vmatpush1.msra.mxu0 0.0
    %2636 = vmatprep.subr.mxu0 0.0
    %2637 = vmatpush1.msra.mxu0 0.0
    %2638 = vmatprep.subr.mxu0 0.0
    %2639 = vmatpush1.msra.mxu0 0.0
    %2640 = vmatprep.subr.mxu0 0.0
    %2641 = vmatpush1.msra.mxu0 0.0
    %2642 = vmatprep.subr.mxu0 0.0
    %2643 = vmatpush1.msra.mxu0 0.0
    %2644 = vmatprep.subr.mxu0 0.0
    %2645 = vmatpush1.msra.mxu0 0.0
    %2646 = vmatprep.subr.mxu0 0.0
    %2647 = vmatpush1.msra.mxu0 0.0
    %2648 = vmatprep.subr.mxu0 0.0
    %2649 = vmatpush1.msra.mxu0 0.0
    %2650 = vmatprep.subr.mxu0 0.0
    %2651 = vmatpush1.msra.mxu0 0.0
    %2652 = vmatprep.mubr.f32.mxu0 %v2506
    %2653 = vmatmul.mubr.f32.gmra.mrb[0].mxu0 %v2488
    %v2654 = vpop.f32.mrb[0].mxu0
    %v2655 = vadd.f32 %v2497, %v2654
    %v2656 = vpop.f32.mrb[0].mxu0
    %v2657 = vadd.f32 %v2497, %v2656
    %2658 = vmatprep.mubr.f32.mxu0 %v2509
    %2659 = vmatmul.mubr.f32.gmra.mrb[0].mxu0 %v2490
    %v2660 = vpop.f32.mrb[0].mxu0
    %v2661 = vadd.f32 %v2502, %v2660
    %v2662 = vpop.f32.mrb[0].mxu0
    %v2663 = vadd.f32 %v2502, %v2662
    %2664 = vdwg.mxu0
    %2665 = vmatprep.subr.mxu0 %v1961
    %2666 = vmatpush1.msra.mxu0 %v1960
    %2667 = vmatprep.subr.mxu0 %v1969
    %2668 = vmatpush1.msra.mxu0 %v1968
    %2669 = vmatprep.subr.mxu0 %v2050
    %2670 = vmatpush1.msra.mxu0 %v2049
    %2671 = vmatprep.subr.mxu0 %v2058
    %2672 = vmatpush1.msra.mxu0 %v2057
    %2673 = vmatprep.subr.mxu0 %v2155
    %2674 = vmatpush1.msra.mxu0 %v2154
    %2675 = vmatprep.subr.mxu0 %v2163
    %2676 = vmatpush1.msra.mxu0 %v2162
    %2677 = vmatprep.subr.mxu0 %v2244
    %2678 = vmatpush1.msra.mxu0 %v2243
    %2679 = vmatprep.subr.mxu0 %v2252
    %2680 = vmatpush1.msra.mxu0 %v2251
    %2681 = vmatprep.subr.mxu0 %v1832
    %2682 = vmatpush1.msra.mxu0 %v1831
    %2683 = vmatprep.subr.mxu0 %v1840
    %2684 = vmatpush1.msra.mxu0 %v1839
    %2685 = vmatprep.subr.mxu0 %v2333
    %2686 = vmatpush1.msra.mxu0 %v2332
    %2687 = vmatprep.subr.mxu0 %v2341
    %2688 = vmatpush1.msra.mxu0 %v2340
    %2689 = vmatprep.subr.mxu0 %v2397
    %2690 = vmatpush1.msra.mxu0 %v2396
    %2691 = vmatprep.subr.mxu0 %v2405
    %2692 = vmatpush1.msra.mxu0 %v2404
    %2693 = vmatprep.subr.mxu0 %v2437
    %2694 = vmatpush1.msra.mxu0 %v2436
    %2695 = vmatprep.subr.mxu0 %v2445
    %2696 = vmatpush1.msra.mxu0 %v2444
    %2697 = vmatprep.subr.mxu0 %v2477
    %2698 = vmatpush1.msra.mxu0 %v2476
    %2699 = vmatprep.subr.mxu0 %v2485
    %2700 = vmatpush1.msra.mxu0 %v2484
    %2701 = vmatprep.subr.mxu0 0.0
    %2702 = vmatpush1.msra.mxu0 0.0
    %2703 = vmatprep.subr.mxu0 0.0
    %2704 = vmatpush1.msra.mxu0 0.0
    %2705 = vmatprep.subr.mxu0 0.0
    %2706 = vmatpush1.msra.mxu0 0.0
    %2707 = vmatprep.subr.mxu0 0.0
    %2708 = vmatpush1.msra.mxu0 0.0
    %2709 = vmatprep.subr.mxu0 0.0
    %2710 = vmatpush1.msra.mxu0 0.0
    %2711 = vmatprep.subr.mxu0 0.0
    %2712 = vmatpush1.msra.mxu0 0.0
    %2713 = vmatprep.subr.mxu0 0.0
    %2714 = vmatpush1.msra.mxu0 0.0
    %2715 = vmatprep.subr.mxu0 0.0
    %2716 = vmatpush1.msra.mxu0 0.0
    %2717 = vmatprep.subr.mxu0 0.0
    %2718 = vmatpush1.msra.mxu0 0.0
    %2719 = vmatprep.subr.mxu0 0.0
    %2720 = vmatpush1.msra.mxu0 0.0
    %2721 = vmatprep.subr.mxu0 0.0
    %2722 = vmatpush1.msra.mxu0 0.0
    %2723 = vmatprep.subr.mxu0 0.0
    %2724 = vmatpush1.msra.mxu0 0.0
    %2725 = vmatprep.subr.mxu0 0.0
    %2726 = vmatpush1.msra.mxu0 0.0
    %2727 = vmatprep.subr.mxu0 0.0
    %2728 = vmatpush1.msra.mxu0 0.0
    %2729 = vmatprep.mubr.f32.mxu0 %v2506
    %2730 = vmatmul.mubr.f32.gmra.mrb[0].mxu0 %v2488
    %v2731 = vpop.f32.mrb[0].mxu0
    %v2732 = vadd.f32 %v2497, %v2731
    %v2733 = vpop.f32.mrb[0].mxu0
    %v2734 = vadd.f32 %v2497, %v2733
    %2735 = vmatprep.mubr.f32.mxu0 %v2509
    %2736 = vmatmul.mubr.f32.gmra.mrb[0].mxu0 %v2490
    %v2737 = vpop.f32.mrb[0].mxu0
    %v2738 = vadd.f32 %v2502, %v2737
    %v2739 = vpop.f32.mrb[0].mxu0
    %v2740 = vadd.f32 %v2502, %v2739
    %2741 = vdwg.mxu0
    %2742 = vmatprep.subr.mxu0 %v1963
    %2743 = vmatpush1.msra.mxu0 %v1962
    %2744 = vmatprep.subr.mxu0 %v1971
    %2745 = vmatpush1.msra.mxu0 %v1970
    %2746 = vmatprep.subr.mxu0 %v2052
    %2747 = vmatpush1.msra.mxu0 %v2051
    %2748 = vmatprep.subr.mxu0 %v2060
    %2749 = vmatpush1.msra.mxu0 %v2059
    %2750 = vmatprep.subr.mxu0 %v2157
    %2751 = vmatpush1.msra.mxu0 %v2156
    %2752 = vmatprep.subr.mxu0 %v2165
    %2753 = vmatpush1.msra.mxu0 %v2164
    %2754 = vmatprep.subr.mxu0 %v2246
    %2755 = vmatpush1.msra.mxu0 %v2245
    %2756 = vmatprep.subr.mxu0 %v2254
    %2757 = vmatpush1.msra.mxu0 %v2253
    %2758 = vmatprep.subr.mxu0 %v1834
    %2759 = vmatpush1.msra.mxu0 %v1833
    %2760 = vmatprep.subr.mxu0 %v1842
    %2761 = vmatpush1.msra.mxu0 %v1841
    %2762 = vmatprep.subr.mxu0 %v2335
    %2763 = vmatpush1.msra.mxu0 %v2334
    %2764 = vmatprep.subr.mxu0 %v2343
    %2765 = vmatpush1.msra.mxu0 %v2342
    %2766 = vmatprep.subr.mxu0 %v2399
    %2767 = vmatpush1.msra.mxu0 %v2398
    %2768 = vmatprep.subr.mxu0 %v2407
    %2769 = vmatpush1.msra.mxu0 %v2406
    %2770 = vmatprep.subr.mxu0 %v2439
    %2771 = vmatpush1.msra.mxu0 %v2438
    %2772 = vmatprep.subr.mxu0 %v2447
    %2773 = vmatpush1.msra.mxu0 %v2446
    %2774 = vmatprep.subr.mxu0 %v2479
    %2775 = vmatpush1.msra.mxu0 %v2478
    %2776 = vmatprep.subr.mxu0 %v2487
    %2777 = vmatpush1.msra.mxu0 %v2486
    %2778 = vmatprep.subr.mxu0 0.0
    %2779 = vmatpush1.msra.mxu0 0.0
    %2780 = vmatprep.subr.mxu0 0.0
    %2781 = vmatpush1.msra.mxu0 0.0
    %2782 = vmatprep.subr.mxu0 0.0
    %2783 = vmatpush1.msra.mxu0 0.0
    %2784 = vmatprep.subr.mxu0 0.0
    %2785 = vmatpush1.msra.mxu0 0.0
    %2786 = vmatprep.subr.mxu0 0.0
    %2787 = vmatpush1.msra.mxu0 0.0
    %2788 = vmatprep.subr.mxu0 0.0
    %2789 = vmatpush1.msra.mxu0 0.0
    %2790 = vmatprep.subr.mxu0 0.0
    %2791 = vmatpush1.msra.mxu0 0.0
    %2792 = vmatprep.subr.mxu0 0.0
    %2793 = vmatpush1.msra.mxu0 0.0
    %2794 = vmatprep.subr.mxu0 0.0
    %2795 = vmatpush1.msra.mxu0 0.0
    %2796 = vmatprep.subr.mxu0 0.0
    %2797 = vmatpush1.msra.mxu0 0.0
    %2798 = vmatprep.subr.mxu0 0.0
    %2799 = vmatpush1.msra.mxu0 0.0
    %2800 = vmatprep.subr.mxu0 0.0
    %2801 = vmatpush1.msra.mxu0 0.0
    %2802 = vmatprep.subr.mxu0 0.0
    %2803 = vmatpush1.msra.mxu0 0.0
    %2804 = vmatprep.subr.mxu0 0.0
    %2805 = vmatpush1.msra.mxu0 0.0
    %2806 = vmatprep.mubr.f32.mxu0 %v2506
    %2807 = vmatmul.mubr.f32.gmra.mrb[0].mxu0 %v2488
    %v2808 = vpop.f32.mrb[0].mxu0
    %v2809 = vadd.f32 %v2497, %v2808
    %v2810 = vpop.f32.mrb[0].mxu0
    %v2811 = vadd.f32 %v2497, %v2810
    %2812 = vmatprep.mubr.f32.mxu0 %v2509
    %2813 = vmatmul.mubr.f32.gmra.mrb[0].mxu0 %v2490
    %v2814 = vpop.f32.mrb[0].mxu0
    %v2815 = vadd.f32 %v2502, %v2814
    %v2816 = vpop.f32.mrb[0].mxu0
    %v2817 = vadd.f32 %v2502, %v2816
    %2818 = vdwg.mxu0
    %v2819 = vmax.f32 %v2578, 0.0
    %v2820 = vmax.f32 %v2580, 0.0
    %v2821 = vmax.f32 %v2655, 0.0
    %v2822 = vmax.f32 %v2657, 0.0
    %v2823 = vmax.f32 %v2732, 0.0
    %v2824 = vmax.f32 %v2734, 0.0
    %v2825 = vmax.f32 %v2809, 0.0
    %v2826 = vmax.f32 %v2811, 0.0
    %v2827 = vmax.f32 %v2584, 0.0
    %v2828 = vmax.f32 %v2586, 0.0
    %v2829 = vmax.f32 %v2661, 0.0
    %v2830 = vmax.f32 %v2663, 0.0
    %v2831 = vmax.f32 %v2738, 0.0
    %v2832 = vmax.f32 %v2740, 0.0
    %v2833 = vmax.f32 %v2815, 0.0
    %v2834 = vmax.f32 %v2817, 0.0
    %2835 = vst [vmem:[%s7] sm:$0xff] %v2819
    %2836 = vst [vmem:[%s7 + $0x8] sm:$0xff] %v2820
    %2837 = vst [vmem:[%s7 + $0x10] sm:$0xff] %v2821
    %2838 = vst [vmem:[%s7 + $0x18] sm:$0xff] %v2822
    %2839 = vst [vmem:[%s7 + $0x20] sm:$0xff] %v2823
    %2840 = vst [vmem:[%s7 + $0x28] sm:$0xff] %v2824
    %2841 = vst [vmem:[%s7 + $0x30] sm:$0xff] %v2825
    %2842 = vst [vmem:[%s7 + $0x38] sm:$0xff] %v2826
    %2843 = vst [vmem:[%s7 + $0x40] sm:$0xff] %v2827
    %2844 = vst [vmem:[%s7 + $0x48] sm:$0xff] %v2828
    %2845 = vst [vmem:[%s7 + $0x50] sm:$0xff] %v2829
    %2846 = vst [vmem:[%s7 + $0x58] sm:$0xff] %v2830
    %2847 = vst [vmem:[%s7 + $0x60] sm:$0xff] %v2831
    %2848 = vst [vmem:[%s7 + $0x68] sm:$0xff] %v2832
    %2849 = vst [vmem:[%s7 + $0x70] sm:$0xff] %v2833
    %2850 = vst [vmem:[%s7 + $0x78] sm:$0xff] %v2834
    // Predicated region
    $region42: #{forward.1} parent=1 // pred_check
      _
    $region43: #{forward.1} parent=1 // pred_check_branch
      %2852 = sbr.rel (0) target = $region45
    $region44: #{forward.1} parent=1 // pred_region
      _
    $region45: #{forward.1} parent=1 // pred_fallthru
      _
    // Predicated region
    $region46: #{forward.1} parent=1 // pred_check
      _
    $region47: #{forward.1} parent=1 // pred_check_branch
      %2854 = sbr.rel (0) target = $region49
    $region48: #{forward.1} parent=1 // pred_region
      _
    $region49: #{forward.1} parent=1 // pred_fallthru
      _
    %2855 = vsyncpa [#allocation3], 1
    %2856 = vsyncpa [#allocation5], 1

</llo_original>
